<compile_context>
chip_gen: v6e
topology: v6e:2x2x1
jax: 0.10.0
libtpu: 0.0.40
codegen_flags: <defaults>
</compile_context>

<pallas_src>
import functools

import jax
import jax.numpy as jnp
from jax.experimental import pallas as pl
from jax.experimental.pallas import tpu as pltpu


# --------------------------- VMEM budget (per generation) -------------------- #
def _vmem_config():
    """Return (tile-planning budget, scoped-vmem-limit) in bytes for this chip."""
    try:
        cap = int(pltpu.get_tpu_info().vmem_capacity_bytes)
    except Exception:
        cap = 64 * 1024 * 1024                       # conservative (v7x per-core VMEM)
    cap = max(cap, 32 * 1024 * 1024)
    budget = min(int(cap * 0.70), 80 * 1024 * 1024)  # what the tiler plans against
    limit = min(int(cap * 0.80), 100 * 1024 * 1024)  # scoped limit handed to Mosaic
    return budget, limit


_VMEM_BUDGET, _VMEM_LIMIT = _vmem_config()


# ------------------------------ Pallas kernels ------------------------------ #
def _gemm_act_kernel(p_ref, w_ref, o_ref, *, out_act):
    """No-BN layer: bf16 GEMM tile (f32 acc) + fused activation epilogue."""
    y = jnp.dot(p_ref[...], w_ref[...], preferred_element_type=jnp.float32)
    if out_act == "lrelu":
        y = jnp.where(y > 0, y, 0.2 * y)
    elif out_act == "sigmoid":
        y = jax.nn.sigmoid(y)
    o_ref[...] = y.astype(o_ref.dtype)


def _gemm_stats_kernel(p_ref, w_ref, y_ref, stats_ref):
    """BN layer: GEMM tile + per-tile per-channel (sum, sum_sq) partials.

    The output activation is stored in bf16, but the partials are reduced from
    the f32 accumulator so the BN statistics do not see the bf16 rounding.
    """
    y = jnp.dot(p_ref[...], w_ref[...], preferred_element_type=jnp.float32)
    y_ref[...] = y.astype(y_ref.dtype)
    s = jnp.sum(y, axis=0, keepdims=True)            # [1, OC]
    sq = jnp.sum(y * y, axis=0, keepdims=True)       # [1, OC]
    stats_ref[...] = jnp.concatenate([s, sq], axis=0)[None]   # [1, 2, OC]


def _head_kernel(x_ref, w_ref, scale_ref, shift_ref, o_ref):
    """OC=1 sigmoid head: fused BN4 affine + LeakyReLU + matvec + sigmoid.

    The head conv has pad=0, so applying the per-channel affine directly on
    the flattened patch columns (channel tiled over the 16 taps) is exact.
    """
    x = x_ref[...].astype(jnp.float32) * scale_ref[...] + shift_ref[...]
    x = jnp.where(x > 0, x, 0.2 * x)
    y = jnp.sum(x * w_ref[...], axis=1, keepdims=True)         # [M, 1]
    o_ref[...] = jax.nn.sigmoid(y)


# -------------------------------- JAX glue ---------------------------------- #
def _round_up(x, m):
    return (x + m - 1) // m * m


def _pick_tm(m, k, oc_pad, budget):
    """Largest M-tile (multiple of 256) such that double-buffered bf16
    patch/output tiles + double-buffered bf16 weights fit `budget` bytes,
    capped so M splits into >= 2 tiles when possible (both v7x TCs busy)."""
    if m <= 256:
        return _round_up(m, 8)
    avail = budget - 4 * k * oc_pad - (1 << 20)      # weight dbuf + slack
    tm_cap = max(256, min(avail // (4 * (k + oc_pad)), 8192))
    half_m = _round_up((m + 1) // 2, 256)
    tm = min(tm_cap, half_m)
    return max(256, (tm // 256) * 256)


def _im2col(x, kh, kw, stride, pad):
    """x: [N, H, W, C] -> patches [N*OH*OW, kh*kw*C] (column order (i, j, c))."""
    if pad:
        x = jnp.pad(x, ((0, 0), (pad, pad), (pad, pad), (0, 0)))
    n, h, w, c = x.shape
    oh = (h - kh) // stride + 1
    ow = (w - kw) // stride + 1
    cols = []
    for i in range(kh):
        for j in range(kw):
            cols.append(x[:, i:i + stride * oh:stride, j:j + stride * ow:stride, :])
    p = jnp.stack(cols, axis=3)                      # [N, OH, OW, kh*kw, C]
    return p.reshape(n * oh * ow, kh * kw * c), oh, ow


def conv_block(x, wgt, *, stride, pad, in_scale=None, in_shift=None,
               in_lrelu=False, out_act=None, collect_stats=False):
    """Conv2d(bias=False) as an im2col GEMM.  NHWC in / NHWC out (bf16).

    The previous layer's BN affine (+ LeakyReLU) is applied here, BEFORE the
    zero padding (so the padded border correctly sees post-activation zeros);
    XLA fuses it with the pad / im2col slicing, so no separate activation pass
    is materialized.  With `collect_stats`, the kernel also emits per-tile
    per-channel (sum, sum_sq) partials for this layer's BatchNorm.
    """
    n = x.shape[0]
    oc, cin, kh, kw = wgt.shape
    assert x.shape[-1] == cin

    if in_scale is not None or in_lrelu:
        xf = x.astype(jnp.float32)
        if in_scale is not None:
            xf = xf * in_scale + in_shift
        if in_lrelu:
            xf = jnp.where(xf > 0, xf, 0.2 * xf)
        x = xf.astype(jnp.bfloat16)
    else:
        x = x.astype(jnp.bfloat16)

    patches, oh, ow = _im2col(x, kh, kw, stride, pad)
    m, k = patches.shape

    oc_pad = _round_up(oc, 128)                      # lane-dense output stores
    tm = _pick_tm(m, k, oc_pad, _VMEM_BUDGET)
    m_pad = _round_up(m, tm)
    n_tiles = m_pad // tm
    if m_pad != m:
        patches = jnp.pad(patches, ((0, m_pad - m), (0, 0)))

    wmat = wgt.transpose(2, 3, 1, 0).reshape(k, oc)  # rows in (i, j, c) order
    wmat = jnp.pad(wmat, ((0, 0), (0, oc_pad - oc))).astype(jnp.bfloat16)

    in_specs = [
        pl.BlockSpec((tm, k), lambda i: (i, 0)),       # streamed patch tiles
        pl.BlockSpec((k, oc_pad), lambda i: (0, 0)),   # resident weights
    ]
    cparams = pltpu.CompilerParams(
        dimension_semantics=("parallel",),             # megacore-shardable M axis
        vmem_limit_bytes=_VMEM_LIMIT,
    )

    if collect_stats:
        assert out_act is None
        y, stats = pl.pallas_call(
            _gemm_stats_kernel,
            out_shape=(
                jax.ShapeDtypeStruct((m_pad, oc_pad), jnp.bfloat16),
                jax.ShapeDtypeStruct((n_tiles, 2, oc_pad), jnp.float32),
            ),
            grid=(n_tiles,),
            in_specs=in_specs,
            out_specs=(
                pl.BlockSpec((tm, oc_pad), lambda i: (i, 0)),
                pl.BlockSpec((1, 2, oc_pad), lambda i: (i, 0, 0)),
            ),
            compiler_params=cparams,
        )(patches, wmat)
        y = y[:m, :oc].reshape(n, oh, ow, oc)
        return y, stats[:, :, :oc], m

    y = pl.pallas_call(
        functools.partial(_gemm_act_kernel, out_act=out_act),
        out_shape=jax.ShapeDtypeStruct((m_pad, oc_pad), jnp.bfloat16),
        grid=(n_tiles,),
        in_specs=in_specs,
        out_specs=pl.BlockSpec((tm, oc_pad), lambda i: (i, 0)),
        compiler_params=cparams,
    )(patches, wmat)
    return y[:m, :oc].reshape(n, oh, ow, oc)


def _bn_scale_shift(stats, count, gamma, beta, eps=1e-5):
    """Combine per-tile partials into the train-mode BN affine (biased var).

    Note: E[x^2] - mean^2 in f32 can cancel when channel means are large
    relative to the variance; conv outputs with zero-mean weights are fine.
    """
    total = jnp.sum(stats[:, 0, :], axis=0)
    total_sq = jnp.sum(stats[:, 1, :], axis=0)
    mean = total / count
    var = jnp.maximum(total_sq / count - mean * mean, 0.0)
    scale = gamma.astype(jnp.float32) * jax.lax.rsqrt(var + eps)
    shift = beta.astype(jnp.float32) - mean * scale
    return scale, shift


def head_block(x, wgt, scale, shift):
    """Final Conv2d(8*ndf -> 1, 4, 1, 0) + Sigmoid as one tiny fused kernel."""
    n, kh, kw, c = x.shape
    k = kh * kw * c
    xf = x.reshape(n, k)                             # (i, j, c) column order
    m_pad = _round_up(n, 8)
    if m_pad != n:
        xf = jnp.pad(xf, ((0, m_pad - n), (0, 0)))
    wvec = wgt[0].transpose(1, 2, 0).reshape(1, k).astype(jnp.float32)
    scale_c = jnp.tile(scale, kh * kw).reshape(1, k)
    shift_c = jnp.tile(shift, kh * kw).reshape(1, k)
    out = pl.pallas_call(
        _head_kernel,
        out_shape=jax.ShapeDtypeStruct((m_pad, 1), jnp.float32),
    )(xf, wvec, scale_c, shift_c)
    return out[:n]


def init_params(key, ndf):
    """Deterministic DCGAN-style init (conv ~ N(0, 0.02), BN gamma=1, beta=0)."""
    ks = jax.random.split(key, 5)

    def conv_w(k, oc, ic):
        return (0.02 * jax.random.normal(k, (oc, ic, 4, 4))).astype(jnp.float32)

    return dict(
        w1=conv_w(ks[0], ndf, 1),
        w2=conv_w(ks[1], ndf * 2, ndf),
        g2=jnp.ones((ndf * 2,), jnp.float32), b2=jnp.zeros((ndf * 2,), jnp.float32),
        w3=conv_w(ks[2], ndf * 4, ndf * 2),
        g3=jnp.ones((ndf * 4,), jnp.float32), b3=jnp.zeros((ndf * 4,), jnp.float32),
        w4=conv_w(ks[3], ndf * 8, ndf * 4),
        g4=jnp.ones((ndf * 8,), jnp.float32), b4=jnp.zeros((ndf * 8,), jnp.float32),
        w5=conv_w(ks[4], 1, ndf * 8),
    )


def discriminator_forward(x_nchw, p):
    """x: [N, 1, 64, 64] NCHW -> [N, 1, 1, 1] NCHW (matches PyTorch forward)."""
    n = x_nchw.shape[0]
    x = x_nchw.transpose(0, 2, 3, 1)                 # NCHW -> NHWC once

    # L1: conv + LeakyReLU fused in the GEMM epilogue (no BN).
    a1 = conv_block(x, p["w1"], stride=2, pad=1, out_act="lrelu")

    # L2-L4: conv emits raw output + BN partials; the BN affine + LeakyReLU is
    # folded into the NEXT layer's input path.
    y2, st2, m2 = conv_block(a1, p["w2"], stride=2, pad=1, collect_stats=True)
    s2, b2 = _bn_scale_shift(st2, m2, p["g2"], p["b2"])

    y3, st3, m3 = conv_block(y2, p["w3"], stride=2, pad=1, in_scale=s2,
                             in_shift=b2, in_lrelu=True, collect_stats=True)
    s3, b3 = _bn_scale_shift(st3, m3, p["g3"], p["b3"])

    y4, st4, m4 = conv_block(y3, p["w4"], stride=2, pad=1, in_scale=s3,
                             in_shift=b3, in_lrelu=True, collect_stats=True)
    s4, b4 = _bn_scale_shift(st4, m4, p["g4"], p["b4"])

    # Head: BN4 + LeakyReLU fused in-kernel (pad=0, exact) + matvec + sigmoid.
    out = head_block(y4, p["w5"], s4, b4)
    return out.reshape(n, 1, 1, 1)


if __name__ == "__main__":
    key = jax.random.PRNGKey(0)
    k_x, k_p = jax.random.split(key)

    batch, ndf = 2, 8  # spatial 64 is required by the 5-layer stride-2 stack
    x = jax.random.normal(k_x, (batch, 1, 64, 64), dtype=jnp.float32)
    params = init_params(k_p, ndf)

    fwd = jax.jit(discriminator_forward)
    out = jax.block_until_ready(fwd(x, params))

    assert out.shape == (batch, 1, 1, 1), out.shape
    assert bool(jnp.all(jnp.isfinite(out)))
    assert bool(jnp.all((out >= 0.0) & (out <= 1.0)))
    print("KERNEL_OK")
</pallas_src>

<mosaic_0001>
module attributes {stable_mosaic.version = 11 : i64} {
  func.func @_gemm_act_kernel(%arg0: i32, %arg1: memref<1024x16xbf16, #tpu.memory_space<vmem>>, %arg2: memref<16x128xbf16, #tpu.memory_space<vmem>>, %arg3: memref<1024x128xbf16, #tpu.memory_space<vmem>>) attributes {dimension_semantics = [#tpu.dimension_semantics<parallel>], iteration_bounds = array<i64: 2>, scalar_prefetch = 0 : i64, scratch_operands = 0 : i64, tpu.core_type = #tpu.core_type<tc>, window_params = [{transform_indices = @transform_0, window_bounds = array<i64: 1024, 16>}, {pipeline_mode = #tpu.pipeline_mode<synchronous>, transform_indices = @transform_1, window_bounds = array<i64: 16, 128>}, {transform_indices = @transform_2, window_bounds = array<i64: 1024, 128>}]} {
    %c0 = arith.constant 0 : index
    %c0_0 = arith.constant 0 : index
    %0 = vector.load %arg1[%c0, %c0_0] : memref<1024x16xbf16, #tpu.memory_space<vmem>>, vector<1024x16xbf16>
    %c0_1 = arith.constant 0 : index
    %c0_2 = arith.constant 0 : index
    %1 = vector.load %arg2[%c0_1, %c0_2] : memref<16x128xbf16, #tpu.memory_space<vmem>>, vector<16x128xbf16>
    %cst = arith.constant dense<0.000000e+00> : vector<1024x128xf32>
    %2 = tpu.matmul %0, %1, %cst {dimension_numbers = #tpu.dot_dimension_numbers<[1], [0], [0], [1], [0, 0, 1, 1], [], []>} : vector<1024x16xbf16>, vector<16x128xbf16>, vector<1024x128xf32> -> vector<1024x128xf32>
    %cst_3 = arith.constant 0.000000e+00 : f32
    %3 = vector.broadcast %cst_3 : f32 to vector<1024x128xf32>
    %4 = arith.cmpf ogt, %2, %3 : vector<1024x128xf32>
    %cst_4 = arith.constant 2.000000e-01 : f32
    %5 = vector.broadcast %cst_4 : f32 to vector<1024x128xf32>
    %6 = arith.mulf %5, %2 : vector<1024x128xf32>
    %7 = arith.select %4, %2, %6 : vector<1024x128xi1>, vector<1024x128xf32>
    %8 = arith.truncf %7 : vector<1024x128xf32> to vector<1024x128xbf16>
    %c0_5 = arith.constant 0 : index
    %c0_6 = arith.constant 0 : index
    %9 = vector.load %arg3[%c0_5, %c0_6] : memref<1024x128xbf16, #tpu.memory_space<vmem>>, vector<1024x128xbf16>
    tpu.vector_store %arg3[%c0_5, %c0_6], %8 {strides = array<i32>} : memref<1024x128xbf16, #tpu.memory_space<vmem>>, vector<1024x128xbf16>,
    return
  }
  func.func @transform_0(%arg0: i32) -> (i32, i32) {
    %c0_i32 = arith.constant 0 : i32
    %c0_i32_0 = arith.constant 0 : i32
    return %arg0, %c0_i32 : i32, i32
  }
  func.func @transform_1(%arg0: i32) -> (i32, i32) {
    %c0_i32 = arith.constant 0 : i32
    %c0_i32_0 = arith.constant 0 : i32
    %c0_i32_1 = arith.constant 0 : i32
    return %c0_i32, %c0_i32_0 : i32, i32
  }
  func.func @transform_2(%arg0: i32) -> (i32, i32) {
    %c0_i32 = arith.constant 0 : i32
    %c0_i32_0 = arith.constant 0 : i32
    return %arg0, %c0_i32 : i32, i32
  }
}

module attributes {stable_mosaic.version = 11 : i64} {
  func.func @_gemm_stats_kernel(%arg0: i32, %arg1: memref<256x128xbf16, #tpu.memory_space<vmem>>, %arg2: memref<128x128xbf16, #tpu.memory_space<vmem>>, %arg3: memref<256x128xbf16, #tpu.memory_space<vmem>>, %arg4: memref<1x2x128xf32, #tpu.memory_space<vmem>>) attributes {dimension_semantics = [#tpu.dimension_semantics<parallel>], iteration_bounds = array<i64: 2>, scalar_prefetch = 0 : i64, scratch_operands = 0 : i64, tpu.core_type = #tpu.core_type<tc>, window_params = [{transform_indices = @transform_0, window_bounds = array<i64: 256, 128>}, {pipeline_mode = #tpu.pipeline_mode<synchronous>, transform_indices = @transform_1, window_bounds = array<i64: 128, 128>}, {transform_indices = @transform_2, window_bounds = array<i64: 256, 128>}, {transform_indices = @transform_3, window_bounds = array<i64: 1, 2, 128>}]} {
    %c0 = arith.constant 0 : index
    %c0_0 = arith.constant 0 : index
    %0 = vector.load %arg1[%c0, %c0_0] : memref<256x128xbf16, #tpu.memory_space<vmem>>, vector<256x128xbf16>
    %c0_1 = arith.constant 0 : index
    %c0_2 = arith.constant 0 : index
    %1 = vector.load %arg2[%c0_1, %c0_2] : memref<128x128xbf16, #tpu.memory_space<vmem>>, vector<128x128xbf16>
    %cst = arith.constant dense<0.000000e+00> : vector<256x128xf32>
    %2 = tpu.matmul %0, %1, %cst {dimension_numbers = #tpu.dot_dimension_numbers<[1], [0], [0], [1], [0, 0, 1, 1], [], []>} : vector<256x128xbf16>, vector<128x128xbf16>, vector<256x128xf32> -> vector<256x128xf32>
    %3 = arith.truncf %2 : vector<256x128xf32> to vector<256x128xbf16>
    %c0_3 = arith.constant 0 : index
    %c0_4 = arith.constant 0 : index
    %4 = vector.load %arg3[%c0_3, %c0_4] : memref<256x128xbf16, #tpu.memory_space<vmem>>, vector<256x128xbf16>
    tpu.vector_store %arg3[%c0_3, %c0_4], %3 {strides = array<i32>} : memref<256x128xbf16, #tpu.memory_space<vmem>>, vector<256x128xbf16>,
    %cst_5 = arith.constant dense<0.000000e+00> : vector<128xf32>
    %5 = vector.multi_reduction <add>, %2, %cst_5 [0] : vector<256x128xf32> to vector<128xf32>
    %6 = vector.shape_cast %5 : vector<128xf32> to vector<1x128xf32>
    %7 = arith.mulf %2, %2 : vector<256x128xf32>
    %cst_6 = arith.constant dense<0.000000e+00> : vector<128xf32>
    %8 = vector.multi_reduction <add>, %7, %cst_6 [0] : vector<256x128xf32> to vector<128xf32>
    %9 = vector.shape_cast %8 : vector<128xf32> to vector<1x128xf32>
    %10 = tpu.concatenate %6, %9 in 0 : vector<1x128xf32>, vector<1x128xf32> -> vector<2x128xf32>
    %11 = vector.shape_cast %10 : vector<2x128xf32> to vector<1x2x128xf32>
    %c0_7 = arith.constant 0 : index
    %c0_8 = arith.constant 0 : index
    %c0_9 = arith.constant 0 : index
    %12 = vector.load %arg4[%c0_7, %c0_8, %c0_9] : memref<1x2x128xf32, #tpu.memory_space<vmem>>, vector<1x2x128xf32>
    tpu.vector_store %arg4[%c0_7, %c0_8, %c0_9], %11 {strides = array<i32>} : memref<1x2x128xf32, #tpu.memory_space<vmem>>, vector<1x2x128xf32>,
    return
  }
  func.func @transform_0(%arg0: i32) -> (i32, i32) {
    %c0_i32 = arith.constant 0 : i32
    %c0_i32_0 = arith.constant 0 : i32
    return %arg0, %c0_i32 : i32, i32
  }
  func.func @transform_1(%arg0: i32) -> (i32, i32) {
    %c0_i32 = arith.constant 0 : i32
    %c0_i32_0 = arith.constant 0 : i32
    %c0_i32_1 = arith.constant 0 : i32
    return %c0_i32, %c0_i32_0 : i32, i32
  }
  func.func @transform_2(%arg0: i32) -> (i32, i32) {
    %c0_i32 = arith.constant 0 : i32
    %c0_i32_0 = arith.constant 0 : i32
    return %arg0, %c0_i32 : i32, i32
  }
  func.func @transform_3(%arg0: i32) -> (i32, i32, i32) {
    %c0_i32 = arith.constant 0 : i32
    %c0_i32_0 = arith.constant 0 : i32
    %c0_i32_1 = arith.constant 0 : i32
    return %arg0, %c0_i32, %c0_i32_0 : i32, i32, i32
  }
}

module attributes {stable_mosaic.version = 11 : i64} {
  func.func @_gemm_stats_kernel(%arg0: i32, %arg1: memref<128x256xbf16, #tpu.memory_space<vmem>>, %arg2: memref<256x128xbf16, #tpu.memory_space<vmem>>, %arg3: memref<128x128xbf16, #tpu.memory_space<vmem>>, %arg4: memref<1x2x128xf32, #tpu.memory_space<vmem>>) attributes {dimension_semantics = [#tpu.dimension_semantics<parallel>], iteration_bounds = array<i64: 1>, scalar_prefetch = 0 : i64, scratch_operands = 0 : i64, tpu.core_type = #tpu.core_type<tc>, window_params = [{transform_indices = @transform_0, window_bounds = array<i64: 128, 256>}, {pipeline_mode = #tpu.pipeline_mode<synchronous>, transform_indices = @transform_1, window_bounds = array<i64: 256, 128>}, {transform_indices = @transform_2, window_bounds = array<i64: 128, 128>}, {transform_indices = @transform_3, window_bounds = array<i64: 1, 2, 128>}]} {
    %c0 = arith.constant 0 : index
    %c0_0 = arith.constant 0 : index
    %0 = vector.load %arg1[%c0, %c0_0] : memref<128x256xbf16, #tpu.memory_space<vmem>>, vector<128x256xbf16>
    %c0_1 = arith.constant 0 : index
    %c0_2 = arith.constant 0 : index
    %1 = vector.load %arg2[%c0_1, %c0_2] : memref<256x128xbf16, #tpu.memory_space<vmem>>, vector<256x128xbf16>
    %cst = arith.constant dense<0.000000e+00> : vector<128x128xf32>
    %2 = tpu.matmul %0, %1, %cst {dimension_numbers = #tpu.dot_dimension_numbers<[1], [0], [0], [1], [0, 0, 1, 1], [], []>} : vector<128x256xbf16>, vector<256x128xbf16>, vector<128x128xf32> -> vector<128x128xf32>
    %3 = arith.truncf %2 : vector<128x128xf32> to vector<128x128xbf16>
    %c0_3 = arith.constant 0 : index
    %c0_4 = arith.constant 0 : index
    %4 = vector.load %arg3[%c0_3, %c0_4] : memref<128x128xbf16, #tpu.memory_space<vmem>>, vector<128x128xbf16>
    tpu.vector_store %arg3[%c0_3, %c0_4], %3 {strides = array<i32>} : memref<128x128xbf16, #tpu.memory_space<vmem>>, vector<128x128xbf16>,
    %cst_5 = arith.constant dense<0.000000e+00> : vector<128xf32>
    %5 = vector.multi_reduction <add>, %2, %cst_5 [0] : vector<128x128xf32> to vector<128xf32>
    %6 = vector.shape_cast %5 : vector<128xf32> to vector<1x128xf32>
    %7 = arith.mulf %2, %2 : vector<128x128xf32>
    %cst_6 = arith.constant dense<0.000000e+00> : vector<128xf32>
    %8 = vector.multi_reduction <add>, %7, %cst_6 [0] : vector<128x128xf32> to vector<128xf32>
    %9 = vector.shape_cast %8 : vector<128xf32> to vector<1x128xf32>
    %10 = tpu.concatenate %6, %9 in 0 : vector<1x128xf32>, vector<1x128xf32> -> vector<2x128xf32>
    %11 = vector.shape_cast %10 : vector<2x128xf32> to vector<1x2x128xf32>
    %c0_7 = arith.constant 0 : index
    %c0_8 = arith.constant 0 : index
    %c0_9 = arith.constant 0 : index
    %12 = vector.load %arg4[%c0_7, %c0_8, %c0_9] : memref<1x2x128xf32, #tpu.memory_space<vmem>>, vector<1x2x128xf32>
    tpu.vector_store %arg4[%c0_7, %c0_8, %c0_9], %11 {strides = array<i32>} : memref<1x2x128xf32, #tpu.memory_space<vmem>>, vector<1x2x128xf32>,
    return
  }
  func.func @transform_0(%arg0: i32) -> (i32, i32) {
    %c0_i32 = arith.constant 0 : i32
    %c0_i32_0 = arith.constant 0 : i32
    return %arg0, %c0_i32 : i32, i32
  }
  func.func @transform_1(%arg0: i32) -> (i32, i32) {
    %c0_i32 = arith.constant 0 : i32
    %c0_i32_0 = arith.constant 0 : i32
    %c0_i32_1 = arith.constant 0 : i32
    return %c0_i32, %c0_i32_0 : i32, i32
  }
  func.func @transform_2(%arg0: i32) -> (i32, i32) {
    %c0_i32 = arith.constant 0 : i32
    %c0_i32_0 = arith.constant 0 : i32
    return %arg0, %c0_i32 : i32, i32
  }
  func.func @transform_3(%arg0: i32) -> (i32, i32, i32) {
    %c0_i32 = arith.constant 0 : i32
    %c0_i32_0 = arith.constant 0 : i32
    %c0_i32_1 = arith.constant 0 : i32
    return %arg0, %c0_i32, %c0_i32_0 : i32, i32, i32
  }
}

module attributes {stable_mosaic.version = 11 : i64} {
  func.func @_head_kernel(%arg0: memref<8x1024xbf16, #tpu.memory_space<vmem>>, %arg1: memref<1x1024xf32, #tpu.memory_space<vmem>>, %arg2: memref<1x1024xf32, #tpu.memory_space<vmem>>, %arg3: memref<1x1024xf32, #tpu.memory_space<vmem>>, %arg4: memref<8x1xf32, #tpu.memory_space<vmem>>) attributes {dimension_semantics = [], scalar_prefetch = 0 : i64, scratch_operands = 0 : i64, tpu.core_type = #tpu.core_type<tc>} {
    %c0 = arith.constant 0 : index
    %c0_0 = arith.constant 0 : index
    %0 = vector.load %arg0[%c0, %c0_0] : memref<8x1024xbf16, #tpu.memory_space<vmem>>, vector<8x1024xbf16>
    %1 = arith.extf %0 : vector<8x1024xbf16> to vector<8x1024xf32>
    %c0_1 = arith.constant 0 : index
    %c0_2 = arith.constant 0 : index
    %2 = vector.load %arg2[%c0_1, %c0_2] : memref<1x1024xf32, #tpu.memory_space<vmem>>, vector<1x1024xf32>
    %3 = vector.broadcast %2 : vector<1x1024xf32> to vector<8x1024xf32>
    %4 = arith.mulf %1, %3 : vector<8x1024xf32>
    %c0_3 = arith.constant 0 : index
    %c0_4 = arith.constant 0 : index
    %5 = vector.load %arg3[%c0_3, %c0_4] : memref<1x1024xf32, #tpu.memory_space<vmem>>, vector<1x1024xf32>
    %6 = vector.broadcast %5 : vector<1x1024xf32> to vector<8x1024xf32>
    %7 = arith.addf %4, %6 : vector<8x1024xf32>
    %cst = arith.constant 0.000000e+00 : f32
    %8 = vector.broadcast %cst : f32 to vector<8x1024xf32>
    %9 = arith.cmpf ogt, %7, %8 : vector<8x1024xf32>
    %cst_5 = arith.constant 2.000000e-01 : f32
    %10 = vector.broadcast %cst_5 : f32 to vector<8x1024xf32>
    %11 = arith.mulf %10, %7 : vector<8x1024xf32>
    %12 = arith.select %9, %7, %11 : vector<8x1024xi1>, vector<8x1024xf32>
    %c0_6 = arith.constant 0 : index
    %c0_7 = arith.constant 0 : index
    %13 = vector.load %arg1[%c0_6, %c0_7] : memref<1x1024xf32, #tpu.memory_space<vmem>>, vector<1x1024xf32>
    %14 = vector.broadcast %13 : vector<1x1024xf32> to vector<8x1024xf32>
    %15 = arith.mulf %12, %14 : vector<8x1024xf32>
    %cst_8 = arith.constant dense<0.000000e+00> : vector<8xf32>
    %16 = vector.multi_reduction <add>, %15, %cst_8 [1] : vector<8x1024xf32> to vector<8xf32>
    %17 = vector.shape_cast %16 : vector<8xf32> to vector<8x1xf32>
    %18 = arith.negf %17 : vector<8x1xf32>
    %19 = math.exp %18 : vector<8x1xf32>
    %cst_9 = arith.constant 1.000000e+00 : f32
    %20 = vector.broadcast %cst_9 : f32 to vector<8x1xf32>
    %21 = arith.addf %20, %19 : vector<8x1xf32>
    %22 = arith.divf %20, %21 : vector<8x1xf32>
    %c0_10 = arith.constant 0 : index
    %c0_11 = arith.constant 0 : index
    %23 = vector.load %arg4[%c0_10, %c0_11] : memref<8x1xf32, #tpu.memory_space<vmem>>, vector<8x1xf32>
    tpu.vector_store %arg4[%c0_10, %c0_11], %22 {strides = array<i32>} : memref<8x1xf32, #tpu.memory_space<vmem>>, vector<8x1xf32>,
    return
  }
}

module attributes {stable_mosaic.version = 11 : i64} {
  func.func @_gemm_stats_kernel(%arg0: i32, %arg1: memref<32x512xbf16, #tpu.memory_space<vmem>>, %arg2: memref<512x128xbf16, #tpu.memory_space<vmem>>, %arg3: memref<32x128xbf16, #tpu.memory_space<vmem>>, %arg4: memref<1x2x128xf32, #tpu.memory_space<vmem>>) attributes {dimension_semantics = [#tpu.dimension_semantics<parallel>], iteration_bounds = array<i64: 1>, scalar_prefetch = 0 : i64, scratch_operands = 0 : i64, tpu.core_type = #tpu.core_type<tc>, window_params = [{transform_indices = @transform_0, window_bounds = array<i64: 32, 512>}, {pipeline_mode = #tpu.pipeline_mode<synchronous>, transform_indices = @transform_1, window_bounds = array<i64: 512, 128>}, {transform_indices = @transform_2, window_bounds = array<i64: 32, 128>}, {transform_indices = @transform_3, window_bounds = array<i64: 1, 2, 128>}]} {
    %c0 = arith.constant 0 : index
    %c0_0 = arith.constant 0 : index
    %0 = vector.load %arg1[%c0, %c0_0] : memref<32x512xbf16, #tpu.memory_space<vmem>>, vector<32x512xbf16>
    %c0_1 = arith.constant 0 : index
    %c0_2 = arith.constant 0 : index
    %1 = vector.load %arg2[%c0_1, %c0_2] : memref<512x128xbf16, #tpu.memory_space<vmem>>, vector<512x128xbf16>
    %cst = arith.constant dense<0.000000e+00> : vector<32x128xf32>
    %2 = tpu.matmul %0, %1, %cst {dimension_numbers = #tpu.dot_dimension_numbers<[1], [0], [0], [1], [0, 0, 1, 1], [], []>} : vector<32x512xbf16>, vector<512x128xbf16>, vector<32x128xf32> -> vector<32x128xf32>
    %3 = arith.truncf %2 : vector<32x128xf32> to vector<32x128xbf16>
    %c0_3 = arith.constant 0 : index
    %c0_4 = arith.constant 0 : index
    %4 = vector.load %arg3[%c0_3, %c0_4] : memref<32x128xbf16, #tpu.memory_space<vmem>>, vector<32x128xbf16>
    tpu.vector_store %arg3[%c0_3, %c0_4], %3 {strides = array<i32>} : memref<32x128xbf16, #tpu.memory_space<vmem>>, vector<32x128xbf16>,
    %cst_5 = arith.constant dense<0.000000e+00> : vector<128xf32>
    %5 = vector.multi_reduction <add>, %2, %cst_5 [0] : vector<32x128xf32> to vector<128xf32>
    %6 = vector.shape_cast %5 : vector<128xf32> to vector<1x128xf32>
    %7 = arith.mulf %2, %2 : vector<32x128xf32>
    %cst_6 = arith.constant dense<0.000000e+00> : vector<128xf32>
    %8 = vector.multi_reduction <add>, %7, %cst_6 [0] : vector<32x128xf32> to vector<128xf32>
    %9 = vector.shape_cast %8 : vector<128xf32> to vector<1x128xf32>
    %10 = tpu.concatenate %6, %9 in 0 : vector<1x128xf32>, vector<1x128xf32> -> vector<2x128xf32>
    %11 = vector.shape_cast %10 : vector<2x128xf32> to vector<1x2x128xf32>
    %c0_7 = arith.constant 0 : index
    %c0_8 = arith.constant 0 : index
    %c0_9 = arith.constant 0 : index
    %12 = vector.load %arg4[%c0_7, %c0_8, %c0_9] : memref<1x2x128xf32, #tpu.memory_space<vmem>>, vector<1x2x128xf32>
    tpu.vector_store %arg4[%c0_7, %c0_8, %c0_9], %11 {strides = array<i32>} : memref<1x2x128xf32, #tpu.memory_space<vmem>>, vector<1x2x128xf32>,
    return
  }
  func.func @transform_0(%arg0: i32) -> (i32, i32) {
    %c0_i32 = arith.constant 0 : i32
    %c0_i32_0 = arith.constant 0 : i32
    return %arg0, %c0_i32 : i32, i32
  }
  func.func @transform_1(%arg0: i32) -> (i32, i32) {
    %c0_i32 = arith.constant 0 : i32
    %c0_i32_0 = arith.constant 0 : i32
    %c0_i32_1 = arith.constant 0 : i32
    return %c0_i32, %c0_i32_0 : i32, i32
  }
  func.func @transform_2(%arg0: i32) -> (i32, i32) {
    %c0_i32 = arith.constant 0 : i32
    %c0_i32_0 = arith.constant 0 : i32
    return %arg0, %c0_i32 : i32, i32
  }
  func.func @transform_3(%arg0: i32) -> (i32, i32, i32) {
    %c0_i32 = arith.constant 0 : i32
    %c0_i32_0 = arith.constant 0 : i32
    %c0_i32_1 = arith.constant 0 : i32
    return %arg0, %c0_i32, %c0_i32_0 : i32, i32, i32
  }
}

</mosaic_0001>

<llo_original>
// kernel: discriminator_forward.5
$region0: #{discriminator_forward.5}
  #allocation0 [shape = 'u32[]', space=smem, size = 0x4, offset = 0x4, fixed_abs, tag = 'smem constant byte address 0x4 - core index']
  #allocation1 [shape = 'u32[144,128]{1,0:T(1,128)}', space=vmem, size = 0x12000, scoped, tag = 'internal scratch']
  %s0 = inlined_call_operand.vmem [shape: bf16[2048,16], index: 0, kind: input, shape index: {}]
  %s1 = inlined_call_operand.vmem [shape: bf16[16,128], index: 1, kind: input, shape index: {}]
  %s2 = inlined_call_operand.vmem [shape: bf16[2048,128], index: 2, kind: output, shape index: {}]
  %s3 = sld [smem:[#allocation0]]
  $region41: #{discriminator_forward.5} parent=0
    _
  %s5 = ssub.s32 1, %s3
  %s6 = scalar_select 0, %s5, %s3
  loop: start=0, step=1, limit=4
  $region2: #{discriminator_forward.5} parent=0 // loop_pre_header
    _
  $region3: #{discriminator_forward.5} parent=0 // loop_header
    %s8 = sphi 0, %s12
    %p9 = scmp.ge.s32.totalorder %s8, 4
    %s18 = sphi 0, %s20
    %s21 = sphi 0, %s18
    %s22 = sphi 0, %s21
    %s38 = sphi 0, %s22
    %s42 = sphi 0, %s42
    %s44 = sphi 0, %s42
    %s45 = sphi 0, %s44
    %s59 = sphi 0, %s45
    %s65 = sphi 0, %s67
    %s68 = sphi 0, %s65
    %s69 = sphi 0, %s68
    %s85 = sphi 0, %s69
  $region4: #{discriminator_forward.5} parent=0 // loop_header_branch
    %11 = sbr.rel (%p9) target = $region8
  $region5: #{discriminator_forward.5} parent=0 // loop_body
    %s13 = ssub.s32 %s8, 1
    %s14 = ssub.s32 %s8, 2
    %s15 = sadd.s32 %s8, 1
    %s16 = ssub.s32 %s8, %s15
    %p17 = scmp.eq.s32.totalorder %s16, 0
    %s19 = sadd.s32 %s18, 1
    %s20 = scalar_select %p17, %s18, %s19
    %p23 = pneg %p17
    %p24 = scmp.eq.s32.totalorder %s8, 1
    %p25 = por %p23, %p24
    %p26 = scmp.ne.s32.totalorder %s18, %s21
    %p27 = scmp.eq.s32.totalorder %s8, 0
    %p28 = por %p26, %p27
    %p29 = scmp.ne.s32.totalorder %s18, %s21
    %p30 = scmp.eq.s32.totalorder %s13, 1
    %p31 = por %p29, %p30
    %p32 = scmp.ne.s32.totalorder %s21, %s22
    %p33 = scmp.eq.s32.totalorder %s13, 0
    %p34 = por %p32, %p33
    %p35 = scmp.ne.s32.totalorder %s21, %s22
    %p36 = scmp.eq.s32.totalorder %s14, 1
    %p37 = por %p35, %p36
    %p39 = scmp.ne.s32.totalorder %s22, %s38
    %p40 = scmp.eq.s32.totalorder %s14, 0
    %p41 = por %p39, %p40
    %s43 = sadd.s32 %s42, 1
    %p46 = scmp.eq.s32.totalorder %s8, 1
    %p47 = scmp.ne.s32.totalorder %s42, %s44
    %p48 = scmp.eq.s32.totalorder %s8, 0
    %p49 = por %p47, %p48
    %p50 = scmp.ne.s32.totalorder %s42, %s44
    %p51 = scmp.eq.s32.totalorder %s13, 1
    %p52 = por %p50, %p51
    %p53 = scmp.ne.s32.totalorder %s44, %s45
    %p54 = scmp.eq.s32.totalorder %s13, 0
    %p55 = por %p53, %p54
    %p56 = scmp.ne.s32.totalorder %s44, %s45
    %p57 = scmp.eq.s32.totalorder %s14, 1
    %p58 = por %p56, %p57
    %p60 = scmp.ne.s32.totalorder %s45, %s59
    %p61 = scmp.eq.s32.totalorder %s14, 0
    %p62 = por %p60, %p61
    %s63 = ssub.s32 %s8, %s15
    %p64 = scmp.eq.s32.totalorder %s63, 0
    %s66 = sadd.s32 %s65, 1
    %s67 = scalar_select %p64, %s65, %s66
    %p70 = pneg %p64
    %p71 = scmp.eq.s32.totalorder %s8, 1
    %p72 = por %p70, %p71
    %p73 = scmp.ne.s32.totalorder %s65, %s68
    %p74 = scmp.eq.s32.totalorder %s8, 0
    %p75 = por %p73, %p74
    %p76 = scmp.ne.s32.totalorder %s65, %s68
    %p77 = scmp.eq.s32.totalorder %s13, 1
    %p78 = por %p76, %p77
    %p79 = scmp.ne.s32.totalorder %s68, %s69
    %p80 = scmp.eq.s32.totalorder %s13, 0
    %p81 = por %p79, %p80
    %p82 = scmp.ne.s32.totalorder %s68, %s69
    %p83 = scmp.eq.s32.totalorder %s14, 1
    %p84 = por %p82, %p83
    %p86 = scmp.ne.s32.totalorder %s69, %s85
    %p87 = scmp.eq.s32.totalorder %s14, 0
    %p88 = por %p86, %p87
    %p89 = scmp.le.s32.totalorder 1, %s8
    %p90 = scmp.lt.s32.totalorder %s8, 3
    %p91 = pnand %p89, %p90
    %p92 = pneg %p91
    // Predicated region
    $region9: #{discriminator_forward.5} parent=5 // pred_check
      _
    $region10: #{discriminator_forward.5} parent=5 // pred_check_branch
      %94 = sbr.rel (%p91) target = $region12
    $region11: #{discriminator_forward.5} parent=5 // pred_region
      %s95 = ssub.s32 %s8, 1
      // Predicated region
      $region13: #{discriminator_forward.5} parent=11 // pred_check
        %p96 = pneg %p55
      $region14: #{discriminator_forward.5} parent=11 // pred_check_branch
        %98 = sbr.rel (%p96) target = $region16
      $region15: #{discriminator_forward.5} parent=11 // pred_region
        _
      $region16: #{discriminator_forward.5} parent=11 // pred_fallthru
        _
    $region12: #{discriminator_forward.5} parent=5 // pred_fallthru
      _
    %p99 = scmp.lt.s32.totalorder %s8, 2
    // Predicated region
    $region17: #{discriminator_forward.5} parent=5 // pred_check
      %p100 = pneg %p99
    $region18: #{discriminator_forward.5} parent=5 // pred_check_branch
      %102 = sbr.rel (%p100) target = $region20
    $region19: #{discriminator_forward.5} parent=5 // pred_region
      // Predicated region
      $region21: #{discriminator_forward.5} parent=19 // pred_check
        %p103 = pneg %p28
      $region22: #{discriminator_forward.5} parent=19 // pred_check_branch
        %105 = sbr.rel (%p103) target = $region24
      $region23: #{discriminator_forward.5} parent=19 // pred_region
        %s106 = smul.u32 128, %s8
        %p107 = scmp.lt.s32.totalorder %s106, 255
        %s108 = scalar_select %p107, %s106, 255
        %s109 = smul.addr %s108, 4
        %s110 = scalar_lea.vmem %s0, %s109
        %s111 = smul.u32 128, %s8
      $region24: #{discriminator_forward.5} parent=19 // pred_fallthru
        _
    $region20: #{discriminator_forward.5} parent=5 // pred_fallthru
      _
    %p112 = scmp.le.s32.totalorder 1, %s8
    %p113 = scmp.lt.s32.totalorder %s8, 3
    %p114 = pnand %p112, %p113
    %p115 = pneg %p114
    // Predicated region
    $region25: #{discriminator_forward.5} parent=5 // pred_check
      _
    $region26: #{discriminator_forward.5} parent=5 // pred_check_branch
      %117 = sbr.rel (%p114) target = $region28
    $region27: #{discriminator_forward.5} parent=5 // pred_region
      %s118 = ssub.s32 %s8, 1
      %s119 = smul.u32 128, %s13
      %p120 = scmp.lt.s32.totalorder %s119, 255
      %s121 = scalar_select %p120, %s119, 255
      %s122 = smul.addr %s121, 4
      %s123 = scalar_lea.vmem %s0, %s122
      %p124 = pneg %p34
      %p125 = pneg %p31
      %p126 = pneg %p55
      %p127 = pneg %p52
      %p128 = pneg %p81
      %p129 = pneg %p78
      %s130 = smul.u32 128, %s13
      %p131 = scmp.lt.s32.totalorder %s130, 255
      %s132 = scalar_select %p131, %s130, 255
      %s133 = smul.addr %s132, 4
      %s134 = scalar_lea.vmem %s2, %s133
      %s135 = smul.u32 128, %s13
      %p136 = scmp.lt.s32.totalorder %s135, 255
      %s137 = scalar_select %p136, %s135, 255
      %s138 = smul.addr %s137, 4
      %s139 = scalar_lea.vmem %s0, %s138
      %s140 = smul.u32 128, %s13
      %s141 = smul.u32 128, %s13
      %p142 = scmp.lt.s32.totalorder %s141, 255
      %s143 = scalar_select %p142, %s141, 255
      %s144 = smul.addr %s143, 4
      %s145 = scalar_lea.vmem %s2, %s144
      %s146 = smul.u32 128, %s13
      %v148 = vld [vmem:[%s139] sm:$0xf]
      %v149 = vld [vmem:[%s139 + $0x4] sm:$0xf]
      %v150 = vld [vmem:[%s139 + $0x8] sm:$0xf]
      %v151 = vld [vmem:[%s139 + $0xc] sm:$0xf]
      %v152 = vld [vmem:[%s139 + $0x10] sm:$0xf]
      %v153 = vld [vmem:[%s139 + $0x14] sm:$0xf]
      %v154 = vld [vmem:[%s139 + $0x18] sm:$0xf]
      %v155 = vld [vmem:[%s139 + $0x1c] sm:$0xf]
      %v156 = vld [vmem:[%s139 + $0x20] sm:$0xf]
      %v157 = vld [vmem:[%s139 + $0x24] sm:$0xf]
      %v158 = vld [vmem:[%s139 + $0x28] sm:$0xf]
      %v159 = vld [vmem:[%s139 + $0x2c] sm:$0xf]
      %v160 = vld [vmem:[%s139 + $0x30] sm:$0xf]
      %v161 = vld [vmem:[%s139 + $0x34] sm:$0xf]
      %v162 = vld [vmem:[%s139 + $0x38] sm:$0xf]
      %v163 = vld [vmem:[%s139 + $0x3c] sm:$0xf]
      %v164 = vld [vmem:[%s139 + $0x40] sm:$0xf]
      %v165 = vld [vmem:[%s139 + $0x44] sm:$0xf]
      %v166 = vld [vmem:[%s139 + $0x48] sm:$0xf]
      %v167 = vld [vmem:[%s139 + $0x4c] sm:$0xf]
      %v168 = vld [vmem:[%s139 + $0x50] sm:$0xf]
      %v169 = vld [vmem:[%s139 + $0x54] sm:$0xf]
      %v170 = vld [vmem:[%s139 + $0x58] sm:$0xf]
      %v171 = vld [vmem:[%s139 + $0x5c] sm:$0xf]
      %v172 = vld [vmem:[%s139 + $0x60] sm:$0xf]
      %v173 = vld [vmem:[%s139 + $0x64] sm:$0xf]
      %v174 = vld [vmem:[%s139 + $0x68] sm:$0xf]
      %v175 = vld [vmem:[%s139 + $0x6c] sm:$0xf]
      %v176 = vld [vmem:[%s139 + $0x70] sm:$0xf]
      %v177 = vld [vmem:[%s139 + $0x74] sm:$0xf]
      %v178 = vld [vmem:[%s139 + $0x78] sm:$0xf]
      %v179 = vld [vmem:[%s139 + $0x7c] sm:$0xf]
      %v180 = vld [vmem:[%s139 + $0x80] sm:$0xf]
      %v181 = vld [vmem:[%s139 + $0x84] sm:$0xf]
      %v182 = vld [vmem:[%s139 + $0x88] sm:$0xf]
      %v183 = vld [vmem:[%s139 + $0x8c] sm:$0xf]
      %v184 = vld [vmem:[%s139 + $0x90] sm:$0xf]
      %v185 = vld [vmem:[%s139 + $0x94] sm:$0xf]
      %v186 = vld [vmem:[%s139 + $0x98] sm:$0xf]
      %v187 = vld [vmem:[%s139 + $0x9c] sm:$0xf]
      %v188 = vld [vmem:[%s139 + $0xa0] sm:$0xf]
      %v189 = vld [vmem:[%s139 + $0xa4] sm:$0xf]
      %v190 = vld [vmem:[%s139 + $0xa8] sm:$0xf]
      %v191 = vld [vmem:[%s139 + $0xac] sm:$0xf]
      %v192 = vld [vmem:[%s139 + $0xb0] sm:$0xf]
      %v193 = vld [vmem:[%s139 + $0xb4] sm:$0xf]
      %v194 = vld [vmem:[%s139 + $0xb8] sm:$0xf]
      %v195 = vld [vmem:[%s139 + $0xbc] sm:$0xf]
      %v196 = vld [vmem:[%s139 + $0xc0] sm:$0xf]
      %v197 = vld [vmem:[%s139 + $0xc4] sm:$0xf]
      %v198 = vld [vmem:[%s139 + $0xc8] sm:$0xf]
      %v199 = vld [vmem:[%s139 + $0xcc] sm:$0xf]
      %v200 = vld [vmem:[%s139 + $0xd0] sm:$0xf]
      %v201 = vld [vmem:[%s139 + $0xd4] sm:$0xf]
      %v202 = vld [vmem:[%s139 + $0xd8] sm:$0xf]
      %v203 = vld [vmem:[%s139 + $0xdc] sm:$0xf]
      %v204 = vld [vmem:[%s139 + $0xe0] sm:$0xf]
      %v205 = vld [vmem:[%s139 + $0xe4] sm:$0xf]
      %v206 = vld [vmem:[%s139 + $0xe8] sm:$0xf]
      %v207 = vld [vmem:[%s139 + $0xec] sm:$0xf]
      %v208 = vld [vmem:[%s139 + $0xf0] sm:$0xf]
      %v209 = vld [vmem:[%s139 + $0xf4] sm:$0xf]
      %v210 = vld [vmem:[%s139 + $0xf8] sm:$0xf]
      %v211 = vld [vmem:[%s139 + $0xfc] sm:$0xf]
      %v212 = vld [vmem:[%s139 + $0x100] sm:$0xf]
      %v213 = vld [vmem:[%s139 + $0x104] sm:$0xf]
      %v214 = vld [vmem:[%s139 + $0x108] sm:$0xf]
      %v215 = vld [vmem:[%s139 + $0x10c] sm:$0xf]
      %v216 = vld [vmem:[%s139 + $0x110] sm:$0xf]
      %v217 = vld [vmem:[%s139 + $0x114] sm:$0xf]
      %v218 = vld [vmem:[%s139 + $0x118] sm:$0xf]
      %v219 = vld [vmem:[%s139 + $0x11c] sm:$0xf]
      %v220 = vld [vmem:[%s139 + $0x120] sm:$0xf]
      %v221 = vld [vmem:[%s139 + $0x124] sm:$0xf]
      %v222 = vld [vmem:[%s139 + $0x128] sm:$0xf]
      %v223 = vld [vmem:[%s139 + $0x12c] sm:$0xf]
      %v224 = vld [vmem:[%s139 + $0x130] sm:$0xf]
      %v225 = vld [vmem:[%s139 + $0x134] sm:$0xf]
      %v226 = vld [vmem:[%s139 + $0x138] sm:$0xf]
      %v227 = vld [vmem:[%s139 + $0x13c] sm:$0xf]
      %v228 = vld [vmem:[%s139 + $0x140] sm:$0xf]
      %v229 = vld [vmem:[%s139 + $0x144] sm:$0xf]
      %v230 = vld [vmem:[%s139 + $0x148] sm:$0xf]
      %v231 = vld [vmem:[%s139 + $0x14c] sm:$0xf]
      %v232 = vld [vmem:[%s139 + $0x150] sm:$0xf]
      %v233 = vld [vmem:[%s139 + $0x154] sm:$0xf]
      %v234 = vld [vmem:[%s139 + $0x158] sm:$0xf]
      %v235 = vld [vmem:[%s139 + $0x15c] sm:$0xf]
      %v236 = vld [vmem:[%s139 + $0x160] sm:$0xf]
      %v237 = vld [vmem:[%s139 + $0x164] sm:$0xf]
      %v238 = vld [vmem:[%s139 + $0x168] sm:$0xf]
      %v239 = vld [vmem:[%s139 + $0x16c] sm:$0xf]
      %v240 = vld [vmem:[%s139 + $0x170] sm:$0xf]
      %v241 = vld [vmem:[%s139 + $0x174] sm:$0xf]
      %v242 = vld [vmem:[%s139 + $0x178] sm:$0xf]
      %v243 = vld [vmem:[%s139 + $0x17c] sm:$0xf]
      %v244 = vld [vmem:[%s139 + $0x180] sm:$0xf]
      %v245 = vld [vmem:[%s139 + $0x184] sm:$0xf]
      %v246 = vld [vmem:[%s139 + $0x188] sm:$0xf]
      %v247 = vld [vmem:[%s139 + $0x18c] sm:$0xf]
      %v248 = vld [vmem:[%s139 + $0x190] sm:$0xf]
      %v249 = vld [vmem:[%s139 + $0x194] sm:$0xf]
      %v250 = vld [vmem:[%s139 + $0x198] sm:$0xf]
      %v251 = vld [vmem:[%s139 + $0x19c] sm:$0xf]
      %v252 = vld [vmem:[%s139 + $0x1a0] sm:$0xf]
      %v253 = vld [vmem:[%s139 + $0x1a4] sm:$0xf]
      %v254 = vld [vmem:[%s139 + $0x1a8] sm:$0xf]
      %v255 = vld [vmem:[%s139 + $0x1ac] sm:$0xf]
      %v256 = vld [vmem:[%s139 + $0x1b0] sm:$0xf]
      %v257 = vld [vmem:[%s139 + $0x1b4] sm:$0xf]
      %v258 = vld [vmem:[%s139 + $0x1b8] sm:$0xf]
      %v259 = vld [vmem:[%s139 + $0x1bc] sm:$0xf]
      %v260 = vld [vmem:[%s139 + $0x1c0] sm:$0xf]
      %v261 = vld [vmem:[%s139 + $0x1c4] sm:$0xf]
      %v262 = vld [vmem:[%s139 + $0x1c8] sm:$0xf]
      %v263 = vld [vmem:[%s139 + $0x1cc] sm:$0xf]
      %v264 = vld [vmem:[%s139 + $0x1d0] sm:$0xf]
      %v265 = vld [vmem:[%s139 + $0x1d4] sm:$0xf]
      %v266 = vld [vmem:[%s139 + $0x1d8] sm:$0xf]
      %v267 = vld [vmem:[%s139 + $0x1dc] sm:$0xf]
      %v268 = vld [vmem:[%s139 + $0x1e0] sm:$0xf]
      %v269 = vld [vmem:[%s139 + $0x1e4] sm:$0xf]
      %v270 = vld [vmem:[%s139 + $0x1e8] sm:$0xf]
      %v271 = vld [vmem:[%s139 + $0x1ec] sm:$0xf]
      %v272 = vld [vmem:[%s139 + $0x1f0] sm:$0xf]
      %v273 = vld [vmem:[%s139 + $0x1f4] sm:$0xf]
      %v274 = vld [vmem:[%s139 + $0x1f8] sm:$0xf]
      %v275 = vld [vmem:[%s139 + $0x1fc] sm:$0xf]
      %v276 = vld [vmem:[%s1] sm:$0xf]
      %v277 = vld [vmem:[%s1 + $0x4] sm:$0xf]
      %v406 = vunpack.c.l.b16 %v148
      %v407 = vunpack.c.l.b16 %v149
      %v408 = vunpack.c.l.b16 %v150
      %v409 = vunpack.c.l.b16 %v151
      %v410 = vunpack.c.l.b16 %v152
      %v411 = vunpack.c.l.b16 %v153
      %v412 = vunpack.c.l.b16 %v154
      %v413 = vunpack.c.l.b16 %v155
      %v414 = vunpack.c.l.b16 %v156
      %v415 = vunpack.c.l.b16 %v157
      %v416 = vunpack.c.l.b16 %v158
      %v417 = vunpack.c.l.b16 %v159
      %v418 = vunpack.c.l.b16 %v160
      %v419 = vunpack.c.l.b16 %v161
      %v420 = vunpack.c.l.b16 %v162
      %v421 = vunpack.c.l.b16 %v163
      %v422 = vunpack.c.l.b16 %v164
      %v423 = vunpack.c.l.b16 %v165
      %v424 = vunpack.c.l.b16 %v166
      %v425 = vunpack.c.l.b16 %v167
      %v426 = vunpack.c.l.b16 %v168
      %v427 = vunpack.c.l.b16 %v169
      %v428 = vunpack.c.l.b16 %v170
      %v429 = vunpack.c.l.b16 %v171
      %v430 = vunpack.c.l.b16 %v172
      %v431 = vunpack.c.l.b16 %v173
      %v432 = vunpack.c.l.b16 %v174
      %v433 = vunpack.c.l.b16 %v175
      %v434 = vunpack.c.l.b16 %v176
      %v435 = vunpack.c.l.b16 %v177
      %v436 = vunpack.c.l.b16 %v178
      %v437 = vunpack.c.l.b16 %v179
      %v438 = vunpack.c.l.b16 %v180
      %v439 = vunpack.c.l.b16 %v181
      %v440 = vunpack.c.l.b16 %v182
      %v441 = vunpack.c.l.b16 %v183
      %v442 = vunpack.c.l.b16 %v184
      %v443 = vunpack.c.l.b16 %v185
      %v444 = vunpack.c.l.b16 %v186
      %v445 = vunpack.c.l.b16 %v187
      %v446 = vunpack.c.l.b16 %v188
      %v447 = vunpack.c.l.b16 %v189
      %v448 = vunpack.c.l.b16 %v190
      %v449 = vunpack.c.l.b16 %v191
      %v450 = vunpack.c.l.b16 %v192
      %v451 = vunpack.c.l.b16 %v193
      %v452 = vunpack.c.l.b16 %v194
      %v453 = vunpack.c.l.b16 %v195
      %v454 = vunpack.c.l.b16 %v196
      %v455 = vunpack.c.l.b16 %v197
      %v456 = vunpack.c.l.b16 %v198
      %v457 = vunpack.c.l.b16 %v199
      %v458 = vunpack.c.l.b16 %v200
      %v459 = vunpack.c.l.b16 %v201
      %v460 = vunpack.c.l.b16 %v202
      %v461 = vunpack.c.l.b16 %v203
      %v462 = vunpack.c.l.b16 %v204
      %v463 = vunpack.c.l.b16 %v205
      %v464 = vunpack.c.l.b16 %v206
      %v465 = vunpack.c.l.b16 %v207
      %v466 = vunpack.c.l.b16 %v208
      %v467 = vunpack.c.l.b16 %v209
      %v468 = vunpack.c.l.b16 %v210
      %v469 = vunpack.c.l.b16 %v211
      %v470 = vunpack.c.l.b16 %v212
      %v471 = vunpack.c.l.b16 %v213
      %v472 = vunpack.c.l.b16 %v214
      %v473 = vunpack.c.l.b16 %v215
      %v474 = vunpack.c.l.b16 %v216
      %v475 = vunpack.c.l.b16 %v217
      %v476 = vunpack.c.l.b16 %v218
      %v477 = vunpack.c.l.b16 %v219
      %v478 = vunpack.c.l.b16 %v220
      %v479 = vunpack.c.l.b16 %v221
      %v480 = vunpack.c.l.b16 %v222
      %v481 = vunpack.c.l.b16 %v223
      %v482 = vunpack.c.l.b16 %v224
      %v483 = vunpack.c.l.b16 %v225
      %v484 = vunpack.c.l.b16 %v226
      %v485 = vunpack.c.l.b16 %v227
      %v486 = vunpack.c.l.b16 %v228
      %v487 = vunpack.c.l.b16 %v229
      %v488 = vunpack.c.l.b16 %v230
      %v489 = vunpack.c.l.b16 %v231
      %v490 = vunpack.c.l.b16 %v232
      %v491 = vunpack.c.l.b16 %v233
      %v492 = vunpack.c.l.b16 %v234
      %v493 = vunpack.c.l.b16 %v235
      %v494 = vunpack.c.l.b16 %v236
      %v495 = vunpack.c.l.b16 %v237
      %v496 = vunpack.c.l.b16 %v238
      %v497 = vunpack.c.l.b16 %v239
      %v498 = vunpack.c.l.b16 %v240
      %v499 = vunpack.c.l.b16 %v241
      %v500 = vunpack.c.l.b16 %v242
      %v501 = vunpack.c.l.b16 %v243
      %v502 = vunpack.c.l.b16 %v244
      %v503 = vunpack.c.l.b16 %v245
      %v504 = vunpack.c.l.b16 %v246
      %v505 = vunpack.c.l.b16 %v247
      %v506 = vunpack.c.l.b16 %v248
      %v507 = vunpack.c.l.b16 %v249
      %v508 = vunpack.c.l.b16 %v250
      %v509 = vunpack.c.l.b16 %v251
      %v510 = vunpack.c.l.b16 %v252
      %v511 = vunpack.c.l.b16 %v253
      %v512 = vunpack.c.l.b16 %v254
      %v513 = vunpack.c.l.b16 %v255
      %v514 = vunpack.c.l.b16 %v256
      %v515 = vunpack.c.l.b16 %v257
      %v516 = vunpack.c.l.b16 %v258
      %v517 = vunpack.c.l.b16 %v259
      %v518 = vunpack.c.l.b16 %v260
      %v519 = vunpack.c.l.b16 %v261
      %v520 = vunpack.c.l.b16 %v262
      %v521 = vunpack.c.l.b16 %v263
      %v522 = vunpack.c.l.b16 %v264
      %v523 = vunpack.c.l.b16 %v265
      %v524 = vunpack.c.l.b16 %v266
      %v525 = vunpack.c.l.b16 %v267
      %v526 = vunpack.c.l.b16 %v268
      %v527 = vunpack.c.l.b16 %v269
      %v528 = vunpack.c.l.b16 %v270
      %v529 = vunpack.c.l.b16 %v271
      %v530 = vunpack.c.l.b16 %v272
      %v531 = vunpack.c.l.b16 %v273
      %v532 = vunpack.c.l.b16 %v274
      %v533 = vunpack.c.l.b16 %v275
      %v534 = vpack.c.b16 %v407, %v406
      %v535 = vpack.c.b16 %v409, %v408
      %v536 = vpack.c.b16 %v411, %v410
      %v537 = vpack.c.b16 %v413, %v412
      %v538 = vpack.c.b16 %v415, %v414
      %v539 = vpack.c.b16 %v417, %v416
      %v540 = vpack.c.b16 %v419, %v418
      %v541 = vpack.c.b16 %v421, %v420
      %v542 = vpack.c.b16 %v423, %v422
      %v543 = vpack.c.b16 %v425, %v424
      %v544 = vpack.c.b16 %v427, %v426
      %v545 = vpack.c.b16 %v429, %v428
      %v546 = vpack.c.b16 %v431, %v430
      %v547 = vpack.c.b16 %v433, %v432
      %v548 = vpack.c.b16 %v435, %v434
      %v549 = vpack.c.b16 %v437, %v436
      %v550 = vpack.c.b16 %v439, %v438
      %v551 = vpack.c.b16 %v441, %v440
      %v552 = vpack.c.b16 %v443, %v442
      %v553 = vpack.c.b16 %v445, %v444
      %v554 = vpack.c.b16 %v447, %v446
      %v555 = vpack.c.b16 %v449, %v448
      %v556 = vpack.c.b16 %v451, %v450
      %v557 = vpack.c.b16 %v453, %v452
      %v558 = vpack.c.b16 %v455, %v454
      %v559 = vpack.c.b16 %v457, %v456
      %v560 = vpack.c.b16 %v459, %v458
      %v561 = vpack.c.b16 %v461, %v460
      %v562 = vpack.c.b16 %v463, %v462
      %v563 = vpack.c.b16 %v465, %v464
      %v564 = vpack.c.b16 %v467, %v466
      %v565 = vpack.c.b16 %v469, %v468
      %v566 = vpack.c.b16 %v471, %v470
      %v567 = vpack.c.b16 %v473, %v472
      %v568 = vpack.c.b16 %v475, %v474
      %v569 = vpack.c.b16 %v477, %v476
      %v570 = vpack.c.b16 %v479, %v478
      %v571 = vpack.c.b16 %v481, %v480
      %v572 = vpack.c.b16 %v483, %v482
      %v573 = vpack.c.b16 %v485, %v484
      %v574 = vpack.c.b16 %v487, %v486
      %v575 = vpack.c.b16 %v489, %v488
      %v576 = vpack.c.b16 %v491, %v490
      %v577 = vpack.c.b16 %v493, %v492
      %v578 = vpack.c.b16 %v495, %v494
      %v579 = vpack.c.b16 %v497, %v496
      %v580 = vpack.c.b16 %v499, %v498
      %v581 = vpack.c.b16 %v501, %v500
      %v582 = vpack.c.b16 %v503, %v502
      %v583 = vpack.c.b16 %v505, %v504
      %v584 = vpack.c.b16 %v507, %v506
      %v585 = vpack.c.b16 %v509, %v508
      %v586 = vpack.c.b16 %v511, %v510
      %v587 = vpack.c.b16 %v513, %v512
      %v588 = vpack.c.b16 %v515, %v514
      %v589 = vpack.c.b16 %v517, %v516
      %v590 = vpack.c.b16 %v519, %v518
      %v591 = vpack.c.b16 %v521, %v520
      %v592 = vpack.c.b16 %v523, %v522
      %v593 = vpack.c.b16 %v525, %v524
      %v594 = vpack.c.b16 %v527, %v526
      %v595 = vpack.c.b16 %v529, %v528
      %v596 = vpack.c.b16 %v531, %v530
      %v597 = vpack.c.b16 %v533, %v532
      %v600 = vunpack.c.l.b16 %v276
      %v601 = vunpack.c.l.b16 %v277
      %v602 = vpack.c.b16 %v601, %v600
      %vm604 = vcmask 130048
      %v606 = vsel %vm604, %v534, 0
      %v609 = vsel %vm604, %v535, 0
      %v612 = vsel %vm604, %v536, 0
      %v615 = vsel %vm604, %v537, 0
      %v618 = vsel %vm604, %v538, 0
      %v621 = vsel %vm604, %v539, 0
      %v624 = vsel %vm604, %v540, 0
      %v627 = vsel %vm604, %v541, 0
      %v630 = vsel %vm604, %v542, 0
      %v633 = vsel %vm604, %v543, 0
      %v636 = vsel %vm604, %v544, 0
      %v639 = vsel %vm604, %v545, 0
      %v642 = vsel %vm604, %v546, 0
      %v645 = vsel %vm604, %v547, 0
      %v648 = vsel %vm604, %v548, 0
      %v651 = vsel %vm604, %v549, 0
      %v654 = vsel %vm604, %v550, 0
      %v657 = vsel %vm604, %v551, 0
      %v660 = vsel %vm604, %v552, 0
      %v663 = vsel %vm604, %v553, 0
      %v666 = vsel %vm604, %v554, 0
      %v669 = vsel %vm604, %v555, 0
      %v672 = vsel %vm604, %v556, 0
      %v675 = vsel %vm604, %v557, 0
      %v678 = vsel %vm604, %v558, 0
      %v681 = vsel %vm604, %v559, 0
      %v684 = vsel %vm604, %v560, 0
      %v687 = vsel %vm604, %v561, 0
      %v690 = vsel %vm604, %v562, 0
      %v693 = vsel %vm604, %v563, 0
      %v696 = vsel %vm604, %v564, 0
      %v699 = vsel %vm604, %v565, 0
      %v702 = vsel %vm604, %v566, 0
      %v705 = vsel %vm604, %v567, 0
      %v708 = vsel %vm604, %v568, 0
      %v711 = vsel %vm604, %v569, 0
      %v714 = vsel %vm604, %v570, 0
      %v717 = vsel %vm604, %v571, 0
      %v720 = vsel %vm604, %v572, 0
      %v723 = vsel %vm604, %v573, 0
      %v726 = vsel %vm604, %v574, 0
      %v729 = vsel %vm604, %v575, 0
      %v732 = vsel %vm604, %v576, 0
      %v735 = vsel %vm604, %v577, 0
      %v738 = vsel %vm604, %v578, 0
      %v741 = vsel %vm604, %v579, 0
      %v744 = vsel %vm604, %v580, 0
      %v747 = vsel %vm604, %v581, 0
      %v750 = vsel %vm604, %v582, 0
      %v753 = vsel %vm604, %v583, 0
      %v756 = vsel %vm604, %v584, 0
      %v759 = vsel %vm604, %v585, 0
      %v762 = vsel %vm604, %v586, 0
      %v765 = vsel %vm604, %v587, 0
      %v768 = vsel %vm604, %v588, 0
      %v771 = vsel %vm604, %v589, 0
      %v774 = vsel %vm604, %v590, 0
      %v777 = vsel %vm604, %v591, 0
      %v780 = vsel %vm604, %v592, 0
      %v783 = vsel %vm604, %v593, 0
      %v786 = vsel %vm604, %v594, 0
      %v789 = vsel %vm604, %v595, 0
      %v792 = vsel %vm604, %v596, 0
      %v795 = vsel %vm604, %v597, 0
      %797 = vmatprep.subr.bf16.mxu0 0
      %798 = vmatpush1.bf16.msra.mxu0 0
      %799 = vmatprep.subr.bf16.mxu0 0
      %800 = vmatpush1.bf16.msra.mxu0 0
      %801 = vmatprep.subr.bf16.mxu0 0
      %802 = vmatpush1.bf16.msra.mxu0 0
      %803 = vmatprep.subr.bf16.mxu0 0
      %804 = vmatpush1.bf16.msra.mxu0 0
      %805 = vmatprep.subr.bf16.mxu0 0
      %806 = vmatpush1.bf16.msra.mxu0 0
      %807 = vmatprep.subr.bf16.mxu0 0
      %808 = vmatpush1.bf16.msra.mxu0 0
      %809 = vmatprep.subr.bf16.mxu0 0
      %810 = vmatpush1.bf16.msra.mxu0 0
      %811 = vmatprep.subr.bf16.mxu0 0
      %812 = vmatpush1.bf16.msra.mxu0 %v602
      %813 = vmatprep.subr.bf16.mxu0 0
      %814 = vmatpush2.bf16.msra.mxu0 0
      %815 = vmatprep.subr.bf16.mxu0 0
      %816 = vmatpush2.bf16.msra.mxu0 0
      %817 = vmatprep.subr.bf16.mxu0 0
      %818 = vmatpush2.bf16.msra.mxu0 0
      %819 = vmatprep.subr.bf16.mxu0 0
      %820 = vmatpush2.bf16.msra.mxu0 0
      %821 = vmatprep.subr.bf16.mxu0 0
      %822 = vmatpush2.bf16.msra.mxu0 0
      %823 = vmatprep.subr.bf16.mxu0 0
      %824 = vmatpush2.bf16.msra.mxu0 0
      %825 = vmatprep.subr.bf16.mxu0 0
      %826 = vmatpush2.bf16.msra.mxu0 0
      %827 = vmatprep.subr.bf16.mxu0 0
      %828 = vmatpush2.bf16.msra.mxu0 0
      %829 = vmatprep.mubr.bf16.mxu0 0
      %830 = vmatmul.mubr.bf16.gmra.mxu0 %v606
      %v831 = vpop.f32.mrf.mxu0
      %v832 = vadd.f32 0.0, %v831
      %v833 = vpop.f32.mrf.mxu0
      %v834 = vpop.f32.mrf.mxu0
      %v835 = vadd.f32 0.0, %v834
      %v836 = vpop.f32.mrf.mxu0
      %837 = vmatprep.mubr.bf16.mxu0 0
      %838 = vmatmul.mubr.bf16.gmra.mxu0 %v609
      %v839 = vpop.f32.mrf.mxu0
      %v840 = vadd.f32 0.0, %v839
      %v841 = vpop.f32.mrf.mxu0
      %v842 = vpop.f32.mrf.mxu0
      %v843 = vadd.f32 0.0, %v842
      %v844 = vpop.f32.mrf.mxu0
      %845 = vmatprep.mubr.bf16.mxu0 0
      %846 = vmatmul.mubr.bf16.gmra.mxu0 %v612
      %v847 = vpop.f32.mrf.mxu0
      %v848 = vadd.f32 0.0, %v847
      %v849 = vpop.f32.mrf.mxu0
      %v850 = vpop.f32.mrf.mxu0
      %v851 = vadd.f32 0.0, %v850
      %v852 = vpop.f32.mrf.mxu0
      %853 = vmatprep.mubr.bf16.mxu0 0
      %854 = vmatmul.mubr.bf16.gmra.mxu0 %v615
      %v855 = vpop.f32.mrf.mxu0
      %v856 = vadd.f32 0.0, %v855
      %v857 = vpop.f32.mrf.mxu0
      %v858 = vpop.f32.mrf.mxu0
      %v859 = vadd.f32 0.0, %v858
      %v860 = vpop.f32.mrf.mxu0
      %861 = vmatprep.mubr.bf16.mxu0 0
      %862 = vmatmul.mubr.bf16.gmra.mxu0 %v618
      %v863 = vpop.f32.mrf.mxu0
      %v864 = vadd.f32 0.0, %v863
      %v865 = vpop.f32.mrf.mxu0
      %v866 = vpop.f32.mrf.mxu0
      %v867 = vadd.f32 0.0, %v866
      %v868 = vpop.f32.mrf.mxu0
      %869 = vmatprep.mubr.bf16.mxu0 0
      %870 = vmatmul.mubr.bf16.gmra.mxu0 %v621
      %v871 = vpop.f32.mrf.mxu0
      %v872 = vadd.f32 0.0, %v871
      %v873 = vpop.f32.mrf.mxu0
      %v874 = vpop.f32.mrf.mxu0
      %v875 = vadd.f32 0.0, %v874
      %v876 = vpop.f32.mrf.mxu0
      %877 = vmatprep.mubr.bf16.mxu0 0
      %878 = vmatmul.mubr.bf16.gmra.mxu0 %v624
      %v879 = vpop.f32.mrf.mxu0
      %v880 = vadd.f32 0.0, %v879
      %v881 = vpop.f32.mrf.mxu0
      %v882 = vpop.f32.mrf.mxu0
      %v883 = vadd.f32 0.0, %v882
      %v884 = vpop.f32.mrf.mxu0
      %885 = vmatprep.mubr.bf16.mxu0 0
      %886 = vmatmul.mubr.bf16.gmra.mxu0 %v627
      %v887 = vpop.f32.mrf.mxu0
      %v888 = vadd.f32 0.0, %v887
      %v889 = vpop.f32.mrf.mxu0
      %v890 = vpop.f32.mrf.mxu0
      %v891 = vadd.f32 0.0, %v890
      %v892 = vpop.f32.mrf.mxu0
      %893 = vmatprep.mubr.bf16.mxu0 0
      %894 = vmatmul.mubr.bf16.gmra.mxu0 %v630
      %v895 = vpop.f32.mrf.mxu0
      %v896 = vadd.f32 0.0, %v895
      %v897 = vpop.f32.mrf.mxu0
      %v898 = vpop.f32.mrf.mxu0
      %v899 = vadd.f32 0.0, %v898
      %v900 = vpop.f32.mrf.mxu0
      %901 = vmatprep.mubr.bf16.mxu0 0
      %902 = vmatmul.mubr.bf16.gmra.mxu0 %v633
      %v903 = vpop.f32.mrf.mxu0
      %v904 = vadd.f32 0.0, %v903
      %v905 = vpop.f32.mrf.mxu0
      %v906 = vpop.f32.mrf.mxu0
      %v907 = vadd.f32 0.0, %v906
      %v908 = vpop.f32.mrf.mxu0
      %909 = vmatprep.mubr.bf16.mxu0 0
      %910 = vmatmul.mubr.bf16.gmra.mxu0 %v636
      %v911 = vpop.f32.mrf.mxu0
      %v912 = vadd.f32 0.0, %v911
      %v913 = vpop.f32.mrf.mxu0
      %v914 = vpop.f32.mrf.mxu0
      %v915 = vadd.f32 0.0, %v914
      %v916 = vpop.f32.mrf.mxu0
      %917 = vmatprep.mubr.bf16.mxu0 0
      %918 = vmatmul.mubr.bf16.gmra.mxu0 %v639
      %v919 = vpop.f32.mrf.mxu0
      %v920 = vadd.f32 0.0, %v919
      %v921 = vpop.f32.mrf.mxu0
      %v922 = vpop.f32.mrf.mxu0
      %v923 = vadd.f32 0.0, %v922
      %v924 = vpop.f32.mrf.mxu0
      %925 = vmatprep.mubr.bf16.mxu0 0
      %926 = vmatmul.mubr.bf16.gmra.mxu0 %v642
      %v927 = vpop.f32.mrf.mxu0
      %v928 = vadd.f32 0.0, %v927
      %v929 = vpop.f32.mrf.mxu0
      %v930 = vpop.f32.mrf.mxu0
      %v931 = vadd.f32 0.0, %v930
      %v932 = vpop.f32.mrf.mxu0
      %933 = vmatprep.mubr.bf16.mxu0 0
      %934 = vmatmul.mubr.bf16.gmra.mxu0 %v645
      %v935 = vpop.f32.mrf.mxu0
      %v936 = vadd.f32 0.0, %v935
      %v937 = vpop.f32.mrf.mxu0
      %v938 = vpop.f32.mrf.mxu0
      %v939 = vadd.f32 0.0, %v938
      %v940 = vpop.f32.mrf.mxu0
      %941 = vmatprep.mubr.bf16.mxu0 0
      %942 = vmatmul.mubr.bf16.gmra.mxu0 %v648
      %v943 = vpop.f32.mrf.mxu0
      %v944 = vadd.f32 0.0, %v943
      %v945 = vpop.f32.mrf.mxu0
      %v946 = vpop.f32.mrf.mxu0
      %v947 = vadd.f32 0.0, %v946
      %v948 = vpop.f32.mrf.mxu0
      %949 = vmatprep.mubr.bf16.mxu0 0
      %950 = vmatmul.mubr.bf16.gmra.mxu0 %v651
      %v951 = vpop.f32.mrf.mxu0
      %v952 = vadd.f32 0.0, %v951
      %v953 = vpop.f32.mrf.mxu0
      %v954 = vpop.f32.mrf.mxu0
      %v955 = vadd.f32 0.0, %v954
      %v956 = vpop.f32.mrf.mxu0
      %957 = vmatprep.mubr.bf16.mxu0 0
      %958 = vmatmul.mubr.bf16.gmra.mxu0 %v654
      %v959 = vpop.f32.mrf.mxu0
      %v960 = vadd.f32 0.0, %v959
      %v961 = vpop.f32.mrf.mxu0
      %v962 = vpop.f32.mrf.mxu0
      %v963 = vadd.f32 0.0, %v962
      %v964 = vpop.f32.mrf.mxu0
      %965 = vmatprep.mubr.bf16.mxu0 0
      %966 = vmatmul.mubr.bf16.gmra.mxu0 %v657
      %v967 = vpop.f32.mrf.mxu0
      %v968 = vadd.f32 0.0, %v967
      %v969 = vpop.f32.mrf.mxu0
      %v970 = vpop.f32.mrf.mxu0
      %v971 = vadd.f32 0.0, %v970
      %v972 = vpop.f32.mrf.mxu0
      %973 = vmatprep.mubr.bf16.mxu0 0
      %974 = vmatmul.mubr.bf16.gmra.mxu0 %v660
      %v975 = vpop.f32.mrf.mxu0
      %v976 = vadd.f32 0.0, %v975
      %v977 = vpop.f32.mrf.mxu0
      %v978 = vpop.f32.mrf.mxu0
      %v979 = vadd.f32 0.0, %v978
      %v980 = vpop.f32.mrf.mxu0
      %981 = vmatprep.mubr.bf16.mxu0 0
      %982 = vmatmul.mubr.bf16.gmra.mxu0 %v663
      %v983 = vpop.f32.mrf.mxu0
      %v984 = vadd.f32 0.0, %v983
      %v985 = vpop.f32.mrf.mxu0
      %v986 = vpop.f32.mrf.mxu0
      %v987 = vadd.f32 0.0, %v986
      %v988 = vpop.f32.mrf.mxu0
      %989 = vmatprep.mubr.bf16.mxu0 0
      %990 = vmatmul.mubr.bf16.gmra.mxu0 %v666
      %v991 = vpop.f32.mrf.mxu0
      %v992 = vadd.f32 0.0, %v991
      %v993 = vpop.f32.mrf.mxu0
      %v994 = vpop.f32.mrf.mxu0
      %v995 = vadd.f32 0.0, %v994
      %v996 = vpop.f32.mrf.mxu0
      %997 = vmatprep.mubr.bf16.mxu0 0
      %998 = vmatmul.mubr.bf16.gmra.mxu0 %v669
      %v999 = vpop.f32.mrf.mxu0
      %v1000 = vadd.f32 0.0, %v999
      %v1001 = vpop.f32.mrf.mxu0
      %v1002 = vpop.f32.mrf.mxu0
      %v1003 = vadd.f32 0.0, %v1002
      %v1004 = vpop.f32.mrf.mxu0
      %1005 = vmatprep.mubr.bf16.mxu0 0
      %1006 = vmatmul.mubr.bf16.gmra.mxu0 %v672
      %v1007 = vpop.f32.mrf.mxu0
      %v1008 = vadd.f32 0.0, %v1007
      %v1009 = vpop.f32.mrf.mxu0
      %v1010 = vpop.f32.mrf.mxu0
      %v1011 = vadd.f32 0.0, %v1010
      %v1012 = vpop.f32.mrf.mxu0
      %1013 = vmatprep.mubr.bf16.mxu0 0
      %1014 = vmatmul.mubr.bf16.gmra.mxu0 %v675
      %v1015 = vpop.f32.mrf.mxu0
      %v1016 = vadd.f32 0.0, %v1015
      %v1017 = vpop.f32.mrf.mxu0
      %v1018 = vpop.f32.mrf.mxu0
      %v1019 = vadd.f32 0.0, %v1018
      %v1020 = vpop.f32.mrf.mxu0
      %1021 = vmatprep.mubr.bf16.mxu0 0
      %1022 = vmatmul.mubr.bf16.gmra.mxu0 %v678
      %v1023 = vpop.f32.mrf.mxu0
      %v1024 = vadd.f32 0.0, %v1023
      %v1025 = vpop.f32.mrf.mxu0
      %v1026 = vpop.f32.mrf.mxu0
      %v1027 = vadd.f32 0.0, %v1026
      %v1028 = vpop.f32.mrf.mxu0
      %1029 = vmatprep.mubr.bf16.mxu0 0
      %1030 = vmatmul.mubr.bf16.gmra.mxu0 %v681
      %v1031 = vpop.f32.mrf.mxu0
      %v1032 = vadd.f32 0.0, %v1031
      %v1033 = vpop.f32.mrf.mxu0
      %v1034 = vpop.f32.mrf.mxu0
      %v1035 = vadd.f32 0.0, %v1034
      %v1036 = vpop.f32.mrf.mxu0
      %1037 = vmatprep.mubr.bf16.mxu0 0
      %1038 = vmatmul.mubr.bf16.gmra.mxu0 %v684
      %v1039 = vpop.f32.mrf.mxu0
      %v1040 = vadd.f32 0.0, %v1039
      %v1041 = vpop.f32.mrf.mxu0
      %v1042 = vpop.f32.mrf.mxu0
      %v1043 = vadd.f32 0.0, %v1042
      %v1044 = vpop.f32.mrf.mxu0
      %1045 = vmatprep.mubr.bf16.mxu0 0
      %1046 = vmatmul.mubr.bf16.gmra.mxu0 %v687
      %v1047 = vpop.f32.mrf.mxu0
      %v1048 = vadd.f32 0.0, %v1047
      %v1049 = vpop.f32.mrf.mxu0
      %v1050 = vpop.f32.mrf.mxu0
      %v1051 = vadd.f32 0.0, %v1050
      %v1052 = vpop.f32.mrf.mxu0
      %1053 = vmatprep.mubr.bf16.mxu0 0
      %1054 = vmatmul.mubr.bf16.gmra.mxu0 %v690
      %v1055 = vpop.f32.mrf.mxu0
      %v1056 = vadd.f32 0.0, %v1055
      %v1057 = vpop.f32.mrf.mxu0
      %v1058 = vpop.f32.mrf.mxu0
      %v1059 = vadd.f32 0.0, %v1058
      %v1060 = vpop.f32.mrf.mxu0
      %1061 = vmatprep.mubr.bf16.mxu0 0
      %1062 = vmatmul.mubr.bf16.gmra.mxu0 %v693
      %v1063 = vpop.f32.mrf.mxu0
      %v1064 = vadd.f32 0.0, %v1063
      %v1065 = vpop.f32.mrf.mxu0
      %v1066 = vpop.f32.mrf.mxu0
      %v1067 = vadd.f32 0.0, %v1066
      %v1068 = vpop.f32.mrf.mxu0
      %1069 = vmatprep.mubr.bf16.mxu0 0
      %1070 = vmatmul.mubr.bf16.gmra.mxu0 %v696
      %v1071 = vpop.f32.mrf.mxu0
      %v1072 = vadd.f32 0.0, %v1071
      %v1073 = vpop.f32.mrf.mxu0
      %v1074 = vpop.f32.mrf.mxu0
      %v1075 = vadd.f32 0.0, %v1074
      %v1076 = vpop.f32.mrf.mxu0
      %1077 = vmatprep.mubr.bf16.mxu0 0
      %1078 = vmatmul.mubr.bf16.gmra.mxu0 %v699
      %v1079 = vpop.f32.mrf.mxu0
      %v1080 = vadd.f32 0.0, %v1079
      %v1081 = vpop.f32.mrf.mxu0
      %v1082 = vpop.f32.mrf.mxu0
      %v1083 = vadd.f32 0.0, %v1082
      %v1084 = vpop.f32.mrf.mxu0
      %1085 = vmatprep.mubr.bf16.mxu0 0
      %1086 = vmatmul.mubr.bf16.gmra.mxu0 %v702
      %v1087 = vpop.f32.mrf.mxu0
      %v1088 = vadd.f32 0.0, %v1087
      %v1089 = vpop.f32.mrf.mxu0
      %v1090 = vpop.f32.mrf.mxu0
      %v1091 = vadd.f32 0.0, %v1090
      %v1092 = vpop.f32.mrf.mxu0
      %1093 = vmatprep.mubr.bf16.mxu0 0
      %1094 = vmatmul.mubr.bf16.gmra.mxu0 %v705
      %v1095 = vpop.f32.mrf.mxu0
      %v1096 = vadd.f32 0.0, %v1095
      %v1097 = vpop.f32.mrf.mxu0
      %v1098 = vpop.f32.mrf.mxu0
      %v1099 = vadd.f32 0.0, %v1098
      %v1100 = vpop.f32.mrf.mxu0
      %1101 = vmatprep.mubr.bf16.mxu0 0
      %1102 = vmatmul.mubr.bf16.gmra.mxu0 %v708
      %v1103 = vpop.f32.mrf.mxu0
      %v1104 = vadd.f32 0.0, %v1103
      %v1105 = vpop.f32.mrf.mxu0
      %v1106 = vpop.f32.mrf.mxu0
      %v1107 = vadd.f32 0.0, %v1106
      %v1108 = vpop.f32.mrf.mxu0
      %1109 = vmatprep.mubr.bf16.mxu0 0
      %1110 = vmatmul.mubr.bf16.gmra.mxu0 %v711
      %v1111 = vpop.f32.mrf.mxu0
      %v1112 = vadd.f32 0.0, %v1111
      %v1113 = vpop.f32.mrf.mxu0
      %v1114 = vpop.f32.mrf.mxu0
      %v1115 = vadd.f32 0.0, %v1114
      %v1116 = vpop.f32.mrf.mxu0
      %1117 = vmatprep.mubr.bf16.mxu0 0
      %1118 = vmatmul.mubr.bf16.gmra.mxu0 %v714
      %v1119 = vpop.f32.mrf.mxu0
      %v1120 = vadd.f32 0.0, %v1119
      %v1121 = vpop.f32.mrf.mxu0
      %v1122 = vpop.f32.mrf.mxu0
      %v1123 = vadd.f32 0.0, %v1122
      %v1124 = vpop.f32.mrf.mxu0
      %1125 = vmatprep.mubr.bf16.mxu0 0
      %1126 = vmatmul.mubr.bf16.gmra.mxu0 %v717
      %v1127 = vpop.f32.mrf.mxu0
      %v1128 = vadd.f32 0.0, %v1127
      %v1129 = vpop.f32.mrf.mxu0
      %v1130 = vpop.f32.mrf.mxu0
      %v1131 = vadd.f32 0.0, %v1130
      %v1132 = vpop.f32.mrf.mxu0
      %1133 = vmatprep.mubr.bf16.mxu0 0
      %1134 = vmatmul.mubr.bf16.gmra.mxu0 %v720
      %v1135 = vpop.f32.mrf.mxu0
      %v1136 = vadd.f32 0.0, %v1135
      %v1137 = vpop.f32.mrf.mxu0
      %v1138 = vpop.f32.mrf.mxu0
      %v1139 = vadd.f32 0.0, %v1138
      %v1140 = vpop.f32.mrf.mxu0
      %1141 = vmatprep.mubr.bf16.mxu0 0
      %1142 = vmatmul.mubr.bf16.gmra.mxu0 %v723
      %v1143 = vpop.f32.mrf.mxu0
      %v1144 = vadd.f32 0.0, %v1143
      %v1145 = vpop.f32.mrf.mxu0
      %v1146 = vpop.f32.mrf.mxu0
      %v1147 = vadd.f32 0.0, %v1146
      %v1148 = vpop.f32.mrf.mxu0
      %1149 = vmatprep.mubr.bf16.mxu0 0
      %1150 = vmatmul.mubr.bf16.gmra.mxu0 %v726
      %v1151 = vpop.f32.mrf.mxu0
      %v1152 = vadd.f32 0.0, %v1151
      %v1153 = vpop.f32.mrf.mxu0
      %v1154 = vpop.f32.mrf.mxu0
      %v1155 = vadd.f32 0.0, %v1154
      %v1156 = vpop.f32.mrf.mxu0
      %1157 = vmatprep.mubr.bf16.mxu0 0
      %1158 = vmatmul.mubr.bf16.gmra.mxu0 %v729
      %v1159 = vpop.f32.mrf.mxu0
      %v1160 = vadd.f32 0.0, %v1159
      %v1161 = vpop.f32.mrf.mxu0
      %v1162 = vpop.f32.mrf.mxu0
      %v1163 = vadd.f32 0.0, %v1162
      %v1164 = vpop.f32.mrf.mxu0
      %1165 = vmatprep.mubr.bf16.mxu0 0
      %1166 = vmatmul.mubr.bf16.gmra.mxu0 %v732
      %v1167 = vpop.f32.mrf.mxu0
      %v1168 = vadd.f32 0.0, %v1167
      %v1169 = vpop.f32.mrf.mxu0
      %v1170 = vpop.f32.mrf.mxu0
      %v1171 = vadd.f32 0.0, %v1170
      %v1172 = vpop.f32.mrf.mxu0
      %1173 = vmatprep.mubr.bf16.mxu0 0
      %1174 = vmatmul.mubr.bf16.gmra.mxu0 %v735
      %v1175 = vpop.f32.mrf.mxu0
      %v1176 = vadd.f32 0.0, %v1175
      %v1177 = vpop.f32.mrf.mxu0
      %v1178 = vpop.f32.mrf.mxu0
      %v1179 = vadd.f32 0.0, %v1178
      %v1180 = vpop.f32.mrf.mxu0
      %1181 = vmatprep.mubr.bf16.mxu0 0
      %1182 = vmatmul.mubr.bf16.gmra.mxu0 %v738
      %v1183 = vpop.f32.mrf.mxu0
      %v1184 = vadd.f32 0.0, %v1183
      %v1185 = vpop.f32.mrf.mxu0
      %v1186 = vpop.f32.mrf.mxu0
      %v1187 = vadd.f32 0.0, %v1186
      %v1188 = vpop.f32.mrf.mxu0
      %1189 = vmatprep.mubr.bf16.mxu0 0
      %1190 = vmatmul.mubr.bf16.gmra.mxu0 %v741
      %v1191 = vpop.f32.mrf.mxu0
      %v1192 = vadd.f32 0.0, %v1191
      %v1193 = vpop.f32.mrf.mxu0
      %v1194 = vpop.f32.mrf.mxu0
      %v1195 = vadd.f32 0.0, %v1194
      %v1196 = vpop.f32.mrf.mxu0
      %1197 = vmatprep.mubr.bf16.mxu0 0
      %1198 = vmatmul.mubr.bf16.gmra.mxu0 %v744
      %v1199 = vpop.f32.mrf.mxu0
      %v1200 = vadd.f32 0.0, %v1199
      %v1201 = vpop.f32.mrf.mxu0
      %v1202 = vpop.f32.mrf.mxu0
      %v1203 = vadd.f32 0.0, %v1202
      %v1204 = vpop.f32.mrf.mxu0
      %1205 = vmatprep.mubr.bf16.mxu0 0
      %1206 = vmatmul.mubr.bf16.gmra.mxu0 %v747
      %v1207 = vpop.f32.mrf.mxu0
      %v1208 = vadd.f32 0.0, %v1207
      %v1209 = vpop.f32.mrf.mxu0
      %v1210 = vpop.f32.mrf.mxu0
      %v1211 = vadd.f32 0.0, %v1210
      %v1212 = vpop.f32.mrf.mxu0
      %1213 = vmatprep.mubr.bf16.mxu0 0
      %1214 = vmatmul.mubr.bf16.gmra.mxu0 %v750
      %v1215 = vpop.f32.mrf.mxu0
      %v1216 = vadd.f32 0.0, %v1215
      %v1217 = vpop.f32.mrf.mxu0
      %v1218 = vpop.f32.mrf.mxu0
      %v1219 = vadd.f32 0.0, %v1218
      %v1220 = vpop.f32.mrf.mxu0
      %1221 = vmatprep.mubr.bf16.mxu0 0
      %1222 = vmatmul.mubr.bf16.gmra.mxu0 %v753
      %v1223 = vpop.f32.mrf.mxu0
      %v1224 = vadd.f32 0.0, %v1223
      %v1225 = vpop.f32.mrf.mxu0
      %v1226 = vpop.f32.mrf.mxu0
      %v1227 = vadd.f32 0.0, %v1226
      %v1228 = vpop.f32.mrf.mxu0
      %1229 = vmatprep.mubr.bf16.mxu0 0
      %1230 = vmatmul.mubr.bf16.gmra.mxu0 %v756
      %v1231 = vpop.f32.mrf.mxu0
      %v1232 = vadd.f32 0.0, %v1231
      %v1233 = vpop.f32.mrf.mxu0
      %v1234 = vpop.f32.mrf.mxu0
      %v1235 = vadd.f32 0.0, %v1234
      %v1236 = vpop.f32.mrf.mxu0
      %1237 = vmatprep.mubr.bf16.mxu0 0
      %1238 = vmatmul.mubr.bf16.gmra.mxu0 %v759
      %v1239 = vpop.f32.mrf.mxu0
      %v1240 = vadd.f32 0.0, %v1239
      %v1241 = vpop.f32.mrf.mxu0
      %v1242 = vpop.f32.mrf.mxu0
      %v1243 = vadd.f32 0.0, %v1242
      %v1244 = vpop.f32.mrf.mxu0
      %1245 = vmatprep.mubr.bf16.mxu0 0
      %1246 = vmatmul.mubr.bf16.gmra.mxu0 %v762
      %v1247 = vpop.f32.mrf.mxu0
      %v1248 = vadd.f32 0.0, %v1247
      %v1249 = vpop.f32.mrf.mxu0
      %v1250 = vpop.f32.mrf.mxu0
      %v1251 = vadd.f32 0.0, %v1250
      %v1252 = vpop.f32.mrf.mxu0
      %1253 = vmatprep.mubr.bf16.mxu0 0
      %1254 = vmatmul.mubr.bf16.gmra.mxu0 %v765
      %v1255 = vpop.f32.mrf.mxu0
      %v1256 = vadd.f32 0.0, %v1255
      %v1257 = vpop.f32.mrf.mxu0
      %v1258 = vpop.f32.mrf.mxu0
      %v1259 = vadd.f32 0.0, %v1258
      %v1260 = vpop.f32.mrf.mxu0
      %1261 = vmatprep.mubr.bf16.mxu0 0
      %1262 = vmatmul.mubr.bf16.gmra.mxu0 %v768
      %v1263 = vpop.f32.mrf.mxu0
      %v1264 = vadd.f32 0.0, %v1263
      %v1265 = vpop.f32.mrf.mxu0
      %v1266 = vpop.f32.mrf.mxu0
      %v1267 = vadd.f32 0.0, %v1266
      %v1268 = vpop.f32.mrf.mxu0
      %1269 = vmatprep.mubr.bf16.mxu0 0
      %1270 = vmatmul.mubr.bf16.gmra.mxu0 %v771
      %v1271 = vpop.f32.mrf.mxu0
      %v1272 = vadd.f32 0.0, %v1271
      %v1273 = vpop.f32.mrf.mxu0
      %v1274 = vpop.f32.mrf.mxu0
      %v1275 = vadd.f32 0.0, %v1274
      %v1276 = vpop.f32.mrf.mxu0
      %1277 = vmatprep.mubr.bf16.mxu0 0
      %1278 = vmatmul.mubr.bf16.gmra.mxu0 %v774
      %v1279 = vpop.f32.mrf.mxu0
      %v1280 = vadd.f32 0.0, %v1279
      %v1281 = vpop.f32.mrf.mxu0
      %v1282 = vpop.f32.mrf.mxu0
      %v1283 = vadd.f32 0.0, %v1282
      %v1284 = vpop.f32.mrf.mxu0
      %1285 = vmatprep.mubr.bf16.mxu0 0
      %1286 = vmatmul.mubr.bf16.gmra.mxu0 %v777
      %v1287 = vpop.f32.mrf.mxu0
      %v1288 = vadd.f32 0.0, %v1287
      %v1289 = vpop.f32.mrf.mxu0
      %v1290 = vpop.f32.mrf.mxu0
      %v1291 = vadd.f32 0.0, %v1290
      %v1292 = vpop.f32.mrf.mxu0
      %1293 = vmatprep.mubr.bf16.mxu0 0
      %1294 = vmatmul.mubr.bf16.gmra.mxu0 %v780
      %v1295 = vpop.f32.mrf.mxu0
      %v1296 = vadd.f32 0.0, %v1295
      %v1297 = vpop.f32.mrf.mxu0
      %v1298 = vpop.f32.mrf.mxu0
      %v1299 = vadd.f32 0.0, %v1298
      %v1300 = vpop.f32.mrf.mxu0
      %1301 = vmatprep.mubr.bf16.mxu0 0
      %1302 = vmatmul.mubr.bf16.gmra.mxu0 %v783
      %v1303 = vpop.f32.mrf.mxu0
      %v1304 = vadd.f32 0.0, %v1303
      %v1305 = vpop.f32.mrf.mxu0
      %v1306 = vpop.f32.mrf.mxu0
      %v1307 = vadd.f32 0.0, %v1306
      %v1308 = vpop.f32.mrf.mxu0
      %1309 = vmatprep.mubr.bf16.mxu0 0
      %1310 = vmatmul.mubr.bf16.gmra.mxu0 %v786
      %v1311 = vpop.f32.mrf.mxu0
      %v1312 = vadd.f32 0.0, %v1311
      %v1313 = vpop.f32.mrf.mxu0
      %v1314 = vpop.f32.mrf.mxu0
      %v1315 = vadd.f32 0.0, %v1314
      %v1316 = vpop.f32.mrf.mxu0
      %1317 = vmatprep.mubr.bf16.mxu0 0
      %1318 = vmatmul.mubr.bf16.gmra.mxu0 %v789
      %v1319 = vpop.f32.mrf.mxu0
      %v1320 = vadd.f32 0.0, %v1319
      %v1321 = vpop.f32.mrf.mxu0
      %v1322 = vpop.f32.mrf.mxu0
      %v1323 = vadd.f32 0.0, %v1322
      %v1324 = vpop.f32.mrf.mxu0
      %1325 = vmatprep.mubr.bf16.mxu0 0
      %1326 = vmatmul.mubr.bf16.gmra.mxu0 %v792
      %v1327 = vpop.f32.mrf.mxu0
      %v1328 = vadd.f32 0.0, %v1327
      %v1329 = vpop.f32.mrf.mxu0
      %v1330 = vpop.f32.mrf.mxu0
      %v1331 = vadd.f32 0.0, %v1330
      %v1332 = vpop.f32.mrf.mxu0
      %1333 = vmatprep.mubr.bf16.mxu0 0
      %1334 = vmatmul.mubr.bf16.gmra.mxu0 %v795
      %v1335 = vpop.f32.mrf.mxu0
      %v1336 = vadd.f32 0.0, %v1335
      %v1337 = vpop.f32.mrf.mxu0
      %v1338 = vpop.f32.mrf.mxu0
      %v1339 = vadd.f32 0.0, %v1338
      %v1340 = vpop.f32.mrf.mxu0
      %1341 = vdwg.mxu0
      %vm1342 = vcmp.gt.f32.partialorder %v832, 0.0
      %vm1343 = vcmp.gt.f32.partialorder %v835, 0.0
      %vm1344 = vcmp.gt.f32.partialorder %v840, 0.0
      %vm1345 = vcmp.gt.f32.partialorder %v843, 0.0
      %vm1346 = vcmp.gt.f32.partialorder %v848, 0.0
      %vm1347 = vcmp.gt.f32.partialorder %v851, 0.0
      %vm1348 = vcmp.gt.f32.partialorder %v856, 0.0
      %vm1349 = vcmp.gt.f32.partialorder %v859, 0.0
      %vm1350 = vcmp.gt.f32.partialorder %v864, 0.0
      %vm1351 = vcmp.gt.f32.partialorder %v867, 0.0
      %vm1352 = vcmp.gt.f32.partialorder %v872, 0.0
      %vm1353 = vcmp.gt.f32.partialorder %v875, 0.0
      %vm1354 = vcmp.gt.f32.partialorder %v880, 0.0
      %vm1355 = vcmp.gt.f32.partialorder %v883, 0.0
      %vm1356 = vcmp.gt.f32.partialorder %v888, 0.0
      %vm1357 = vcmp.gt.f32.partialorder %v891, 0.0
      %vm1358 = vcmp.gt.f32.partialorder %v896, 0.0
      %vm1359 = vcmp.gt.f32.partialorder %v899, 0.0
      %vm1360 = vcmp.gt.f32.partialorder %v904, 0.0
      %vm1361 = vcmp.gt.f32.partialorder %v907, 0.0
      %vm1362 = vcmp.gt.f32.partialorder %v912, 0.0
      %vm1363 = vcmp.gt.f32.partialorder %v915, 0.0
      %vm1364 = vcmp.gt.f32.partialorder %v920, 0.0
      %vm1365 = vcmp.gt.f32.partialorder %v923, 0.0
      %vm1366 = vcmp.gt.f32.partialorder %v928, 0.0
      %vm1367 = vcmp.gt.f32.partialorder %v931, 0.0
      %vm1368 = vcmp.gt.f32.partialorder %v936, 0.0
      %vm1369 = vcmp.gt.f32.partialorder %v939, 0.0
      %vm1370 = vcmp.gt.f32.partialorder %v944, 0.0
      %vm1371 = vcmp.gt.f32.partialorder %v947, 0.0
      %vm1372 = vcmp.gt.f32.partialorder %v952, 0.0
      %vm1373 = vcmp.gt.f32.partialorder %v955, 0.0
      %vm1374 = vcmp.gt.f32.partialorder %v960, 0.0
      %vm1375 = vcmp.gt.f32.partialorder %v963, 0.0
      %vm1376 = vcmp.gt.f32.partialorder %v968, 0.0
      %vm1377 = vcmp.gt.f32.partialorder %v971, 0.0
      %vm1378 = vcmp.gt.f32.partialorder %v976, 0.0
      %vm1379 = vcmp.gt.f32.partialorder %v979, 0.0
      %vm1380 = vcmp.gt.f32.partialorder %v984, 0.0
      %vm1381 = vcmp.gt.f32.partialorder %v987, 0.0
      %vm1382 = vcmp.gt.f32.partialorder %v992, 0.0
      %vm1383 = vcmp.gt.f32.partialorder %v995, 0.0
      %vm1384 = vcmp.gt.f32.partialorder %v1000, 0.0
      %vm1385 = vcmp.gt.f32.partialorder %v1003, 0.0
      %vm1386 = vcmp.gt.f32.partialorder %v1008, 0.0
      %vm1387 = vcmp.gt.f32.partialorder %v1011, 0.0
      %vm1388 = vcmp.gt.f32.partialorder %v1016, 0.0
      %vm1389 = vcmp.gt.f32.partialorder %v1019, 0.0
      %vm1390 = vcmp.gt.f32.partialorder %v1024, 0.0
      %vm1391 = vcmp.gt.f32.partialorder %v1027, 0.0
      %vm1392 = vcmp.gt.f32.partialorder %v1032, 0.0
      %vm1393 = vcmp.gt.f32.partialorder %v1035, 0.0
      %vm1394 = vcmp.gt.f32.partialorder %v1040, 0.0
      %vm1395 = vcmp.gt.f32.partialorder %v1043, 0.0
      %vm1396 = vcmp.gt.f32.partialorder %v1048, 0.0
      %vm1397 = vcmp.gt.f32.partialorder %v1051, 0.0
      %vm1398 = vcmp.gt.f32.partialorder %v1056, 0.0
      %vm1399 = vcmp.gt.f32.partialorder %v1059, 0.0
      %vm1400 = vcmp.gt.f32.partialorder %v1064, 0.0
      %vm1401 = vcmp.gt.f32.partialorder %v1067, 0.0
      %vm1402 = vcmp.gt.f32.partialorder %v1072, 0.0
      %vm1403 = vcmp.gt.f32.partialorder %v1075, 0.0
      %vm1404 = vcmp.gt.f32.partialorder %v1080, 0.0
      %vm1405 = vcmp.gt.f32.partialorder %v1083, 0.0
      %vm1406 = vcmp.gt.f32.partialorder %v1088, 0.0
      %vm1407 = vcmp.gt.f32.partialorder %v1091, 0.0
      %vm1408 = vcmp.gt.f32.partialorder %v1096, 0.0
      %vm1409 = vcmp.gt.f32.partialorder %v1099, 0.0
      %vm1410 = vcmp.gt.f32.partialorder %v1104, 0.0
      %vm1411 = vcmp.gt.f32.partialorder %v1107, 0.0
      %vm1412 = vcmp.gt.f32.partialorder %v1112, 0.0
      %vm1413 = vcmp.gt.f32.partialorder %v1115, 0.0
      %vm1414 = vcmp.gt.f32.partialorder %v1120, 0.0
      %vm1415 = vcmp.gt.f32.partialorder %v1123, 0.0
      %vm1416 = vcmp.gt.f32.partialorder %v1128, 0.0
      %vm1417 = vcmp.gt.f32.partialorder %v1131, 0.0
      %vm1418 = vcmp.gt.f32.partialorder %v1136, 0.0
      %vm1419 = vcmp.gt.f32.partialorder %v1139, 0.0
      %vm1420 = vcmp.gt.f32.partialorder %v1144, 0.0
      %vm1421 = vcmp.gt.f32.partialorder %v1147, 0.0
      %vm1422 = vcmp.gt.f32.partialorder %v1152, 0.0
      %vm1423 = vcmp.gt.f32.partialorder %v1155, 0.0
      %vm1424 = vcmp.gt.f32.partialorder %v1160, 0.0
      %vm1425 = vcmp.gt.f32.partialorder %v1163, 0.0
      %vm1426 = vcmp.gt.f32.partialorder %v1168, 0.0
      %vm1427 = vcmp.gt.f32.partialorder %v1171, 0.0
      %vm1428 = vcmp.gt.f32.partialorder %v1176, 0.0
      %vm1429 = vcmp.gt.f32.partialorder %v1179, 0.0
      %vm1430 = vcmp.gt.f32.partialorder %v1184, 0.0
      %vm1431 = vcmp.gt.f32.partialorder %v1187, 0.0
      %vm1432 = vcmp.gt.f32.partialorder %v1192, 0.0
      %vm1433 = vcmp.gt.f32.partialorder %v1195, 0.0
      %vm1434 = vcmp.gt.f32.partialorder %v1200, 0.0
      %vm1435 = vcmp.gt.f32.partialorder %v1203, 0.0
      %vm1436 = vcmp.gt.f32.partialorder %v1208, 0.0
      %vm1437 = vcmp.gt.f32.partialorder %v1211, 0.0
      %vm1438 = vcmp.gt.f32.partialorder %v1216, 0.0
      %vm1439 = vcmp.gt.f32.partialorder %v1219, 0.0
      %vm1440 = vcmp.gt.f32.partialorder %v1224, 0.0
      %vm1441 = vcmp.gt.f32.partialorder %v1227, 0.0
      %vm1442 = vcmp.gt.f32.partialorder %v1232, 0.0
      %vm1443 = vcmp.gt.f32.partialorder %v1235, 0.0
      %vm1444 = vcmp.gt.f32.partialorder %v1240, 0.0
      %vm1445 = vcmp.gt.f32.partialorder %v1243, 0.0
      %vm1446 = vcmp.gt.f32.partialorder %v1248, 0.0
      %vm1447 = vcmp.gt.f32.partialorder %v1251, 0.0
      %vm1448 = vcmp.gt.f32.partialorder %v1256, 0.0
      %vm1449 = vcmp.gt.f32.partialorder %v1259, 0.0
      %vm1450 = vcmp.gt.f32.partialorder %v1264, 0.0
      %vm1451 = vcmp.gt.f32.partialorder %v1267, 0.0
      %vm1452 = vcmp.gt.f32.partialorder %v1272, 0.0
      %vm1453 = vcmp.gt.f32.partialorder %v1275, 0.0
      %vm1454 = vcmp.gt.f32.partialorder %v1280, 0.0
      %vm1455 = vcmp.gt.f32.partialorder %v1283, 0.0
      %vm1456 = vcmp.gt.f32.partialorder %v1288, 0.0
      %vm1457 = vcmp.gt.f32.partialorder %v1291, 0.0
      %vm1458 = vcmp.gt.f32.partialorder %v1296, 0.0
      %vm1459 = vcmp.gt.f32.partialorder %v1299, 0.0
      %vm1460 = vcmp.gt.f32.partialorder %v1304, 0.0
      %vm1461 = vcmp.gt.f32.partialorder %v1307, 0.0
      %vm1462 = vcmp.gt.f32.partialorder %v1312, 0.0
      %vm1463 = vcmp.gt.f32.partialorder %v1315, 0.0
      %vm1464 = vcmp.gt.f32.partialorder %v1320, 0.0
      %vm1465 = vcmp.gt.f32.partialorder %v1323, 0.0
      %vm1466 = vcmp.gt.f32.partialorder %v1328, 0.0
      %vm1467 = vcmp.gt.f32.partialorder %v1331, 0.0
      %vm1468 = vcmp.gt.f32.partialorder %v1336, 0.0
      %vm1469 = vcmp.gt.f32.partialorder %v1339, 0.0
      %v1470 = vmul.f32 %v832, 0.2
      %v1471 = vmul.f32 %v835, 0.2
      %v1472 = vmul.f32 %v840, 0.2
      %v1473 = vmul.f32 %v843, 0.2
      %v1474 = vmul.f32 %v848, 0.2
      %v1475 = vmul.f32 %v851, 0.2
      %v1476 = vmul.f32 %v856, 0.2
      %v1477 = vmul.f32 %v859, 0.2
      %v1478 = vmul.f32 %v864, 0.2
      %v1479 = vmul.f32 %v867, 0.2
      %v1480 = vmul.f32 %v872, 0.2
      %v1481 = vmul.f32 %v875, 0.2
      %v1482 = vmul.f32 %v880, 0.2
      %v1483 = vmul.f32 %v883, 0.2
      %v1484 = vmul.f32 %v888, 0.2
      %v1485 = vmul.f32 %v891, 0.2
      %v1486 = vmul.f32 %v896, 0.2
      %v1487 = vmul.f32 %v899, 0.2
      %v1488 = vmul.f32 %v904, 0.2
      %v1489 = vmul.f32 %v907, 0.2
      %v1490 = vmul.f32 %v912, 0.2
      %v1491 = vmul.f32 %v915, 0.2
      %v1492 = vmul.f32 %v920, 0.2
      %v1493 = vmul.f32 %v923, 0.2
      %v1494 = vmul.f32 %v928, 0.2
      %v1495 = vmul.f32 %v931, 0.2
      %v1496 = vmul.f32 %v936, 0.2
      %v1497 = vmul.f32 %v939, 0.2
      %v1498 = vmul.f32 %v944, 0.2
      %v1499 = vmul.f32 %v947, 0.2
      %v1500 = vmul.f32 %v952, 0.2
      %v1501 = vmul.f32 %v955, 0.2
      %v1502 = vmul.f32 %v960, 0.2
      %v1503 = vmul.f32 %v963, 0.2
      %v1504 = vmul.f32 %v968, 0.2
      %v1505 = vmul.f32 %v971, 0.2
      %v1506 = vmul.f32 %v976, 0.2
      %v1507 = vmul.f32 %v979, 0.2
      %v1508 = vmul.f32 %v984, 0.2
      %v1509 = vmul.f32 %v987, 0.2
      %v1510 = vmul.f32 %v992, 0.2
      %v1511 = vmul.f32 %v995, 0.2
      %v1512 = vmul.f32 %v1000, 0.2
      %v1513 = vmul.f32 %v1003, 0.2
      %v1514 = vmul.f32 %v1008, 0.2
      %v1515 = vmul.f32 %v1011, 0.2
      %v1516 = vmul.f32 %v1016, 0.2
      %v1517 = vmul.f32 %v1019, 0.2
      %v1518 = vmul.f32 %v1024, 0.2
      %v1519 = vmul.f32 %v1027, 0.2
      %v1520 = vmul.f32 %v1032, 0.2
      %v1521 = vmul.f32 %v1035, 0.2
      %v1522 = vmul.f32 %v1040, 0.2
      %v1523 = vmul.f32 %v1043, 0.2
      %v1524 = vmul.f32 %v1048, 0.2
      %v1525 = vmul.f32 %v1051, 0.2
      %v1526 = vmul.f32 %v1056, 0.2
      %v1527 = vmul.f32 %v1059, 0.2
      %v1528 = vmul.f32 %v1064, 0.2
      %v1529 = vmul.f32 %v1067, 0.2
      %v1530 = vmul.f32 %v1072, 0.2
      %v1531 = vmul.f32 %v1075, 0.2
      %v1532 = vmul.f32 %v1080, 0.2
      %v1533 = vmul.f32 %v1083, 0.2
      %v1534 = vmul.f32 %v1088, 0.2
      %v1535 = vmul.f32 %v1091, 0.2
      %v1536 = vmul.f32 %v1096, 0.2
      %v1537 = vmul.f32 %v1099, 0.2
      %v1538 = vmul.f32 %v1104, 0.2
      %v1539 = vmul.f32 %v1107, 0.2
      %v1540 = vmul.f32 %v1112, 0.2
      %v1541 = vmul.f32 %v1115, 0.2
      %v1542 = vmul.f32 %v1120, 0.2
      %v1543 = vmul.f32 %v1123, 0.2
      %v1544 = vmul.f32 %v1128, 0.2
      %v1545 = vmul.f32 %v1131, 0.2
      %v1546 = vmul.f32 %v1136, 0.2
      %v1547 = vmul.f32 %v1139, 0.2
      %v1548 = vmul.f32 %v1144, 0.2
      %v1549 = vmul.f32 %v1147, 0.2
      %v1550 = vmul.f32 %v1152, 0.2
      %v1551 = vmul.f32 %v1155, 0.2
      %v1552 = vmul.f32 %v1160, 0.2
      %v1553 = vmul.f32 %v1163, 0.2
      %v1554 = vmul.f32 %v1168, 0.2
      %v1555 = vmul.f32 %v1171, 0.2
      %v1556 = vmul.f32 %v1176, 0.2
      %v1557 = vmul.f32 %v1179, 0.2
      %v1558 = vmul.f32 %v1184, 0.2
      %v1559 = vmul.f32 %v1187, 0.2
      %v1560 = vmul.f32 %v1192, 0.2
      %v1561 = vmul.f32 %v1195, 0.2
      %v1562 = vmul.f32 %v1200, 0.2
      %v1563 = vmul.f32 %v1203, 0.2
      %v1564 = vmul.f32 %v1208, 0.2
      %v1565 = vmul.f32 %v1211, 0.2
      %v1566 = vmul.f32 %v1216, 0.2
      %v1567 = vmul.f32 %v1219, 0.2
      %v1568 = vmul.f32 %v1224, 0.2
      %v1569 = vmul.f32 %v1227, 0.2
      %v1570 = vmul.f32 %v1232, 0.2
      %v1571 = vmul.f32 %v1235, 0.2
      %v1572 = vmul.f32 %v1240, 0.2
      %v1573 = vmul.f32 %v1243, 0.2
      %v1574 = vmul.f32 %v1248, 0.2
      %v1575 = vmul.f32 %v1251, 0.2
      %v1576 = vmul.f32 %v1256, 0.2
      %v1577 = vmul.f32 %v1259, 0.2
      %v1578 = vmul.f32 %v1264, 0.2
      %v1579 = vmul.f32 %v1267, 0.2
      %v1580 = vmul.f32 %v1272, 0.2
      %v1581 = vmul.f32 %v1275, 0.2
      %v1582 = vmul.f32 %v1280, 0.2
      %v1583 = vmul.f32 %v1283, 0.2
      %v1584 = vmul.f32 %v1288, 0.2
      %v1585 = vmul.f32 %v1291, 0.2
      %v1586 = vmul.f32 %v1296, 0.2
      %v1587 = vmul.f32 %v1299, 0.2
      %v1588 = vmul.f32 %v1304, 0.2
      %v1589 = vmul.f32 %v1307, 0.2
      %v1590 = vmul.f32 %v1312, 0.2
      %v1591 = vmul.f32 %v1315, 0.2
      %v1592 = vmul.f32 %v1320, 0.2
      %v1593 = vmul.f32 %v1323, 0.2
      %v1594 = vmul.f32 %v1328, 0.2
      %v1595 = vmul.f32 %v1331, 0.2
      %v1596 = vmul.f32 %v1336, 0.2
      %v1597 = vmul.f32 %v1339, 0.2
      %v1598 = vsel %vm1342, %v832, %v1470
      %v1599 = vsel %vm1343, %v835, %v1471
      %v1600 = vsel %vm1344, %v840, %v1472
      %v1601 = vsel %vm1345, %v843, %v1473
      %v1602 = vsel %vm1346, %v848, %v1474
      %v1603 = vsel %vm1347, %v851, %v1475
      %v1604 = vsel %vm1348, %v856, %v1476
      %v1605 = vsel %vm1349, %v859, %v1477
      %v1606 = vsel %vm1350, %v864, %v1478
      %v1607 = vsel %vm1351, %v867, %v1479
      %v1608 = vsel %vm1352, %v872, %v1480
      %v1609 = vsel %vm1353, %v875, %v1481
      %v1610 = vsel %vm1354, %v880, %v1482
      %v1611 = vsel %vm1355, %v883, %v1483
      %v1612 = vsel %vm1356, %v888, %v1484
      %v1613 = vsel %vm1357, %v891, %v1485
      %v1614 = vsel %vm1358, %v896, %v1486
      %v1615 = vsel %vm1359, %v899, %v1487
      %v1616 = vsel %vm1360, %v904, %v1488
      %v1617 = vsel %vm1361, %v907, %v1489
      %v1618 = vsel %vm1362, %v912, %v1490
      %v1619 = vsel %vm1363, %v915, %v1491
      %v1620 = vsel %vm1364, %v920, %v1492
      %v1621 = vsel %vm1365, %v923, %v1493
      %v1622 = vsel %vm1366, %v928, %v1494
      %v1623 = vsel %vm1367, %v931, %v1495
      %v1624 = vsel %vm1368, %v936, %v1496
      %v1625 = vsel %vm1369, %v939, %v1497
      %v1626 = vsel %vm1370, %v944, %v1498
      %v1627 = vsel %vm1371, %v947, %v1499
      %v1628 = vsel %vm1372, %v952, %v1500
      %v1629 = vsel %vm1373, %v955, %v1501
      %v1630 = vsel %vm1374, %v960, %v1502
      %v1631 = vsel %vm1375, %v963, %v1503
      %v1632 = vsel %vm1376, %v968, %v1504
      %v1633 = vsel %vm1377, %v971, %v1505
      %v1634 = vsel %vm1378, %v976, %v1506
      %v1635 = vsel %vm1379, %v979, %v1507
      %v1636 = vsel %vm1380, %v984, %v1508
      %v1637 = vsel %vm1381, %v987, %v1509
      %v1638 = vsel %vm1382, %v992, %v1510
      %v1639 = vsel %vm1383, %v995, %v1511
      %v1640 = vsel %vm1384, %v1000, %v1512
      %v1641 = vsel %vm1385, %v1003, %v1513
      %v1642 = vsel %vm1386, %v1008, %v1514
      %v1643 = vsel %vm1387, %v1011, %v1515
      %v1644 = vsel %vm1388, %v1016, %v1516
      %v1645 = vsel %vm1389, %v1019, %v1517
      %v1646 = vsel %vm1390, %v1024, %v1518
      %v1647 = vsel %vm1391, %v1027, %v1519
      %v1648 = vsel %vm1392, %v1032, %v1520
      %v1649 = vsel %vm1393, %v1035, %v1521
      %v1650 = vsel %vm1394, %v1040, %v1522
      %v1651 = vsel %vm1395, %v1043, %v1523
      %v1652 = vsel %vm1396, %v1048, %v1524
      %v1653 = vsel %vm1397, %v1051, %v1525
      %v1654 = vsel %vm1398, %v1056, %v1526
      %v1655 = vsel %vm1399, %v1059, %v1527
      %v1656 = vsel %vm1400, %v1064, %v1528
      %v1657 = vsel %vm1401, %v1067, %v1529
      %v1658 = vsel %vm1402, %v1072, %v1530
      %v1659 = vsel %vm1403, %v1075, %v1531
      %v1660 = vsel %vm1404, %v1080, %v1532
      %v1661 = vsel %vm1405, %v1083, %v1533
      %v1662 = vsel %vm1406, %v1088, %v1534
      %v1663 = vsel %vm1407, %v1091, %v1535
      %v1664 = vsel %vm1408, %v1096, %v1536
      %v1665 = vsel %vm1409, %v1099, %v1537
      %v1666 = vsel %vm1410, %v1104, %v1538
      %v1667 = vsel %vm1411, %v1107, %v1539
      %v1668 = vsel %vm1412, %v1112, %v1540
      %v1669 = vsel %vm1413, %v1115, %v1541
      %v1670 = vsel %vm1414, %v1120, %v1542
      %v1671 = vsel %vm1415, %v1123, %v1543
      %v1672 = vsel %vm1416, %v1128, %v1544
      %v1673 = vsel %vm1417, %v1131, %v1545
      %v1674 = vsel %vm1418, %v1136, %v1546
      %v1675 = vsel %vm1419, %v1139, %v1547
      %v1676 = vsel %vm1420, %v1144, %v1548
      %v1677 = vsel %vm1421, %v1147, %v1549
      %v1678 = vsel %vm1422, %v1152, %v1550
      %v1679 = vsel %vm1423, %v1155, %v1551
      %v1680 = vsel %vm1424, %v1160, %v1552
      %v1681 = vsel %vm1425, %v1163, %v1553
      %v1682 = vsel %vm1426, %v1168, %v1554
      %v1683 = vsel %vm1427, %v1171, %v1555
      %v1684 = vsel %vm1428, %v1176, %v1556
      %v1685 = vsel %vm1429, %v1179, %v1557
      %v1686 = vsel %vm1430, %v1184, %v1558
      %v1687 = vsel %vm1431, %v1187, %v1559
      %v1688 = vsel %vm1432, %v1192, %v1560
      %v1689 = vsel %vm1433, %v1195, %v1561
      %v1690 = vsel %vm1434, %v1200, %v1562
      %v1691 = vsel %vm1435, %v1203, %v1563
      %v1692 = vsel %vm1436, %v1208, %v1564
      %v1693 = vsel %vm1437, %v1211, %v1565
      %v1694 = vsel %vm1438, %v1216, %v1566
      %v1695 = vsel %vm1439, %v1219, %v1567
      %v1696 = vsel %vm1440, %v1224, %v1568
      %v1697 = vsel %vm1441, %v1227, %v1569
      %v1698 = vsel %vm1442, %v1232, %v1570
      %v1699 = vsel %vm1443, %v1235, %v1571
      %v1700 = vsel %vm1444, %v1240, %v1572
      %v1701 = vsel %vm1445, %v1243, %v1573
      %v1702 = vsel %vm1446, %v1248, %v1574
      %v1703 = vsel %vm1447, %v1251, %v1575
      %v1704 = vsel %vm1448, %v1256, %v1576
      %v1705 = vsel %vm1449, %v1259, %v1577
      %v1706 = vsel %vm1450, %v1264, %v1578
      %v1707 = vsel %vm1451, %v1267, %v1579
      %v1708 = vsel %vm1452, %v1272, %v1580
      %v1709 = vsel %vm1453, %v1275, %v1581
      %v1710 = vsel %vm1454, %v1280, %v1582
      %v1711 = vsel %vm1455, %v1283, %v1583
      %v1712 = vsel %vm1456, %v1288, %v1584
      %v1713 = vsel %vm1457, %v1291, %v1585
      %v1714 = vsel %vm1458, %v1296, %v1586
      %v1715 = vsel %vm1459, %v1299, %v1587
      %v1716 = vsel %vm1460, %v1304, %v1588
      %v1717 = vsel %vm1461, %v1307, %v1589
      %v1718 = vsel %vm1462, %v1312, %v1590
      %v1719 = vsel %vm1463, %v1315, %v1591
      %v1720 = vsel %vm1464, %v1320, %v1592
      %v1721 = vsel %vm1465, %v1323, %v1593
      %v1722 = vsel %vm1466, %v1328, %v1594
      %v1723 = vsel %vm1467, %v1331, %v1595
      %v1724 = vsel %vm1468, %v1336, %v1596
      %v1725 = vsel %vm1469, %v1339, %v1597
      %v1726 = vpack.c.bf16 %v1599, %v1598
      %v1727 = vpack.c.bf16 %v1601, %v1600
      %v1728 = vpack.c.bf16 %v1603, %v1602
      %v1729 = vpack.c.bf16 %v1605, %v1604
      %v1730 = vpack.c.bf16 %v1607, %v1606
      %v1731 = vpack.c.bf16 %v1609, %v1608
      %v1732 = vpack.c.bf16 %v1611, %v1610
      %v1733 = vpack.c.bf16 %v1613, %v1612
      %v1734 = vpack.c.bf16 %v1615, %v1614
      %v1735 = vpack.c.bf16 %v1617, %v1616
      %v1736 = vpack.c.bf16 %v1619, %v1618
      %v1737 = vpack.c.bf16 %v1621, %v1620
      %v1738 = vpack.c.bf16 %v1623, %v1622
      %v1739 = vpack.c.bf16 %v1625, %v1624
      %v1740 = vpack.c.bf16 %v1627, %v1626
      %v1741 = vpack.c.bf16 %v1629, %v1628
      %v1742 = vpack.c.bf16 %v1631, %v1630
      %v1743 = vpack.c.bf16 %v1633, %v1632
      %v1744 = vpack.c.bf16 %v1635, %v1634
      %v1745 = vpack.c.bf16 %v1637, %v1636
      %v1746 = vpack.c.bf16 %v1639, %v1638
      %v1747 = vpack.c.bf16 %v1641, %v1640
      %v1748 = vpack.c.bf16 %v1643, %v1642
      %v1749 = vpack.c.bf16 %v1645, %v1644
      %v1750 = vpack.c.bf16 %v1647, %v1646
      %v1751 = vpack.c.bf16 %v1649, %v1648
      %v1752 = vpack.c.bf16 %v1651, %v1650
      %v1753 = vpack.c.bf16 %v1653, %v1652
      %v1754 = vpack.c.bf16 %v1655, %v1654
      %v1755 = vpack.c.bf16 %v1657, %v1656
      %v1756 = vpack.c.bf16 %v1659, %v1658
      %v1757 = vpack.c.bf16 %v1661, %v1660
      %v1758 = vpack.c.bf16 %v1663, %v1662
      %v1759 = vpack.c.bf16 %v1665, %v1664
      %v1760 = vpack.c.bf16 %v1667, %v1666
      %v1761 = vpack.c.bf16 %v1669, %v1668
      %v1762 = vpack.c.bf16 %v1671, %v1670
      %v1763 = vpack.c.bf16 %v1673, %v1672
      %v1764 = vpack.c.bf16 %v1675, %v1674
      %v1765 = vpack.c.bf16 %v1677, %v1676
      %v1766 = vpack.c.bf16 %v1679, %v1678
      %v1767 = vpack.c.bf16 %v1681, %v1680
      %v1768 = vpack.c.bf16 %v1683, %v1682
      %v1769 = vpack.c.bf16 %v1685, %v1684
      %v1770 = vpack.c.bf16 %v1687, %v1686
      %v1771 = vpack.c.bf16 %v1689, %v1688
      %v1772 = vpack.c.bf16 %v1691, %v1690
      %v1773 = vpack.c.bf16 %v1693, %v1692
      %v1774 = vpack.c.bf16 %v1695, %v1694
      %v1775 = vpack.c.bf16 %v1697, %v1696
      %v1776 = vpack.c.bf16 %v1699, %v1698
      %v1777 = vpack.c.bf16 %v1701, %v1700
      %v1778 = vpack.c.bf16 %v1703, %v1702
      %v1779 = vpack.c.bf16 %v1705, %v1704
      %v1780 = vpack.c.bf16 %v1707, %v1706
      %v1781 = vpack.c.bf16 %v1709, %v1708
      %v1782 = vpack.c.bf16 %v1711, %v1710
      %v1783 = vpack.c.bf16 %v1713, %v1712
      %v1784 = vpack.c.bf16 %v1715, %v1714
      %v1785 = vpack.c.bf16 %v1717, %v1716
      %v1786 = vpack.c.bf16 %v1719, %v1718
      %v1787 = vpack.c.bf16 %v1721, %v1720
      %v1788 = vpack.c.bf16 %v1723, %v1722
      %v1789 = vpack.c.bf16 %v1725, %v1724
      %v1854 = vunpack.c.l.b16 %v1726
      %v1855 = vunpack.c.h.b16 %v1726
      %v1856 = vunpack.c.l.b16 %v1727
      %v1857 = vunpack.c.h.b16 %v1727
      %v1858 = vunpack.c.l.b16 %v1728
      %v1859 = vunpack.c.h.b16 %v1728
      %v1860 = vunpack.c.l.b16 %v1729
      %v1861 = vunpack.c.h.b16 %v1729
      %v1862 = vunpack.c.l.b16 %v1730
      %v1863 = vunpack.c.h.b16 %v1730
      %v1864 = vunpack.c.l.b16 %v1731
      %v1865 = vunpack.c.h.b16 %v1731
      %v1866 = vunpack.c.l.b16 %v1732
      %v1867 = vunpack.c.h.b16 %v1732
      %v1868 = vunpack.c.l.b16 %v1733
      %v1869 = vunpack.c.h.b16 %v1733
      %v1870 = vunpack.c.l.b16 %v1734
      %v1871 = vunpack.c.h.b16 %v1734
      %v1872 = vunpack.c.l.b16 %v1735
      %v1873 = vunpack.c.h.b16 %v1735
      %v1874 = vunpack.c.l.b16 %v1736
      %v1875 = vunpack.c.h.b16 %v1736
      %v1876 = vunpack.c.l.b16 %v1737
      %v1877 = vunpack.c.h.b16 %v1737
      %v1878 = vunpack.c.l.b16 %v1738
      %v1879 = vunpack.c.h.b16 %v1738
      %v1880 = vunpack.c.l.b16 %v1739
      %v1881 = vunpack.c.h.b16 %v1739
      %v1882 = vunpack.c.l.b16 %v1740
      %v1883 = vunpack.c.h.b16 %v1740
      %v1884 = vunpack.c.l.b16 %v1741
      %v1885 = vunpack.c.h.b16 %v1741
      %v1886 = vunpack.c.l.b16 %v1742
      %v1887 = vunpack.c.h.b16 %v1742
      %v1888 = vunpack.c.l.b16 %v1743
      %v1889 = vunpack.c.h.b16 %v1743
      %v1890 = vunpack.c.l.b16 %v1744
      %v1891 = vunpack.c.h.b16 %v1744
      %v1892 = vunpack.c.l.b16 %v1745
      %v1893 = vunpack.c.h.b16 %v1745
      %v1894 = vunpack.c.l.b16 %v1746
      %v1895 = vunpack.c.h.b16 %v1746
      %v1896 = vunpack.c.l.b16 %v1747
      %v1897 = vunpack.c.h.b16 %v1747
      %v1898 = vunpack.c.l.b16 %v1748
      %v1899 = vunpack.c.h.b16 %v1748
      %v1900 = vunpack.c.l.b16 %v1749
      %v1901 = vunpack.c.h.b16 %v1749
      %v1902 = vunpack.c.l.b16 %v1750
      %v1903 = vunpack.c.h.b16 %v1750
      %v1904 = vunpack.c.l.b16 %v1751
      %v1905 = vunpack.c.h.b16 %v1751
      %v1906 = vunpack.c.l.b16 %v1752
      %v1907 = vunpack.c.h.b16 %v1752
      %v1908 = vunpack.c.l.b16 %v1753
      %v1909 = vunpack.c.h.b16 %v1753
      %v1910 = vunpack.c.l.b16 %v1754
      %v1911 = vunpack.c.h.b16 %v1754
      %v1912 = vunpack.c.l.b16 %v1755
      %v1913 = vunpack.c.h.b16 %v1755
      %v1914 = vunpack.c.l.b16 %v1756
      %v1915 = vunpack.c.h.b16 %v1756
      %v1916 = vunpack.c.l.b16 %v1757
      %v1917 = vunpack.c.h.b16 %v1757
      %v1918 = vunpack.c.l.b16 %v1758
      %v1919 = vunpack.c.h.b16 %v1758
      %v1920 = vunpack.c.l.b16 %v1759
      %v1921 = vunpack.c.h.b16 %v1759
      %v1922 = vunpack.c.l.b16 %v1760
      %v1923 = vunpack.c.h.b16 %v1760
      %v1924 = vunpack.c.l.b16 %v1761
      %v1925 = vunpack.c.h.b16 %v1761
      %v1926 = vunpack.c.l.b16 %v1762
      %v1927 = vunpack.c.h.b16 %v1762
      %v1928 = vunpack.c.l.b16 %v1763
      %v1929 = vunpack.c.h.b16 %v1763
      %v1930 = vunpack.c.l.b16 %v1764
      %v1931 = vunpack.c.h.b16 %v1764
      %v1932 = vunpack.c.l.b16 %v1765
      %v1933 = vunpack.c.h.b16 %v1765
      %v1934 = vunpack.c.l.b16 %v1766
      %v1935 = vunpack.c.h.b16 %v1766
      %v1936 = vunpack.c.l.b16 %v1767
      %v1937 = vunpack.c.h.b16 %v1767
      %v1938 = vunpack.c.l.b16 %v1768
      %v1939 = vunpack.c.h.b16 %v1768
      %v1940 = vunpack.c.l.b16 %v1769
      %v1941 = vunpack.c.h.b16 %v1769
      %v1942 = vunpack.c.l.b16 %v1770
      %v1943 = vunpack.c.h.b16 %v1770
      %v1944 = vunpack.c.l.b16 %v1771
      %v1945 = vunpack.c.h.b16 %v1771
      %v1946 = vunpack.c.l.b16 %v1772
      %v1947 = vunpack.c.h.b16 %v1772
      %v1948 = vunpack.c.l.b16 %v1773
      %v1949 = vunpack.c.h.b16 %v1773
      %v1950 = vunpack.c.l.b16 %v1774
      %v1951 = vunpack.c.h.b16 %v1774
      %v1952 = vunpack.c.l.b16 %v1775
      %v1953 = vunpack.c.h.b16 %v1775
      %v1954 = vunpack.c.l.b16 %v1776
      %v1955 = vunpack.c.h.b16 %v1776
      %v1956 = vunpack.c.l.b16 %v1777
      %v1957 = vunpack.c.h.b16 %v1777
      %v1958 = vunpack.c.l.b16 %v1778
      %v1959 = vunpack.c.h.b16 %v1778
      %v1960 = vunpack.c.l.b16 %v1779
      %v1961 = vunpack.c.h.b16 %v1779
      %v1962 = vunpack.c.l.b16 %v1780
      %v1963 = vunpack.c.h.b16 %v1780
      %v1964 = vunpack.c.l.b16 %v1781
      %v1965 = vunpack.c.h.b16 %v1781
      %v1966 = vunpack.c.l.b16 %v1782
      %v1967 = vunpack.c.h.b16 %v1782
      %v1968 = vunpack.c.l.b16 %v1783
      %v1969 = vunpack.c.h.b16 %v1783
      %v1970 = vunpack.c.l.b16 %v1784
      %v1971 = vunpack.c.h.b16 %v1784
      %v1972 = vunpack.c.l.b16 %v1785
      %v1973 = vunpack.c.h.b16 %v1785
      %v1974 = vunpack.c.l.b16 %v1786
      %v1975 = vunpack.c.h.b16 %v1786
      %v1976 = vunpack.c.l.b16 %v1787
      %v1977 = vunpack.c.h.b16 %v1787
      %v1978 = vunpack.c.l.b16 %v1788
      %v1979 = vunpack.c.h.b16 %v1788
      %v1980 = vunpack.c.l.b16 %v1789
      %v1981 = vunpack.c.h.b16 %v1789
      %v1982 = vpack.c.b16 %v1854, %v1854
      %v1983 = vpack.c.b16 %v1855, %v1855
      %v1984 = vpack.c.b16 %v1856, %v1856
      %v1985 = vpack.c.b16 %v1857, %v1857
      %v1986 = vpack.c.b16 %v1858, %v1858
      %v1987 = vpack.c.b16 %v1859, %v1859
      %v1988 = vpack.c.b16 %v1860, %v1860
      %v1989 = vpack.c.b16 %v1861, %v1861
      %v1990 = vpack.c.b16 %v1862, %v1862
      %v1991 = vpack.c.b16 %v1863, %v1863
      %v1992 = vpack.c.b16 %v1864, %v1864
      %v1993 = vpack.c.b16 %v1865, %v1865
      %v1994 = vpack.c.b16 %v1866, %v1866
      %v1995 = vpack.c.b16 %v1867, %v1867
      %v1996 = vpack.c.b16 %v1868, %v1868
      %v1997 = vpack.c.b16 %v1869, %v1869
      %v1998 = vpack.c.b16 %v1870, %v1870
      %v1999 = vpack.c.b16 %v1871, %v1871
      %v2000 = vpack.c.b16 %v1872, %v1872
      %v2001 = vpack.c.b16 %v1873, %v1873
      %v2002 = vpack.c.b16 %v1874, %v1874
      %v2003 = vpack.c.b16 %v1875, %v1875
      %v2004 = vpack.c.b16 %v1876, %v1876
      %v2005 = vpack.c.b16 %v1877, %v1877
      %v2006 = vpack.c.b16 %v1878, %v1878
      %v2007 = vpack.c.b16 %v1879, %v1879
      %v2008 = vpack.c.b16 %v1880, %v1880
      %v2009 = vpack.c.b16 %v1881, %v1881
      %v2010 = vpack.c.b16 %v1882, %v1882
      %v2011 = vpack.c.b16 %v1883, %v1883
      %v2012 = vpack.c.b16 %v1884, %v1884
      %v2013 = vpack.c.b16 %v1885, %v1885
      %v2014 = vpack.c.b16 %v1886, %v1886
      %v2015 = vpack.c.b16 %v1887, %v1887
      %v2016 = vpack.c.b16 %v1888, %v1888
      %v2017 = vpack.c.b16 %v1889, %v1889
      %v2018 = vpack.c.b16 %v1890, %v1890
      %v2019 = vpack.c.b16 %v1891, %v1891
      %v2020 = vpack.c.b16 %v1892, %v1892
      %v2021 = vpack.c.b16 %v1893, %v1893
      %v2022 = vpack.c.b16 %v1894, %v1894
      %v2023 = vpack.c.b16 %v1895, %v1895
      %v2024 = vpack.c.b16 %v1896, %v1896
      %v2025 = vpack.c.b16 %v1897, %v1897
      %v2026 = vpack.c.b16 %v1898, %v1898
      %v2027 = vpack.c.b16 %v1899, %v1899
      %v2028 = vpack.c.b16 %v1900, %v1900
      %v2029 = vpack.c.b16 %v1901, %v1901
      %v2030 = vpack.c.b16 %v1902, %v1902
      %v2031 = vpack.c.b16 %v1903, %v1903
      %v2032 = vpack.c.b16 %v1904, %v1904
      %v2033 = vpack.c.b16 %v1905, %v1905
      %v2034 = vpack.c.b16 %v1906, %v1906
      %v2035 = vpack.c.b16 %v1907, %v1907
      %v2036 = vpack.c.b16 %v1908, %v1908
      %v2037 = vpack.c.b16 %v1909, %v1909
      %v2038 = vpack.c.b16 %v1910, %v1910
      %v2039 = vpack.c.b16 %v1911, %v1911
      %v2040 = vpack.c.b16 %v1912, %v1912
      %v2041 = vpack.c.b16 %v1913, %v1913
      %v2042 = vpack.c.b16 %v1914, %v1914
      %v2043 = vpack.c.b16 %v1915, %v1915
      %v2044 = vpack.c.b16 %v1916, %v1916
      %v2045 = vpack.c.b16 %v1917, %v1917
      %v2046 = vpack.c.b16 %v1918, %v1918
      %v2047 = vpack.c.b16 %v1919, %v1919
      %v2048 = vpack.c.b16 %v1920, %v1920
      %v2049 = vpack.c.b16 %v1921, %v1921
      %v2050 = vpack.c.b16 %v1922, %v1922
      %v2051 = vpack.c.b16 %v1923, %v1923
      %v2052 = vpack.c.b16 %v1924, %v1924
      %v2053 = vpack.c.b16 %v1925, %v1925
      %v2054 = vpack.c.b16 %v1926, %v1926
      %v2055 = vpack.c.b16 %v1927, %v1927
      %v2056 = vpack.c.b16 %v1928, %v1928
      %v2057 = vpack.c.b16 %v1929, %v1929
      %v2058 = vpack.c.b16 %v1930, %v1930
      %v2059 = vpack.c.b16 %v1931, %v1931
      %v2060 = vpack.c.b16 %v1932, %v1932
      %v2061 = vpack.c.b16 %v1933, %v1933
      %v2062 = vpack.c.b16 %v1934, %v1934
      %v2063 = vpack.c.b16 %v1935, %v1935
      %v2064 = vpack.c.b16 %v1936, %v1936
      %v2065 = vpack.c.b16 %v1937, %v1937
      %v2066 = vpack.c.b16 %v1938, %v1938
      %v2067 = vpack.c.b16 %v1939, %v1939
      %v2068 = vpack.c.b16 %v1940, %v1940
      %v2069 = vpack.c.b16 %v1941, %v1941
      %v2070 = vpack.c.b16 %v1942, %v1942
      %v2071 = vpack.c.b16 %v1943, %v1943
      %v2072 = vpack.c.b16 %v1944, %v1944
      %v2073 = vpack.c.b16 %v1945, %v1945
      %v2074 = vpack.c.b16 %v1946, %v1946
      %v2075 = vpack.c.b16 %v1947, %v1947
      %v2076 = vpack.c.b16 %v1948, %v1948
      %v2077 = vpack.c.b16 %v1949, %v1949
      %v2078 = vpack.c.b16 %v1950, %v1950
      %v2079 = vpack.c.b16 %v1951, %v1951
      %v2080 = vpack.c.b16 %v1952, %v1952
      %v2081 = vpack.c.b16 %v1953, %v1953
      %v2082 = vpack.c.b16 %v1954, %v1954
      %v2083 = vpack.c.b16 %v1955, %v1955
      %v2084 = vpack.c.b16 %v1956, %v1956
      %v2085 = vpack.c.b16 %v1957, %v1957
      %v2086 = vpack.c.b16 %v1958, %v1958
      %v2087 = vpack.c.b16 %v1959, %v1959
      %v2088 = vpack.c.b16 %v1960, %v1960
      %v2089 = vpack.c.b16 %v1961, %v1961
      %v2090 = vpack.c.b16 %v1962, %v1962
      %v2091 = vpack.c.b16 %v1963, %v1963
      %v2092 = vpack.c.b16 %v1964, %v1964
      %v2093 = vpack.c.b16 %v1965, %v1965
      %v2094 = vpack.c.b16 %v1966, %v1966
      %v2095 = vpack.c.b16 %v1967, %v1967
      %v2096 = vpack.c.b16 %v1968, %v1968
      %v2097 = vpack.c.b16 %v1969, %v1969
      %v2098 = vpack.c.b16 %v1970, %v1970
      %v2099 = vpack.c.b16 %v1971, %v1971
      %v2100 = vpack.c.b16 %v1972, %v1972
      %v2101 = vpack.c.b16 %v1973, %v1973
      %v2102 = vpack.c.b16 %v1974, %v1974
      %v2103 = vpack.c.b16 %v1975, %v1975
      %v2104 = vpack.c.b16 %v1976, %v1976
      %v2105 = vpack.c.b16 %v1977, %v1977
      %v2106 = vpack.c.b16 %v1978, %v1978
      %v2107 = vpack.c.b16 %v1979, %v1979
      %v2108 = vpack.c.b16 %v1980, %v1980
      %v2109 = vpack.c.b16 %v1981, %v1981
      %2238 = vst [vmem:[%s145] sm:$0xf] %v1982
      %2239 = vst [vmem:[%s145 + $0x4] sm:$0xf] %v1983
      %2240 = vst [vmem:[%s145 + $0x8] sm:$0xf] %v1984
      %2241 = vst [vmem:[%s145 + $0xc] sm:$0xf] %v1985
      %2242 = vst [vmem:[%s145 + $0x10] sm:$0xf] %v1986
      %2243 = vst [vmem:[%s145 + $0x14] sm:$0xf] %v1987
      %2244 = vst [vmem:[%s145 + $0x18] sm:$0xf] %v1988
      %2245 = vst [vmem:[%s145 + $0x1c] sm:$0xf] %v1989
      %2246 = vst [vmem:[%s145 + $0x20] sm:$0xf] %v1990
      %2247 = vst [vmem:[%s145 + $0x24] sm:$0xf] %v1991
      %2248 = vst [vmem:[%s145 + $0x28] sm:$0xf] %v1992
      %2249 = vst [vmem:[%s145 + $0x2c] sm:$0xf] %v1993
      %2250 = vst [vmem:[%s145 + $0x30] sm:$0xf] %v1994
      %2251 = vst [vmem:[%s145 + $0x34] sm:$0xf] %v1995
      %2252 = vst [vmem:[%s145 + $0x38] sm:$0xf] %v1996
      %2253 = vst [vmem:[%s145 + $0x3c] sm:$0xf] %v1997
      %2254 = vst [vmem:[%s145 + $0x40] sm:$0xf] %v1998
      %2255 = vst [vmem:[%s145 + $0x44] sm:$0xf] %v1999
      %2256 = vst [vmem:[%s145 + $0x48] sm:$0xf] %v2000
      %2257 = vst [vmem:[%s145 + $0x4c] sm:$0xf] %v2001
      %2258 = vst [vmem:[%s145 + $0x50] sm:$0xf] %v2002
      %2259 = vst [vmem:[%s145 + $0x54] sm:$0xf] %v2003
      %2260 = vst [vmem:[%s145 + $0x58] sm:$0xf] %v2004
      %2261 = vst [vmem:[%s145 + $0x5c] sm:$0xf] %v2005
      %2262 = vst [vmem:[%s145 + $0x60] sm:$0xf] %v2006
      %2263 = vst [vmem:[%s145 + $0x64] sm:$0xf] %v2007
      %2264 = vst [vmem:[%s145 + $0x68] sm:$0xf] %v2008
      %2265 = vst [vmem:[%s145 + $0x6c] sm:$0xf] %v2009
      %2266 = vst [vmem:[%s145 + $0x70] sm:$0xf] %v2010
      %2267 = vst [vmem:[%s145 + $0x74] sm:$0xf] %v2011
      %2268 = vst [vmem:[%s145 + $0x78] sm:$0xf] %v2012
      %2269 = vst [vmem:[%s145 + $0x7c] sm:$0xf] %v2013
      %2270 = vst [vmem:[%s145 + $0x80] sm:$0xf] %v2014
      %2271 = vst [vmem:[%s145 + $0x84] sm:$0xf] %v2015
      %2272 = vst [vmem:[%s145 + $0x88] sm:$0xf] %v2016
      %2273 = vst [vmem:[%s145 + $0x8c] sm:$0xf] %v2017
      %2274 = vst [vmem:[%s145 + $0x90] sm:$0xf] %v2018
      %2275 = vst [vmem:[%s145 + $0x94] sm:$0xf] %v2019
      %2276 = vst [vmem:[%s145 + $0x98] sm:$0xf] %v2020
      %2277 = vst [vmem:[%s145 + $0x9c] sm:$0xf] %v2021
      %2278 = vst [vmem:[%s145 + $0xa0] sm:$0xf] %v2022
      %2279 = vst [vmem:[%s145 + $0xa4] sm:$0xf] %v2023
      %2280 = vst [vmem:[%s145 + $0xa8] sm:$0xf] %v2024
      %2281 = vst [vmem:[%s145 + $0xac] sm:$0xf] %v2025
      %2282 = vst [vmem:[%s145 + $0xb0] sm:$0xf] %v2026
      %2283 = vst [vmem:[%s145 + $0xb4] sm:$0xf] %v2027
      %2284 = vst [vmem:[%s145 + $0xb8] sm:$0xf] %v2028
      %2285 = vst [vmem:[%s145 + $0xbc] sm:$0xf] %v2029
      %2286 = vst [vmem:[%s145 + $0xc0] sm:$0xf] %v2030
      %2287 = vst [vmem:[%s145 + $0xc4] sm:$0xf] %v2031
      %2288 = vst [vmem:[%s145 + $0xc8] sm:$0xf] %v2032
      %2289 = vst [vmem:[%s145 + $0xcc] sm:$0xf] %v2033
      %2290 = vst [vmem:[%s145 + $0xd0] sm:$0xf] %v2034
      %2291 = vst [vmem:[%s145 + $0xd4] sm:$0xf] %v2035
      %2292 = vst [vmem:[%s145 + $0xd8] sm:$0xf] %v2036
      %2293 = vst [vmem:[%s145 + $0xdc] sm:$0xf] %v2037
      %2294 = vst [vmem:[%s145 + $0xe0] sm:$0xf] %v2038
      %2295 = vst [vmem:[%s145 + $0xe4] sm:$0xf] %v2039
      %2296 = vst [vmem:[%s145 + $0xe8] sm:$0xf] %v2040
      %2297 = vst [vmem:[%s145 + $0xec] sm:$0xf] %v2041
      %2298 = vst [vmem:[%s145 + $0xf0] sm:$0xf] %v2042
      %2299 = vst [vmem:[%s145 + $0xf4] sm:$0xf] %v2043
      %2300 = vst [vmem:[%s145 + $0xf8] sm:$0xf] %v2044
      %2301 = vst [vmem:[%s145 + $0xfc] sm:$0xf] %v2045
      %2302 = vst [vmem:[%s145 + $0x100] sm:$0xf] %v2046
      %2303 = vst [vmem:[%s145 + $0x104] sm:$0xf] %v2047
      %2304 = vst [vmem:[%s145 + $0x108] sm:$0xf] %v2048
      %2305 = vst [vmem:[%s145 + $0x10c] sm:$0xf] %v2049
      %2306 = vst [vmem:[%s145 + $0x110] sm:$0xf] %v2050
      %2307 = vst [vmem:[%s145 + $0x114] sm:$0xf] %v2051
      %2308 = vst [vmem:[%s145 + $0x118] sm:$0xf] %v2052
      %2309 = vst [vmem:[%s145 + $0x11c] sm:$0xf] %v2053
      %2310 = vst [vmem:[%s145 + $0x120] sm:$0xf] %v2054
      %2311 = vst [vmem:[%s145 + $0x124] sm:$0xf] %v2055
      %2312 = vst [vmem:[%s145 + $0x128] sm:$0xf] %v2056
      %2313 = vst [vmem:[%s145 + $0x12c] sm:$0xf] %v2057
      %2314 = vst [vmem:[%s145 + $0x130] sm:$0xf] %v2058
      %2315 = vst [vmem:[%s145 + $0x134] sm:$0xf] %v2059
      %2316 = vst [vmem:[%s145 + $0x138] sm:$0xf] %v2060
      %2317 = vst [vmem:[%s145 + $0x13c] sm:$0xf] %v2061
      %2318 = vst [vmem:[%s145 + $0x140] sm:$0xf] %v2062
      %2319 = vst [vmem:[%s145 + $0x144] sm:$0xf] %v2063
      %2320 = vst [vmem:[%s145 + $0x148] sm:$0xf] %v2064
      %2321 = vst [vmem:[%s145 + $0x14c] sm:$0xf] %v2065
      %2322 = vst [vmem:[%s145 + $0x150] sm:$0xf] %v2066
      %2323 = vst [vmem:[%s145 + $0x154] sm:$0xf] %v2067
      %2324 = vst [vmem:[%s145 + $0x158] sm:$0xf] %v2068
      %2325 = vst [vmem:[%s145 + $0x15c] sm:$0xf] %v2069
      %2326 = vst [vmem:[%s145 + $0x160] sm:$0xf] %v2070
      %2327 = vst [vmem:[%s145 + $0x164] sm:$0xf] %v2071
      %2328 = vst [vmem:[%s145 + $0x168] sm:$0xf] %v2072
      %2329 = vst [vmem:[%s145 + $0x16c] sm:$0xf] %v2073
      %2330 = vst [vmem:[%s145 + $0x170] sm:$0xf] %v2074
      %2331 = vst [vmem:[%s145 + $0x174] sm:$0xf] %v2075
      %2332 = vst [vmem:[%s145 + $0x178] sm:$0xf] %v2076
      %2333 = vst [vmem:[%s145 + $0x17c] sm:$0xf] %v2077
      %2334 = vst [vmem:[%s145 + $0x180] sm:$0xf] %v2078
      %2335 = vst [vmem:[%s145 + $0x184] sm:$0xf] %v2079
      %2336 = vst [vmem:[%s145 + $0x188] sm:$0xf] %v2080
      %2337 = vst [vmem:[%s145 + $0x18c] sm:$0xf] %v2081
      %2338 = vst [vmem:[%s145 + $0x190] sm:$0xf] %v2082
      %2339 = vst [vmem:[%s145 + $0x194] sm:$0xf] %v2083
      %2340 = vst [vmem:[%s145 + $0x198] sm:$0xf] %v2084
      %2341 = vst [vmem:[%s145 + $0x19c] sm:$0xf] %v2085
      %2342 = vst [vmem:[%s145 + $0x1a0] sm:$0xf] %v2086
      %2343 = vst [vmem:[%s145 + $0x1a4] sm:$0xf] %v2087
      %2344 = vst [vmem:[%s145 + $0x1a8] sm:$0xf] %v2088
      %2345 = vst [vmem:[%s145 + $0x1ac] sm:$0xf] %v2089
      %2346 = vst [vmem:[%s145 + $0x1b0] sm:$0xf] %v2090
      %2347 = vst [vmem:[%s145 + $0x1b4] sm:$0xf] %v2091
      %2348 = vst [vmem:[%s145 + $0x1b8] sm:$0xf] %v2092
      %2349 = vst [vmem:[%s145 + $0x1bc] sm:$0xf] %v2093
      %2350 = vst [vmem:[%s145 + $0x1c0] sm:$0xf] %v2094
      %2351 = vst [vmem:[%s145 + $0x1c4] sm:$0xf] %v2095
      %2352 = vst [vmem:[%s145 + $0x1c8] sm:$0xf] %v2096
      %2353 = vst [vmem:[%s145 + $0x1cc] sm:$0xf] %v2097
      %2354 = vst [vmem:[%s145 + $0x1d0] sm:$0xf] %v2098
      %2355 = vst [vmem:[%s145 + $0x1d4] sm:$0xf] %v2099
      %2356 = vst [vmem:[%s145 + $0x1d8] sm:$0xf] %v2100
      %2357 = vst [vmem:[%s145 + $0x1dc] sm:$0xf] %v2101
      %2358 = vst [vmem:[%s145 + $0x1e0] sm:$0xf] %v2102
      %2359 = vst [vmem:[%s145 + $0x1e4] sm:$0xf] %v2103
      %2360 = vst [vmem:[%s145 + $0x1e8] sm:$0xf] %v2104
      %2361 = vst [vmem:[%s145 + $0x1ec] sm:$0xf] %v2105
      %2362 = vst [vmem:[%s145 + $0x1f0] sm:$0xf] %v2106
      %2363 = vst [vmem:[%s145 + $0x1f4] sm:$0xf] %v2107
      %2364 = vst [vmem:[%s145 + $0x1f8] sm:$0xf] %v2108
      %2365 = vst [vmem:[%s145 + $0x1fc] sm:$0xf] %v2109
      %s2366 = smul.u32 128, %s13
      %p2367 = scmp.lt.s32.totalorder %s2366, 255
      %s2368 = scalar_select %p2367, %s2366, 255
      %s2369 = smul.addr %s2368, 4
      %s2370 = scalar_lea.vmem %s2, %s2369
      // Predicated region
      $region29: #{discriminator_forward.5} parent=27 // pred_check
        %p2371 = pneg %p78
      $region30: #{discriminator_forward.5} parent=27 // pred_check_branch
        %2373 = sbr.rel (%p2371) target = $region32
      $region31: #{discriminator_forward.5} parent=27 // pred_region
        %s2374 = smul.u32 128, %s13
      $region32: #{discriminator_forward.5} parent=27 // pred_fallthru
        _
    $region28: #{discriminator_forward.5} parent=5 // pred_fallthru
      _
    %p2375 = scmp.le.s32.totalorder 2, %s8
    // Predicated region
    $region33: #{discriminator_forward.5} parent=5 // pred_check
      %p2376 = pneg %p2375
    $region34: #{discriminator_forward.5} parent=5 // pred_check_branch
      %2378 = sbr.rel (%p2376) target = $region36
    $region35: #{discriminator_forward.5} parent=5 // pred_region
      %s2379 = ssub.s32 %s8, 2
      // Predicated region
      $region37: #{discriminator_forward.5} parent=35 // pred_check
        %p2380 = pneg %p84
      $region38: #{discriminator_forward.5} parent=35 // pred_check_branch
        %2382 = sbr.rel (%p2380) target = $region40
      $region39: #{discriminator_forward.5} parent=35 // pred_region
        %s2383 = smul.u32 128, %s14
        %p2384 = scmp.lt.s32.totalorder %s2383, 255
        %s2385 = scalar_select %p2384, %s2383, 255
        %s2386 = smul.addr %s2385, 4
        %s2387 = scalar_lea.vmem %s2, %s2386
      $region40: #{discriminator_forward.5} parent=35 // pred_fallthru
        _
    $region36: #{discriminator_forward.5} parent=5 // pred_fallthru
      _
  $region6: #{discriminator_forward.5} parent=0 // loop_footer
    %s12 = sadd.s32 1, %s8
  $region7: #{discriminator_forward.5} parent=0 // loop_footer_branch
    %7 = sbr.rel target = $region3
  $region8: #{discriminator_forward.5} parent=0 // loop_exit
    _

// kernel: discriminator_forward.6
$region0: #{discriminator_forward.6}
  #allocation0 [shape = 'u32[]', space=smem, size = 0x4, offset = 0x4, fixed_abs, tag = 'smem constant byte address 0x4 - core index']
  #allocation1 [shape = 'u32[144,128]{1,0:T(1,128)}', space=vmem, size = 0x12000, scoped, tag = 'internal scratch']
  %s0 = inlined_call_operand.vmem [shape: bf16[512,128], index: 0, kind: input, shape index: {}]
  %s1 = inlined_call_operand.vmem [shape: bf16[128,128], index: 1, kind: input, shape index: {}]
  %s2 = inlined_call_operand.vmem [shape: bf16[512,128], index: 2, kind: output, shape index: {0}]
  %s3 = inlined_call_operand.vmem [shape: f32[2,2,128], index: 3, kind: output, shape index: {1}]
  %4 = xla_tuple %s2, %s3
  %s5 = sld [smem:[#allocation0]]
  $region49: #{discriminator_forward.6} parent=0
    _
  %s7 = ssub.s32 1, %s5
  %s8 = scalar_select 0, %s7, %s5
  loop: start=0, step=1, limit=4
  $region2: #{discriminator_forward.6} parent=0 // loop_pre_header
    _
  $region3: #{discriminator_forward.6} parent=0 // loop_header
    %s10 = sphi 0, %s14
    %p11 = scmp.ge.s32.totalorder %s10, 4
    %s20 = sphi 0, %s22
    %s23 = sphi 0, %s20
    %s24 = sphi 0, %s23
    %s40 = sphi 0, %s24
    %s44 = sphi 0, %s44
    %s46 = sphi 0, %s44
    %s47 = sphi 0, %s46
    %s61 = sphi 0, %s47
    %s67 = sphi 0, %s69
    %s70 = sphi 0, %s67
    %s71 = sphi 0, %s70
    %s87 = sphi 0, %s71
    %s93 = sphi 0, %s95
    %s96 = sphi 0, %s93
    %s97 = sphi 0, %s96
    %s113 = sphi 0, %s97
  $region4: #{discriminator_forward.6} parent=0 // loop_header_branch
    %13 = sbr.rel (%p11) target = $region8
  $region5: #{discriminator_forward.6} parent=0 // loop_body
    %s15 = ssub.s32 %s10, 1
    %s16 = ssub.s32 %s10, 2
    %s17 = sadd.s32 %s10, 1
    %s18 = ssub.s32 %s10, %s17
    %p19 = scmp.eq.s32.totalorder %s18, 0
    %s21 = sadd.s32 %s20, 1
    %s22 = scalar_select %p19, %s20, %s21
    %p25 = pneg %p19
    %p26 = scmp.eq.s32.totalorder %s10, 1
    %p27 = por %p25, %p26
    %p28 = scmp.ne.s32.totalorder %s20, %s23
    %p29 = scmp.eq.s32.totalorder %s10, 0
    %p30 = por %p28, %p29
    %p31 = scmp.ne.s32.totalorder %s20, %s23
    %p32 = scmp.eq.s32.totalorder %s15, 1
    %p33 = por %p31, %p32
    %p34 = scmp.ne.s32.totalorder %s23, %s24
    %p35 = scmp.eq.s32.totalorder %s15, 0
    %p36 = por %p34, %p35
    %p37 = scmp.ne.s32.totalorder %s23, %s24
    %p38 = scmp.eq.s32.totalorder %s16, 1
    %p39 = por %p37, %p38
    %p41 = scmp.ne.s32.totalorder %s24, %s40
    %p42 = scmp.eq.s32.totalorder %s16, 0
    %p43 = por %p41, %p42
    %s45 = sadd.s32 %s44, 1
    %p48 = scmp.eq.s32.totalorder %s10, 1
    %p49 = scmp.ne.s32.totalorder %s44, %s46
    %p50 = scmp.eq.s32.totalorder %s10, 0
    %p51 = por %p49, %p50
    %p52 = scmp.ne.s32.totalorder %s44, %s46
    %p53 = scmp.eq.s32.totalorder %s15, 1
    %p54 = por %p52, %p53
    %p55 = scmp.ne.s32.totalorder %s46, %s47
    %p56 = scmp.eq.s32.totalorder %s15, 0
    %p57 = por %p55, %p56
    %p58 = scmp.ne.s32.totalorder %s46, %s47
    %p59 = scmp.eq.s32.totalorder %s16, 1
    %p60 = por %p58, %p59
    %p62 = scmp.ne.s32.totalorder %s47, %s61
    %p63 = scmp.eq.s32.totalorder %s16, 0
    %p64 = por %p62, %p63
    %s65 = ssub.s32 %s10, %s17
    %p66 = scmp.eq.s32.totalorder %s65, 0
    %s68 = sadd.s32 %s67, 1
    %s69 = scalar_select %p66, %s67, %s68
    %p72 = pneg %p66
    %p73 = scmp.eq.s32.totalorder %s10, 1
    %p74 = por %p72, %p73
    %p75 = scmp.ne.s32.totalorder %s67, %s70
    %p76 = scmp.eq.s32.totalorder %s10, 0
    %p77 = por %p75, %p76
    %p78 = scmp.ne.s32.totalorder %s67, %s70
    %p79 = scmp.eq.s32.totalorder %s15, 1
    %p80 = por %p78, %p79
    %p81 = scmp.ne.s32.totalorder %s70, %s71
    %p82 = scmp.eq.s32.totalorder %s15, 0
    %p83 = por %p81, %p82
    %p84 = scmp.ne.s32.totalorder %s70, %s71
    %p85 = scmp.eq.s32.totalorder %s16, 1
    %p86 = por %p84, %p85
    %p88 = scmp.ne.s32.totalorder %s71, %s87
    %p89 = scmp.eq.s32.totalorder %s16, 0
    %p90 = por %p88, %p89
    %s91 = ssub.s32 %s10, %s17
    %p92 = scmp.eq.s32.totalorder %s91, 0
    %s94 = sadd.s32 %s93, 1
    %s95 = scalar_select %p92, %s93, %s94
    %p98 = pneg %p92
    %p99 = scmp.eq.s32.totalorder %s10, 1
    %p100 = por %p98, %p99
    %p101 = scmp.ne.s32.totalorder %s93, %s96
    %p102 = scmp.eq.s32.totalorder %s10, 0
    %p103 = por %p101, %p102
    %p104 = scmp.ne.s32.totalorder %s93, %s96
    %p105 = scmp.eq.s32.totalorder %s15, 1
    %p106 = por %p104, %p105
    %p107 = scmp.ne.s32.totalorder %s96, %s97
    %p108 = scmp.eq.s32.totalorder %s15, 0
    %p109 = por %p107, %p108
    %p110 = scmp.ne.s32.totalorder %s96, %s97
    %p111 = scmp.eq.s32.totalorder %s16, 1
    %p112 = por %p110, %p111
    %p114 = scmp.ne.s32.totalorder %s97, %s113
    %p115 = scmp.eq.s32.totalorder %s16, 0
    %p116 = por %p114, %p115
    %p117 = scmp.le.s32.totalorder 1, %s10
    %p118 = scmp.lt.s32.totalorder %s10, 3
    %p119 = pnand %p117, %p118
    %p120 = pneg %p119
    // Predicated region
    $region9: #{discriminator_forward.6} parent=5 // pred_check
      _
    $region10: #{discriminator_forward.6} parent=5 // pred_check_branch
      %122 = sbr.rel (%p119) target = $region12
    $region11: #{discriminator_forward.6} parent=5 // pred_region
      %s123 = ssub.s32 %s10, 1
      // Predicated region
      $region13: #{discriminator_forward.6} parent=11 // pred_check
        %p124 = pneg %p57
      $region14: #{discriminator_forward.6} parent=11 // pred_check_branch
        %126 = sbr.rel (%p124) target = $region16
      $region15: #{discriminator_forward.6} parent=11 // pred_region
        _
      $region16: #{discriminator_forward.6} parent=11 // pred_fallthru
        _
    $region12: #{discriminator_forward.6} parent=5 // pred_fallthru
      _
    %p127 = scmp.lt.s32.totalorder %s10, 2
    // Predicated region
    $region17: #{discriminator_forward.6} parent=5 // pred_check
      %p128 = pneg %p127
    $region18: #{discriminator_forward.6} parent=5 // pred_check_branch
      %130 = sbr.rel (%p128) target = $region20
    $region19: #{discriminator_forward.6} parent=5 // pred_region
      // Predicated region
      $region21: #{discriminator_forward.6} parent=19 // pred_check
        %p131 = pneg %p30
      $region22: #{discriminator_forward.6} parent=19 // pred_check_branch
        %133 = sbr.rel (%p131) target = $region24
      $region23: #{discriminator_forward.6} parent=19 // pred_region
        %s134 = smul.u32 32, %s10
        %p135 = scmp.lt.s32.totalorder %s134, 63
        %s136 = scalar_select %p135, %s134, 63
        %s137 = smul.addr %s136, 4
        %s138 = scalar_lea.vmem %s0, %s137
        %s139 = smul.u32 32, %s10
      $region24: #{discriminator_forward.6} parent=19 // pred_fallthru
        _
    $region20: #{discriminator_forward.6} parent=5 // pred_fallthru
      _
    %p140 = scmp.le.s32.totalorder 1, %s10
    %p141 = scmp.lt.s32.totalorder %s10, 3
    %p142 = pnand %p140, %p141
    %p143 = pneg %p142
    // Predicated region
    $region25: #{discriminator_forward.6} parent=5 // pred_check
      _
    $region26: #{discriminator_forward.6} parent=5 // pred_check_branch
      %145 = sbr.rel (%p142) target = $region28
    $region27: #{discriminator_forward.6} parent=5 // pred_region
      %s146 = ssub.s32 %s10, 1
      %s147 = smul.u32 32, %s15
      %p148 = scmp.lt.s32.totalorder %s147, 63
      %s149 = scalar_select %p148, %s147, 63
      %s150 = smul.addr %s149, 4
      %s151 = scalar_lea.vmem %s0, %s150
      %p152 = pneg %p36
      %p153 = pneg %p33
      %p154 = pneg %p57
      %p155 = pneg %p54
      %p156 = pneg %p83
      %p157 = pneg %p80
      %s158 = smul.u32 32, %s15
      %p159 = scmp.lt.s32.totalorder %s158, 63
      %s160 = scalar_select %p159, %s158, 63
      %s161 = smul.addr %s160, 4
      %s162 = scalar_lea.vmem %s2, %s161
      %p163 = pneg %p109
      %p164 = pneg %p106
      %p165 = scmp.lt.s32.totalorder %s15, 1
      %s166 = scalar_select %p165, %s15, 1
      %s167 = smul.addr %s166, 2
      %s168 = scalar_lea.vmem %s3, %s167
      %s169 = smul.u32 32, %s15
      %p170 = scmp.lt.s32.totalorder %s169, 63
      %s171 = scalar_select %p170, %s169, 63
      %s172 = smul.addr %s171, 4
      %s173 = scalar_lea.vmem %s0, %s172
      %s174 = smul.u32 32, %s15
      %s175 = smul.u32 32, %s15
      %p176 = scmp.lt.s32.totalorder %s175, 63
      %s177 = scalar_select %p176, %s175, 63
      %s178 = smul.addr %s177, 4
      %s179 = scalar_lea.vmem %s2, %s178
      %s180 = smul.u32 32, %s15
      %p181 = scmp.lt.s32.totalorder %s15, 1
      %s182 = scalar_select %p181, %s15, 1
      %s183 = smul.addr %s182, 2
      %s184 = scalar_lea.vmem %s3, %s183
      %v186 = vld [vmem:[%s173] sm:$0xf]
      %v187 = vld [vmem:[%s173 + $0x4] sm:$0xf]
      %v188 = vld [vmem:[%s173 + $0x8] sm:$0xf]
      %v189 = vld [vmem:[%s173 + $0xc] sm:$0xf]
      %v190 = vld [vmem:[%s173 + $0x10] sm:$0xf]
      %v191 = vld [vmem:[%s173 + $0x14] sm:$0xf]
      %v192 = vld [vmem:[%s173 + $0x18] sm:$0xf]
      %v193 = vld [vmem:[%s173 + $0x1c] sm:$0xf]
      %v194 = vld [vmem:[%s173 + $0x20] sm:$0xf]
      %v195 = vld [vmem:[%s173 + $0x24] sm:$0xf]
      %v196 = vld [vmem:[%s173 + $0x28] sm:$0xf]
      %v197 = vld [vmem:[%s173 + $0x2c] sm:$0xf]
      %v198 = vld [vmem:[%s173 + $0x30] sm:$0xf]
      %v199 = vld [vmem:[%s173 + $0x34] sm:$0xf]
      %v200 = vld [vmem:[%s173 + $0x38] sm:$0xf]
      %v201 = vld [vmem:[%s173 + $0x3c] sm:$0xf]
      %v202 = vld [vmem:[%s173 + $0x40] sm:$0xf]
      %v203 = vld [vmem:[%s173 + $0x44] sm:$0xf]
      %v204 = vld [vmem:[%s173 + $0x48] sm:$0xf]
      %v205 = vld [vmem:[%s173 + $0x4c] sm:$0xf]
      %v206 = vld [vmem:[%s173 + $0x50] sm:$0xf]
      %v207 = vld [vmem:[%s173 + $0x54] sm:$0xf]
      %v208 = vld [vmem:[%s173 + $0x58] sm:$0xf]
      %v209 = vld [vmem:[%s173 + $0x5c] sm:$0xf]
      %v210 = vld [vmem:[%s173 + $0x60] sm:$0xf]
      %v211 = vld [vmem:[%s173 + $0x64] sm:$0xf]
      %v212 = vld [vmem:[%s173 + $0x68] sm:$0xf]
      %v213 = vld [vmem:[%s173 + $0x6c] sm:$0xf]
      %v214 = vld [vmem:[%s173 + $0x70] sm:$0xf]
      %v215 = vld [vmem:[%s173 + $0x74] sm:$0xf]
      %v216 = vld [vmem:[%s173 + $0x78] sm:$0xf]
      %v217 = vld [vmem:[%s173 + $0x7c] sm:$0xf]
      %v218 = vld [vmem:[%s1] sm:$0xf]
      %v219 = vld [vmem:[%s1 + $0x4] sm:$0xf]
      %v220 = vld [vmem:[%s1 + $0x8] sm:$0xf]
      %v221 = vld [vmem:[%s1 + $0xc] sm:$0xf]
      %v222 = vld [vmem:[%s1 + $0x10] sm:$0xf]
      %v223 = vld [vmem:[%s1 + $0x14] sm:$0xf]
      %v224 = vld [vmem:[%s1 + $0x18] sm:$0xf]
      %v225 = vld [vmem:[%s1 + $0x1c] sm:$0xf]
      %v226 = vld [vmem:[%s1 + $0x20] sm:$0xf]
      %v227 = vld [vmem:[%s1 + $0x24] sm:$0xf]
      %v228 = vld [vmem:[%s1 + $0x28] sm:$0xf]
      %v229 = vld [vmem:[%s1 + $0x2c] sm:$0xf]
      %v230 = vld [vmem:[%s1 + $0x30] sm:$0xf]
      %v231 = vld [vmem:[%s1 + $0x34] sm:$0xf]
      %v232 = vld [vmem:[%s1 + $0x38] sm:$0xf]
      %v233 = vld [vmem:[%s1 + $0x3c] sm:$0xf]
      %v266 = vunpack.c.l.b16 %v186
      %v267 = vunpack.c.l.b16 %v187
      %v268 = vunpack.c.l.b16 %v188
      %v269 = vunpack.c.l.b16 %v189
      %v270 = vunpack.c.l.b16 %v190
      %v271 = vunpack.c.l.b16 %v191
      %v272 = vunpack.c.l.b16 %v192
      %v273 = vunpack.c.l.b16 %v193
      %v274 = vunpack.c.l.b16 %v194
      %v275 = vunpack.c.l.b16 %v195
      %v276 = vunpack.c.l.b16 %v196
      %v277 = vunpack.c.l.b16 %v197
      %v278 = vunpack.c.l.b16 %v198
      %v279 = vunpack.c.l.b16 %v199
      %v280 = vunpack.c.l.b16 %v200
      %v281 = vunpack.c.l.b16 %v201
      %v282 = vunpack.c.l.b16 %v202
      %v283 = vunpack.c.l.b16 %v203
      %v284 = vunpack.c.l.b16 %v204
      %v285 = vunpack.c.l.b16 %v205
      %v286 = vunpack.c.l.b16 %v206
      %v287 = vunpack.c.l.b16 %v207
      %v288 = vunpack.c.l.b16 %v208
      %v289 = vunpack.c.l.b16 %v209
      %v290 = vunpack.c.l.b16 %v210
      %v291 = vunpack.c.l.b16 %v211
      %v292 = vunpack.c.l.b16 %v212
      %v293 = vunpack.c.l.b16 %v213
      %v294 = vunpack.c.l.b16 %v214
      %v295 = vunpack.c.l.b16 %v215
      %v296 = vunpack.c.l.b16 %v216
      %v297 = vunpack.c.l.b16 %v217
      %v298 = vpack.c.b16 %v267, %v266
      %v299 = vpack.c.b16 %v269, %v268
      %v300 = vpack.c.b16 %v271, %v270
      %v301 = vpack.c.b16 %v273, %v272
      %v302 = vpack.c.b16 %v275, %v274
      %v303 = vpack.c.b16 %v277, %v276
      %v304 = vpack.c.b16 %v279, %v278
      %v305 = vpack.c.b16 %v281, %v280
      %v306 = vpack.c.b16 %v283, %v282
      %v307 = vpack.c.b16 %v285, %v284
      %v308 = vpack.c.b16 %v287, %v286
      %v309 = vpack.c.b16 %v289, %v288
      %v310 = vpack.c.b16 %v291, %v290
      %v311 = vpack.c.b16 %v293, %v292
      %v312 = vpack.c.b16 %v295, %v294
      %v313 = vpack.c.b16 %v297, %v296
      %v346 = vunpack.c.l.b16 %v218
      %v347 = vunpack.c.l.b16 %v219
      %v348 = vunpack.c.l.b16 %v220
      %v349 = vunpack.c.l.b16 %v221
      %v350 = vunpack.c.l.b16 %v222
      %v351 = vunpack.c.l.b16 %v223
      %v352 = vunpack.c.l.b16 %v224
      %v353 = vunpack.c.l.b16 %v225
      %v354 = vunpack.c.l.b16 %v226
      %v355 = vunpack.c.l.b16 %v227
      %v356 = vunpack.c.l.b16 %v228
      %v357 = vunpack.c.l.b16 %v229
      %v358 = vunpack.c.l.b16 %v230
      %v359 = vunpack.c.l.b16 %v231
      %v360 = vunpack.c.l.b16 %v232
      %v361 = vunpack.c.l.b16 %v233
      %v362 = vpack.c.b16 %v347, %v346
      %v363 = vpack.c.b16 %v349, %v348
      %v364 = vpack.c.b16 %v351, %v350
      %v365 = vpack.c.b16 %v353, %v352
      %v366 = vpack.c.b16 %v355, %v354
      %v367 = vpack.c.b16 %v357, %v356
      %v368 = vpack.c.b16 %v359, %v358
      %v369 = vpack.c.b16 %v361, %v360
      %378 = vmatprep.subr.bf16.mxu0 0
      %379 = vmatpush1.bf16.msra.mxu0 %v369
      %380 = vmatprep.subr.bf16.mxu0 0
      %381 = vmatpush1.bf16.msra.mxu0 %v368
      %382 = vmatprep.subr.bf16.mxu0 0
      %383 = vmatpush1.bf16.msra.mxu0 %v367
      %384 = vmatprep.subr.bf16.mxu0 0
      %385 = vmatpush1.bf16.msra.mxu0 %v366
      %386 = vmatprep.subr.bf16.mxu0 0
      %387 = vmatpush1.bf16.msra.mxu0 %v365
      %388 = vmatprep.subr.bf16.mxu0 0
      %389 = vmatpush1.bf16.msra.mxu0 %v364
      %390 = vmatprep.subr.bf16.mxu0 0
      %391 = vmatpush1.bf16.msra.mxu0 %v363
      %392 = vmatprep.subr.bf16.mxu0 0
      %393 = vmatpush1.bf16.msra.mxu0 %v362
      %394 = vmatprep.subr.bf16.mxu0 0
      %395 = vmatpush2.bf16.msra.mxu0 0
      %396 = vmatprep.subr.bf16.mxu0 0
      %397 = vmatpush2.bf16.msra.mxu0 0
      %398 = vmatprep.subr.bf16.mxu0 0
      %399 = vmatpush2.bf16.msra.mxu0 0
      %400 = vmatprep.subr.bf16.mxu0 0
      %401 = vmatpush2.bf16.msra.mxu0 0
      %402 = vmatprep.subr.bf16.mxu0 0
      %403 = vmatpush2.bf16.msra.mxu0 0
      %404 = vmatprep.subr.bf16.mxu0 0
      %405 = vmatpush2.bf16.msra.mxu0 0
      %406 = vmatprep.subr.bf16.mxu0 0
      %407 = vmatpush2.bf16.msra.mxu0 0
      %408 = vmatprep.subr.bf16.mxu0 0
      %409 = vmatpush2.bf16.msra.mxu0 0
      %410 = vmatprep.mubr.bf16.mxu0 0
      %411 = vmatmul.mubr.bf16.gmra.mxu0 %v298
      %v412 = vpop.f32.mrf.mxu0
      %v413 = vadd.f32 0.0, %v412
      %v414 = vpop.f32.mrf.mxu0
      %v415 = vpop.f32.mrf.mxu0
      %v416 = vadd.f32 0.0, %v415
      %v417 = vpop.f32.mrf.mxu0
      %418 = vmatprep.mubr.bf16.mxu0 0
      %419 = vmatmul.mubr.bf16.gmra.mxu0 %v299
      %v420 = vpop.f32.mrf.mxu0
      %v421 = vadd.f32 0.0, %v420
      %v422 = vpop.f32.mrf.mxu0
      %v423 = vpop.f32.mrf.mxu0
      %v424 = vadd.f32 0.0, %v423
      %v425 = vpop.f32.mrf.mxu0
      %426 = vmatprep.mubr.bf16.mxu0 0
      %427 = vmatmul.mubr.bf16.gmra.mxu0 %v300
      %v428 = vpop.f32.mrf.mxu0
      %v429 = vadd.f32 0.0, %v428
      %v430 = vpop.f32.mrf.mxu0
      %v431 = vpop.f32.mrf.mxu0
      %v432 = vadd.f32 0.0, %v431
      %v433 = vpop.f32.mrf.mxu0
      %434 = vmatprep.mubr.bf16.mxu0 0
      %435 = vmatmul.mubr.bf16.gmra.mxu0 %v301
      %v436 = vpop.f32.mrf.mxu0
      %v437 = vadd.f32 0.0, %v436
      %v438 = vpop.f32.mrf.mxu0
      %v439 = vpop.f32.mrf.mxu0
      %v440 = vadd.f32 0.0, %v439
      %v441 = vpop.f32.mrf.mxu0
      %442 = vmatprep.mubr.bf16.mxu0 0
      %443 = vmatmul.mubr.bf16.gmra.mxu0 %v302
      %v444 = vpop.f32.mrf.mxu0
      %v445 = vadd.f32 0.0, %v444
      %v446 = vpop.f32.mrf.mxu0
      %v447 = vpop.f32.mrf.mxu0
      %v448 = vadd.f32 0.0, %v447
      %v449 = vpop.f32.mrf.mxu0
      %450 = vmatprep.mubr.bf16.mxu0 0
      %451 = vmatmul.mubr.bf16.gmra.mxu0 %v303
      %v452 = vpop.f32.mrf.mxu0
      %v453 = vadd.f32 0.0, %v452
      %v454 = vpop.f32.mrf.mxu0
      %v455 = vpop.f32.mrf.mxu0
      %v456 = vadd.f32 0.0, %v455
      %v457 = vpop.f32.mrf.mxu0
      %458 = vmatprep.mubr.bf16.mxu0 0
      %459 = vmatmul.mubr.bf16.gmra.mxu0 %v304
      %v460 = vpop.f32.mrf.mxu0
      %v461 = vadd.f32 0.0, %v460
      %v462 = vpop.f32.mrf.mxu0
      %v463 = vpop.f32.mrf.mxu0
      %v464 = vadd.f32 0.0, %v463
      %v465 = vpop.f32.mrf.mxu0
      %466 = vmatprep.mubr.bf16.mxu0 0
      %467 = vmatmul.mubr.bf16.gmra.mxu0 %v305
      %v468 = vpop.f32.mrf.mxu0
      %v469 = vadd.f32 0.0, %v468
      %v470 = vpop.f32.mrf.mxu0
      %v471 = vpop.f32.mrf.mxu0
      %v472 = vadd.f32 0.0, %v471
      %v473 = vpop.f32.mrf.mxu0
      %474 = vmatprep.mubr.bf16.mxu0 0
      %475 = vmatmul.mubr.bf16.gmra.mxu0 %v306
      %v476 = vpop.f32.mrf.mxu0
      %v477 = vadd.f32 0.0, %v476
      %v478 = vpop.f32.mrf.mxu0
      %v479 = vpop.f32.mrf.mxu0
      %v480 = vadd.f32 0.0, %v479
      %v481 = vpop.f32.mrf.mxu0
      %482 = vmatprep.mubr.bf16.mxu0 0
      %483 = vmatmul.mubr.bf16.gmra.mxu0 %v307
      %v484 = vpop.f32.mrf.mxu0
      %v485 = vadd.f32 0.0, %v484
      %v486 = vpop.f32.mrf.mxu0
      %v487 = vpop.f32.mrf.mxu0
      %v488 = vadd.f32 0.0, %v487
      %v489 = vpop.f32.mrf.mxu0
      %490 = vmatprep.mubr.bf16.mxu0 0
      %491 = vmatmul.mubr.bf16.gmra.mxu0 %v308
      %v492 = vpop.f32.mrf.mxu0
      %v493 = vadd.f32 0.0, %v492
      %v494 = vpop.f32.mrf.mxu0
      %v495 = vpop.f32.mrf.mxu0
      %v496 = vadd.f32 0.0, %v495
      %v497 = vpop.f32.mrf.mxu0
      %498 = vmatprep.mubr.bf16.mxu0 0
      %499 = vmatmul.mubr.bf16.gmra.mxu0 %v309
      %v500 = vpop.f32.mrf.mxu0
      %v501 = vadd.f32 0.0, %v500
      %v502 = vpop.f32.mrf.mxu0
      %v503 = vpop.f32.mrf.mxu0
      %v504 = vadd.f32 0.0, %v503
      %v505 = vpop.f32.mrf.mxu0
      %506 = vmatprep.mubr.bf16.mxu0 0
      %507 = vmatmul.mubr.bf16.gmra.mxu0 %v310
      %v508 = vpop.f32.mrf.mxu0
      %v509 = vadd.f32 0.0, %v508
      %v510 = vpop.f32.mrf.mxu0
      %v511 = vpop.f32.mrf.mxu0
      %v512 = vadd.f32 0.0, %v511
      %v513 = vpop.f32.mrf.mxu0
      %514 = vmatprep.mubr.bf16.mxu0 0
      %515 = vmatmul.mubr.bf16.gmra.mxu0 %v311
      %v516 = vpop.f32.mrf.mxu0
      %v517 = vadd.f32 0.0, %v516
      %v518 = vpop.f32.mrf.mxu0
      %v519 = vpop.f32.mrf.mxu0
      %v520 = vadd.f32 0.0, %v519
      %v521 = vpop.f32.mrf.mxu0
      %522 = vmatprep.mubr.bf16.mxu0 0
      %523 = vmatmul.mubr.bf16.gmra.mxu0 %v312
      %v524 = vpop.f32.mrf.mxu0
      %v525 = vadd.f32 0.0, %v524
      %v526 = vpop.f32.mrf.mxu0
      %v527 = vpop.f32.mrf.mxu0
      %v528 = vadd.f32 0.0, %v527
      %v529 = vpop.f32.mrf.mxu0
      %530 = vmatprep.mubr.bf16.mxu0 0
      %531 = vmatmul.mubr.bf16.gmra.mxu0 %v313
      %v532 = vpop.f32.mrf.mxu0
      %v533 = vadd.f32 0.0, %v532
      %v534 = vpop.f32.mrf.mxu0
      %v535 = vpop.f32.mrf.mxu0
      %v536 = vadd.f32 0.0, %v535
      %v537 = vpop.f32.mrf.mxu0
      %538 = vdwg.mxu0
      %v539 = vpack.c.bf16 %v416, %v413
      %v540 = vpack.c.bf16 %v424, %v421
      %v541 = vpack.c.bf16 %v432, %v429
      %v542 = vpack.c.bf16 %v440, %v437
      %v543 = vpack.c.bf16 %v448, %v445
      %v544 = vpack.c.bf16 %v456, %v453
      %v545 = vpack.c.bf16 %v464, %v461
      %v546 = vpack.c.bf16 %v472, %v469
      %v547 = vpack.c.bf16 %v480, %v477
      %v548 = vpack.c.bf16 %v488, %v485
      %v549 = vpack.c.bf16 %v496, %v493
      %v550 = vpack.c.bf16 %v504, %v501
      %v551 = vpack.c.bf16 %v512, %v509
      %v552 = vpack.c.bf16 %v520, %v517
      %v553 = vpack.c.bf16 %v528, %v525
      %v554 = vpack.c.bf16 %v536, %v533
      %v571 = vunpack.c.l.b16 %v539
      %v572 = vunpack.c.h.b16 %v539
      %v573 = vunpack.c.l.b16 %v540
      %v574 = vunpack.c.h.b16 %v540
      %v575 = vunpack.c.l.b16 %v541
      %v576 = vunpack.c.h.b16 %v541
      %v577 = vunpack.c.l.b16 %v542
      %v578 = vunpack.c.h.b16 %v542
      %v579 = vunpack.c.l.b16 %v543
      %v580 = vunpack.c.h.b16 %v543
      %v581 = vunpack.c.l.b16 %v544
      %v582 = vunpack.c.h.b16 %v544
      %v583 = vunpack.c.l.b16 %v545
      %v584 = vunpack.c.h.b16 %v545
      %v585 = vunpack.c.l.b16 %v546
      %v586 = vunpack.c.h.b16 %v546
      %v587 = vunpack.c.l.b16 %v547
      %v588 = vunpack.c.h.b16 %v547
      %v589 = vunpack.c.l.b16 %v548
      %v590 = vunpack.c.h.b16 %v548
      %v591 = vunpack.c.l.b16 %v549
      %v592 = vunpack.c.h.b16 %v549
      %v593 = vunpack.c.l.b16 %v550
      %v594 = vunpack.c.h.b16 %v550
      %v595 = vunpack.c.l.b16 %v551
      %v596 = vunpack.c.h.b16 %v551
      %v597 = vunpack.c.l.b16 %v552
      %v598 = vunpack.c.h.b16 %v552
      %v599 = vunpack.c.l.b16 %v553
      %v600 = vunpack.c.h.b16 %v553
      %v601 = vunpack.c.l.b16 %v554
      %v602 = vunpack.c.h.b16 %v554
      %v603 = vpack.c.b16 %v571, %v571
      %v604 = vpack.c.b16 %v572, %v572
      %v605 = vpack.c.b16 %v573, %v573
      %v606 = vpack.c.b16 %v574, %v574
      %v607 = vpack.c.b16 %v575, %v575
      %v608 = vpack.c.b16 %v576, %v576
      %v609 = vpack.c.b16 %v577, %v577
      %v610 = vpack.c.b16 %v578, %v578
      %v611 = vpack.c.b16 %v579, %v579
      %v612 = vpack.c.b16 %v580, %v580
      %v613 = vpack.c.b16 %v581, %v581
      %v614 = vpack.c.b16 %v582, %v582
      %v615 = vpack.c.b16 %v583, %v583
      %v616 = vpack.c.b16 %v584, %v584
      %v617 = vpack.c.b16 %v585, %v585
      %v618 = vpack.c.b16 %v586, %v586
      %v619 = vpack.c.b16 %v587, %v587
      %v620 = vpack.c.b16 %v588, %v588
      %v621 = vpack.c.b16 %v589, %v589
      %v622 = vpack.c.b16 %v590, %v590
      %v623 = vpack.c.b16 %v591, %v591
      %v624 = vpack.c.b16 %v592, %v592
      %v625 = vpack.c.b16 %v593, %v593
      %v626 = vpack.c.b16 %v594, %v594
      %v627 = vpack.c.b16 %v595, %v595
      %v628 = vpack.c.b16 %v596, %v596
      %v629 = vpack.c.b16 %v597, %v597
      %v630 = vpack.c.b16 %v598, %v598
      %v631 = vpack.c.b16 %v599, %v599
      %v632 = vpack.c.b16 %v600, %v600
      %v633 = vpack.c.b16 %v601, %v601
      %v634 = vpack.c.b16 %v602, %v602
      %667 = vst [vmem:[%s179] sm:$0xf] %v603
      %668 = vst [vmem:[%s179 + $0x4] sm:$0xf] %v604
      %669 = vst [vmem:[%s179 + $0x8] sm:$0xf] %v605
      %670 = vst [vmem:[%s179 + $0xc] sm:$0xf] %v606
      %671 = vst [vmem:[%s179 + $0x10] sm:$0xf] %v607
      %672 = vst [vmem:[%s179 + $0x14] sm:$0xf] %v608
      %673 = vst [vmem:[%s179 + $0x18] sm:$0xf] %v609
      %674 = vst [vmem:[%s179 + $0x1c] sm:$0xf] %v610
      %675 = vst [vmem:[%s179 + $0x20] sm:$0xf] %v611
      %676 = vst [vmem:[%s179 + $0x24] sm:$0xf] %v612
      %677 = vst [vmem:[%s179 + $0x28] sm:$0xf] %v613
      %678 = vst [vmem:[%s179 + $0x2c] sm:$0xf] %v614
      %679 = vst [vmem:[%s179 + $0x30] sm:$0xf] %v615
      %680 = vst [vmem:[%s179 + $0x34] sm:$0xf] %v616
      %681 = vst [vmem:[%s179 + $0x38] sm:$0xf] %v617
      %682 = vst [vmem:[%s179 + $0x3c] sm:$0xf] %v618
      %683 = vst [vmem:[%s179 + $0x40] sm:$0xf] %v619
      %684 = vst [vmem:[%s179 + $0x44] sm:$0xf] %v620
      %685 = vst [vmem:[%s179 + $0x48] sm:$0xf] %v621
      %686 = vst [vmem:[%s179 + $0x4c] sm:$0xf] %v622
      %687 = vst [vmem:[%s179 + $0x50] sm:$0xf] %v623
      %688 = vst [vmem:[%s179 + $0x54] sm:$0xf] %v624
      %689 = vst [vmem:[%s179 + $0x58] sm:$0xf] %v625
      %690 = vst [vmem:[%s179 + $0x5c] sm:$0xf] %v626
      %691 = vst [vmem:[%s179 + $0x60] sm:$0xf] %v627
      %692 = vst [vmem:[%s179 + $0x64] sm:$0xf] %v628
      %693 = vst [vmem:[%s179 + $0x68] sm:$0xf] %v629
      %694 = vst [vmem:[%s179 + $0x6c] sm:$0xf] %v630
      %695 = vst [vmem:[%s179 + $0x70] sm:$0xf] %v631
      %696 = vst [vmem:[%s179 + $0x74] sm:$0xf] %v632
      %697 = vst [vmem:[%s179 + $0x78] sm:$0xf] %v633
      %698 = vst [vmem:[%s179 + $0x7c] sm:$0xf] %v634
      %v699 = vadd.f32 %v413, %v416
      %v700 = vadd.f32 %v699, %v421
      %v701 = vadd.f32 %v700, %v424
      %v702 = vadd.f32 %v701, %v429
      %v703 = vadd.f32 %v702, %v432
      %v704 = vadd.f32 %v703, %v437
      %v705 = vadd.f32 %v704, %v440
      %v706 = vadd.f32 %v705, %v445
      %v707 = vadd.f32 %v706, %v448
      %v708 = vadd.f32 %v707, %v453
      %v709 = vadd.f32 %v708, %v456
      %v710 = vadd.f32 %v709, %v461
      %v711 = vadd.f32 %v710, %v464
      %v712 = vadd.f32 %v711, %v469
      %v713 = vadd.f32 %v712, %v472
      %v714 = vadd.f32 %v713, %v477
      %v715 = vadd.f32 %v714, %v480
      %v716 = vadd.f32 %v715, %v485
      %v717 = vadd.f32 %v716, %v488
      %v718 = vadd.f32 %v717, %v493
      %v719 = vadd.f32 %v718, %v496
      %v720 = vadd.f32 %v719, %v501
      %v721 = vadd.f32 %v720, %v504
      %v722 = vadd.f32 %v721, %v509
      %v723 = vadd.f32 %v722, %v512
      %v724 = vadd.f32 %v723, %v517
      %v725 = vadd.f32 %v724, %v520
      %v726 = vadd.f32 %v725, %v525
      %v727 = vadd.f32 %v726, %v528
      %v728 = vadd.f32 %v727, %v533
      %v729 = vadd.f32 %v728, %v536
      %v730 = vrot.slane %v729, 4
      %v731 = vadd.f32 %v729, %v730
      %v732 = vrot.slane %v731, 2
      %v733 = vadd.f32 %v731, %v732
      %v734 = vrot.slane %v733, 1
      %v735 = vadd.f32 %v733, %v734
      %v736 = vmul.f32 %v413, %v413
      %v737 = vmul.f32 %v416, %v416
      %v738 = vmul.f32 %v421, %v421
      %v739 = vmul.f32 %v424, %v424
      %v740 = vmul.f32 %v429, %v429
      %v741 = vmul.f32 %v432, %v432
      %v742 = vmul.f32 %v437, %v437
      %v743 = vmul.f32 %v440, %v440
      %v744 = vmul.f32 %v445, %v445
      %v745 = vmul.f32 %v448, %v448
      %v746 = vmul.f32 %v453, %v453
      %v747 = vmul.f32 %v456, %v456
      %v748 = vmul.f32 %v461, %v461
      %v749 = vmul.f32 %v464, %v464
      %v750 = vmul.f32 %v469, %v469
      %v751 = vmul.f32 %v472, %v472
      %v752 = vmul.f32 %v477, %v477
      %v753 = vmul.f32 %v480, %v480
      %v754 = vmul.f32 %v485, %v485
      %v755 = vmul.f32 %v488, %v488
      %v756 = vmul.f32 %v493, %v493
      %v757 = vmul.f32 %v496, %v496
      %v758 = vmul.f32 %v501, %v501
      %v759 = vmul.f32 %v504, %v504
      %v760 = vmul.f32 %v509, %v509
      %v761 = vmul.f32 %v512, %v512
      %v762 = vmul.f32 %v517, %v517
      %v763 = vmul.f32 %v520, %v520
      %v764 = vmul.f32 %v525, %v525
      %v765 = vmul.f32 %v528, %v528
      %v766 = vmul.f32 %v533, %v533
      %v767 = vmul.f32 %v536, %v536
      %v768 = vadd.f32 %v736, %v737
      %v769 = vadd.f32 %v768, %v738
      %v770 = vadd.f32 %v769, %v739
      %v771 = vadd.f32 %v770, %v740
      %v772 = vadd.f32 %v771, %v741
      %v773 = vadd.f32 %v772, %v742
      %v774 = vadd.f32 %v773, %v743
      %v775 = vadd.f32 %v774, %v744
      %v776 = vadd.f32 %v775, %v745
      %v777 = vadd.f32 %v776, %v746
      %v778 = vadd.f32 %v777, %v747
      %v779 = vadd.f32 %v778, %v748
      %v780 = vadd.f32 %v779, %v749
      %v781 = vadd.f32 %v780, %v750
      %v782 = vadd.f32 %v781, %v751
      %v783 = vadd.f32 %v782, %v752
      %v784 = vadd.f32 %v783, %v753
      %v785 = vadd.f32 %v784, %v754
      %v786 = vadd.f32 %v785, %v755
      %v787 = vadd.f32 %v786, %v756
      %v788 = vadd.f32 %v787, %v757
      %v789 = vadd.f32 %v788, %v758
      %v790 = vadd.f32 %v789, %v759
      %v791 = vadd.f32 %v790, %v760
      %v792 = vadd.f32 %v791, %v761
      %v793 = vadd.f32 %v792, %v762
      %v794 = vadd.f32 %v793, %v763
      %v795 = vadd.f32 %v794, %v764
      %v796 = vadd.f32 %v795, %v765
      %v797 = vadd.f32 %v796, %v766
      %v798 = vadd.f32 %v797, %v767
      %v799 = vrot.slane %v798, 4
      %v800 = vadd.f32 %v798, %v799
      %v801 = vrot.slane %v800, 2
      %v802 = vadd.f32 %v800, %v801
      %v803 = vrot.slane %v802, 1
      %v804 = vadd.f32 %v802, %v803
      %vm805 = vcmask 1040384
      %v806 = vsel %vm805, %v735, %v804
      %807 = vst [vmem:[%s184] sm:$0x3] %v806
      %s808 = smul.u32 32, %s15
      %p809 = scmp.lt.s32.totalorder %s808, 63
      %s810 = scalar_select %p809, %s808, 63
      %s811 = smul.addr %s810, 4
      %s812 = scalar_lea.vmem %s2, %s811
      %p813 = scmp.lt.s32.totalorder %s15, 1
      %s814 = scalar_select %p813, %s15, 1
      %s815 = smul.addr %s814, 2
      %s816 = scalar_lea.vmem %s3, %s815
      // Predicated region
      $region29: #{discriminator_forward.6} parent=27 // pred_check
        %p817 = pneg %p80
      $region30: #{discriminator_forward.6} parent=27 // pred_check_branch
        %819 = sbr.rel (%p817) target = $region32
      $region31: #{discriminator_forward.6} parent=27 // pred_region
        %s820 = smul.u32 32, %s15
      $region32: #{discriminator_forward.6} parent=27 // pred_fallthru
        _
      // Predicated region
      $region33: #{discriminator_forward.6} parent=27 // pred_check
        %p821 = pneg %p106
      $region34: #{discriminator_forward.6} parent=27 // pred_check_branch
        %823 = sbr.rel (%p821) target = $region36
      $region35: #{discriminator_forward.6} parent=27 // pred_region
        _
      $region36: #{discriminator_forward.6} parent=27 // pred_fallthru
        _
    $region28: #{discriminator_forward.6} parent=5 // pred_fallthru
      _
    %p824 = scmp.le.s32.totalorder 2, %s10
    // Predicated region
    $region37: #{discriminator_forward.6} parent=5 // pred_check
      %p825 = pneg %p824
    $region38: #{discriminator_forward.6} parent=5 // pred_check_branch
      %827 = sbr.rel (%p825) target = $region40
    $region39: #{discriminator_forward.6} parent=5 // pred_region
      %s828 = ssub.s32 %s10, 2
      // Predicated region
      $region41: #{discriminator_forward.6} parent=39 // pred_check
        %p829 = pneg %p86
      $region42: #{discriminator_forward.6} parent=39 // pred_check_branch
        %831 = sbr.rel (%p829) target = $region44
      $region43: #{discriminator_forward.6} parent=39 // pred_region
        %s832 = smul.u32 32, %s16
        %p833 = scmp.lt.s32.totalorder %s832, 63
        %s834 = scalar_select %p833, %s832, 63
        %s835 = smul.addr %s834, 4
        %s836 = scalar_lea.vmem %s2, %s835
      $region44: #{discriminator_forward.6} parent=39 // pred_fallthru
        _
      // Predicated region
      $region45: #{discriminator_forward.6} parent=39 // pred_check
        %p837 = pneg %p112
      $region46: #{discriminator_forward.6} parent=39 // pred_check_branch
        %839 = sbr.rel (%p837) target = $region48
      $region47: #{discriminator_forward.6} parent=39 // pred_region
        %p840 = scmp.lt.s32.totalorder %s16, 1
        %s841 = scalar_select %p840, %s16, 1
        %s842 = smul.addr %s841, 2
        %s843 = scalar_lea.vmem %s3, %s842
      $region48: #{discriminator_forward.6} parent=39 // pred_fallthru
        _
    $region40: #{discriminator_forward.6} parent=5 // pred_fallthru
      _
  $region6: #{discriminator_forward.6} parent=0 // loop_footer
    %s14 = sadd.s32 1, %s10
  $region7: #{discriminator_forward.6} parent=0 // loop_footer_branch
    %9 = sbr.rel target = $region3
  $region8: #{discriminator_forward.6} parent=0 // loop_exit
    _

// kernel: discriminator_forward.7
$region0: #{discriminator_forward.7}
  #allocation0 [shape = 'u32[]', space=smem, size = 0x4, offset = 0x4, fixed_abs, tag = 'smem constant byte address 0x4 - core index']
  #allocation1 [shape = 'u32[144,128]{1,0:T(1,128)}', space=vmem, size = 0x12000, scoped, tag = 'internal scratch']
  %s0 = inlined_call_operand.vmem [shape: bf16[128,256], index: 0, kind: input, shape index: {}]
  %s1 = inlined_call_operand.vmem [shape: bf16[256,128], index: 1, kind: input, shape index: {}]
  %s2 = inlined_call_operand.vmem [shape: bf16[128,128], index: 2, kind: output, shape index: {0}]
  %s3 = inlined_call_operand.vmem [shape: f32[1,2,128], index: 3, kind: output, shape index: {1}]
  %4 = xla_tuple %s2, %s3
  %s5 = sld [smem:[#allocation0]]
  $region26: #{discriminator_forward.7} parent=0
    _
  %s7 = ssub.s32 1, %s5
  %s8 = scalar_select 0, %s7, %s5
  // Predicated region
  $region2: #{discriminator_forward.7} parent=0 // pred_check
    _
  $region3: #{discriminator_forward.7} parent=0 // pred_check_branch
    %10 = sbr.rel (0) target = $region5
  $region4: #{discriminator_forward.7} parent=0 // pred_region
    _
  $region5: #{discriminator_forward.7} parent=0 // pred_fallthru
    _
  // Predicated region
  $region6: #{discriminator_forward.7} parent=0 // pred_check
    _
  $region7: #{discriminator_forward.7} parent=0 // pred_check_branch
    %12 = sbr.rel (0) target = $region9
  $region8: #{discriminator_forward.7} parent=0 // pred_region
    _
  $region9: #{discriminator_forward.7} parent=0 // pred_fallthru
    _
  %v14 = vld [vmem:[%s0] sm:$0xff]
  %v15 = vld [vmem:[%s0 + $0x8] sm:$0xff]
  %v16 = vld [vmem:[%s0 + $0x10] sm:$0xff]
  %v17 = vld [vmem:[%s0 + $0x18] sm:$0xff]
  %v18 = vld [vmem:[%s0 + $0x20] sm:$0xff]
  %v19 = vld [vmem:[%s0 + $0x28] sm:$0xff]
  %v20 = vld [vmem:[%s0 + $0x30] sm:$0xff]
  %v21 = vld [vmem:[%s0 + $0x38] sm:$0xff]
  %v22 = vld [vmem:[%s0 + $0x40] sm:$0xff]
  %v23 = vld [vmem:[%s0 + $0x48] sm:$0xff]
  %v24 = vld [vmem:[%s0 + $0x50] sm:$0xff]
  %v25 = vld [vmem:[%s0 + $0x58] sm:$0xff]
  %v26 = vld [vmem:[%s0 + $0x60] sm:$0xff]
  %v27 = vld [vmem:[%s0 + $0x68] sm:$0xff]
  %v28 = vld [vmem:[%s0 + $0x70] sm:$0xff]
  %v29 = vld [vmem:[%s0 + $0x78] sm:$0xff]
  %v30 = vld [vmem:[%s1] sm:$0xf]
  %v31 = vld [vmem:[%s1 + $0x4] sm:$0xf]
  %v32 = vld [vmem:[%s1 + $0x8] sm:$0xf]
  %v33 = vld [vmem:[%s1 + $0xc] sm:$0xf]
  %v34 = vld [vmem:[%s1 + $0x10] sm:$0xf]
  %v35 = vld [vmem:[%s1 + $0x14] sm:$0xf]
  %v36 = vld [vmem:[%s1 + $0x18] sm:$0xf]
  %v37 = vld [vmem:[%s1 + $0x1c] sm:$0xf]
  %v38 = vld [vmem:[%s1 + $0x20] sm:$0xf]
  %v39 = vld [vmem:[%s1 + $0x24] sm:$0xf]
  %v40 = vld [vmem:[%s1 + $0x28] sm:$0xf]
  %v41 = vld [vmem:[%s1 + $0x2c] sm:$0xf]
  %v42 = vld [vmem:[%s1 + $0x30] sm:$0xf]
  %v43 = vld [vmem:[%s1 + $0x34] sm:$0xf]
  %v44 = vld [vmem:[%s1 + $0x38] sm:$0xf]
  %v45 = vld [vmem:[%s1 + $0x3c] sm:$0xf]
  %v46 = vld [vmem:[%s1 + $0x40] sm:$0xf]
  %v47 = vld [vmem:[%s1 + $0x44] sm:$0xf]
  %v48 = vld [vmem:[%s1 + $0x48] sm:$0xf]
  %v49 = vld [vmem:[%s1 + $0x4c] sm:$0xf]
  %v50 = vld [vmem:[%s1 + $0x50] sm:$0xf]
  %v51 = vld [vmem:[%s1 + $0x54] sm:$0xf]
  %v52 = vld [vmem:[%s1 + $0x58] sm:$0xf]
  %v53 = vld [vmem:[%s1 + $0x5c] sm:$0xf]
  %v54 = vld [vmem:[%s1 + $0x60] sm:$0xf]
  %v55 = vld [vmem:[%s1 + $0x64] sm:$0xf]
  %v56 = vld [vmem:[%s1 + $0x68] sm:$0xf]
  %v57 = vld [vmem:[%s1 + $0x6c] sm:$0xf]
  %v58 = vld [vmem:[%s1 + $0x70] sm:$0xf]
  %v59 = vld [vmem:[%s1 + $0x74] sm:$0xf]
  %v60 = vld [vmem:[%s1 + $0x78] sm:$0xf]
  %v61 = vld [vmem:[%s1 + $0x7c] sm:$0xf]
  %v78 = vunpack.c.l.b16 %v14
  %v79 = vunpack.c.h.b16 %v14
  %v80 = vunpack.c.l.b16 %v15
  %v81 = vunpack.c.h.b16 %v15
  %v82 = vunpack.c.l.b16 %v16
  %v83 = vunpack.c.h.b16 %v16
  %v84 = vunpack.c.l.b16 %v17
  %v85 = vunpack.c.h.b16 %v17
  %v86 = vunpack.c.l.b16 %v18
  %v87 = vunpack.c.h.b16 %v18
  %v88 = vunpack.c.l.b16 %v19
  %v89 = vunpack.c.h.b16 %v19
  %v90 = vunpack.c.l.b16 %v20
  %v91 = vunpack.c.h.b16 %v20
  %v92 = vunpack.c.l.b16 %v21
  %v93 = vunpack.c.h.b16 %v21
  %v94 = vunpack.c.l.b16 %v22
  %v95 = vunpack.c.h.b16 %v22
  %v96 = vunpack.c.l.b16 %v23
  %v97 = vunpack.c.h.b16 %v23
  %v98 = vunpack.c.l.b16 %v24
  %v99 = vunpack.c.h.b16 %v24
  %v100 = vunpack.c.l.b16 %v25
  %v101 = vunpack.c.h.b16 %v25
  %v102 = vunpack.c.l.b16 %v26
  %v103 = vunpack.c.h.b16 %v26
  %v104 = vunpack.c.l.b16 %v27
  %v105 = vunpack.c.h.b16 %v27
  %v106 = vunpack.c.l.b16 %v28
  %v107 = vunpack.c.h.b16 %v28
  %v108 = vunpack.c.l.b16 %v29
  %v109 = vunpack.c.h.b16 %v29
  %v110 = vpack.c.b16 %v80, %v78
  %v111 = vpack.c.b16 %v81, %v79
  %v112 = vpack.c.b16 %v84, %v82
  %v113 = vpack.c.b16 %v85, %v83
  %v114 = vpack.c.b16 %v88, %v86
  %v115 = vpack.c.b16 %v89, %v87
  %v116 = vpack.c.b16 %v92, %v90
  %v117 = vpack.c.b16 %v93, %v91
  %v118 = vpack.c.b16 %v96, %v94
  %v119 = vpack.c.b16 %v97, %v95
  %v120 = vpack.c.b16 %v100, %v98
  %v121 = vpack.c.b16 %v101, %v99
  %v122 = vpack.c.b16 %v104, %v102
  %v123 = vpack.c.b16 %v105, %v103
  %v124 = vpack.c.b16 %v108, %v106
  %v125 = vpack.c.b16 %v109, %v107
  %v174 = vunpack.c.l.b16 %v30
  %v175 = vunpack.c.l.b16 %v31
  %v176 = vunpack.c.l.b16 %v32
  %v177 = vunpack.c.l.b16 %v33
  %v178 = vunpack.c.l.b16 %v34
  %v179 = vunpack.c.l.b16 %v35
  %v180 = vunpack.c.l.b16 %v36
  %v181 = vunpack.c.l.b16 %v37
  %v182 = vunpack.c.l.b16 %v38
  %v183 = vunpack.c.l.b16 %v39
  %v184 = vunpack.c.l.b16 %v40
  %v185 = vunpack.c.l.b16 %v41
  %v186 = vunpack.c.l.b16 %v42
  %v187 = vunpack.c.l.b16 %v43
  %v188 = vunpack.c.l.b16 %v44
  %v189 = vunpack.c.l.b16 %v45
  %v190 = vunpack.c.l.b16 %v46
  %v191 = vunpack.c.l.b16 %v47
  %v192 = vunpack.c.l.b16 %v48
  %v193 = vunpack.c.l.b16 %v49
  %v194 = vunpack.c.l.b16 %v50
  %v195 = vunpack.c.l.b16 %v51
  %v196 = vunpack.c.l.b16 %v52
  %v197 = vunpack.c.l.b16 %v53
  %v198 = vunpack.c.l.b16 %v54
  %v199 = vunpack.c.l.b16 %v55
  %v200 = vunpack.c.l.b16 %v56
  %v201 = vunpack.c.l.b16 %v57
  %v202 = vunpack.c.l.b16 %v58
  %v203 = vunpack.c.l.b16 %v59
  %v204 = vunpack.c.l.b16 %v60
  %v205 = vunpack.c.l.b16 %v61
  %v206 = vpack.c.b16 %v175, %v174
  %v207 = vpack.c.b16 %v177, %v176
  %v208 = vpack.c.b16 %v179, %v178
  %v209 = vpack.c.b16 %v181, %v180
  %v210 = vpack.c.b16 %v183, %v182
  %v211 = vpack.c.b16 %v185, %v184
  %v212 = vpack.c.b16 %v187, %v186
  %v213 = vpack.c.b16 %v189, %v188
  %v214 = vpack.c.b16 %v191, %v190
  %v215 = vpack.c.b16 %v193, %v192
  %v216 = vpack.c.b16 %v195, %v194
  %v217 = vpack.c.b16 %v197, %v196
  %v218 = vpack.c.b16 %v199, %v198
  %v219 = vpack.c.b16 %v201, %v200
  %v220 = vpack.c.b16 %v203, %v202
  %v221 = vpack.c.b16 %v205, %v204
  %238 = vmatprep.subr.bf16.mxu0 0
  %239 = vmatpush1.bf16.msra.mxu0 %v213
  %240 = vmatprep.subr.bf16.mxu0 0
  %241 = vmatpush1.bf16.msra.mxu0 %v212
  %242 = vmatprep.subr.bf16.mxu0 0
  %243 = vmatpush1.bf16.msra.mxu0 %v211
  %244 = vmatprep.subr.bf16.mxu0 0
  %245 = vmatpush1.bf16.msra.mxu0 %v210
  %246 = vmatprep.subr.bf16.mxu0 0
  %247 = vmatpush1.bf16.msra.mxu0 %v209
  %248 = vmatprep.subr.bf16.mxu0 0
  %249 = vmatpush1.bf16.msra.mxu0 %v208
  %250 = vmatprep.subr.bf16.mxu0 0
  %251 = vmatpush1.bf16.msra.mxu0 %v207
  %252 = vmatprep.subr.bf16.mxu0 0
  %253 = vmatpush1.bf16.msra.mxu0 %v206
  %254 = vmatprep.subr.bf16.mxu0 0
  %255 = vmatpush2.bf16.msra.mxu0 %v221
  %256 = vmatprep.subr.bf16.mxu0 0
  %257 = vmatpush2.bf16.msra.mxu0 %v220
  %258 = vmatprep.subr.bf16.mxu0 0
  %259 = vmatpush2.bf16.msra.mxu0 %v219
  %260 = vmatprep.subr.bf16.mxu0 0
  %261 = vmatpush2.bf16.msra.mxu0 %v218
  %262 = vmatprep.subr.bf16.mxu0 0
  %263 = vmatpush2.bf16.msra.mxu0 %v217
  %264 = vmatprep.subr.bf16.mxu0 0
  %265 = vmatpush2.bf16.msra.mxu0 %v216
  %266 = vmatprep.subr.bf16.mxu0 0
  %267 = vmatpush2.bf16.msra.mxu0 %v215
  %268 = vmatprep.subr.bf16.mxu0 0
  %269 = vmatpush2.bf16.msra.mxu0 %v214
  %270 = vmatprep.mubr.bf16.mxu0 %v111
  %271 = vmatmul.mubr.bf16.gmra.mxu0 %v110
  %v272 = vpop.f32.mrf.mxu0
  %v273 = vadd.f32 0.0, %v272
  %v274 = vpop.f32.mrf.mxu0
  %v275 = vpop.f32.mrf.mxu0
  %v276 = vadd.f32 0.0, %v275
  %v277 = vpop.f32.mrf.mxu0
  %278 = vmatprep.mubr.bf16.mxu0 %v113
  %279 = vmatmul.mubr.bf16.gmra.mxu0 %v112
  %v280 = vpop.f32.mrf.mxu0
  %v281 = vadd.f32 0.0, %v280
  %v282 = vpop.f32.mrf.mxu0
  %v283 = vpop.f32.mrf.mxu0
  %v284 = vadd.f32 0.0, %v283
  %v285 = vpop.f32.mrf.mxu0
  %286 = vmatprep.mubr.bf16.mxu0 %v115
  %287 = vmatmul.mubr.bf16.gmra.mxu0 %v114
  %v288 = vpop.f32.mrf.mxu0
  %v289 = vadd.f32 0.0, %v288
  %v290 = vpop.f32.mrf.mxu0
  %v291 = vpop.f32.mrf.mxu0
  %v292 = vadd.f32 0.0, %v291
  %v293 = vpop.f32.mrf.mxu0
  %294 = vmatprep.mubr.bf16.mxu0 %v117
  %295 = vmatmul.mubr.bf16.gmra.mxu0 %v116
  %v296 = vpop.f32.mrf.mxu0
  %v297 = vadd.f32 0.0, %v296
  %v298 = vpop.f32.mrf.mxu0
  %v299 = vpop.f32.mrf.mxu0
  %v300 = vadd.f32 0.0, %v299
  %v301 = vpop.f32.mrf.mxu0
  %302 = vmatprep.mubr.bf16.mxu0 %v119
  %303 = vmatmul.mubr.bf16.gmra.mxu0 %v118
  %v304 = vpop.f32.mrf.mxu0
  %v305 = vadd.f32 0.0, %v304
  %v306 = vpop.f32.mrf.mxu0
  %v307 = vpop.f32.mrf.mxu0
  %v308 = vadd.f32 0.0, %v307
  %v309 = vpop.f32.mrf.mxu0
  %310 = vmatprep.mubr.bf16.mxu0 %v121
  %311 = vmatmul.mubr.bf16.gmra.mxu0 %v120
  %v312 = vpop.f32.mrf.mxu0
  %v313 = vadd.f32 0.0, %v312
  %v314 = vpop.f32.mrf.mxu0
  %v315 = vpop.f32.mrf.mxu0
  %v316 = vadd.f32 0.0, %v315
  %v317 = vpop.f32.mrf.mxu0
  %318 = vmatprep.mubr.bf16.mxu0 %v123
  %319 = vmatmul.mubr.bf16.gmra.mxu0 %v122
  %v320 = vpop.f32.mrf.mxu0
  %v321 = vadd.f32 0.0, %v320
  %v322 = vpop.f32.mrf.mxu0
  %v323 = vpop.f32.mrf.mxu0
  %v324 = vadd.f32 0.0, %v323
  %v325 = vpop.f32.mrf.mxu0
  %326 = vmatprep.mubr.bf16.mxu0 %v125
  %327 = vmatmul.mubr.bf16.gmra.mxu0 %v124
  %v328 = vpop.f32.mrf.mxu0
  %v329 = vadd.f32 0.0, %v328
  %v330 = vpop.f32.mrf.mxu0
  %v331 = vpop.f32.mrf.mxu0
  %v332 = vadd.f32 0.0, %v331
  %v333 = vpop.f32.mrf.mxu0
  %334 = vdwg.mxu0
  %v335 = vpack.c.bf16 %v276, %v273
  %v336 = vpack.c.bf16 %v284, %v281
  %v337 = vpack.c.bf16 %v292, %v289
  %v338 = vpack.c.bf16 %v300, %v297
  %v339 = vpack.c.bf16 %v308, %v305
  %v340 = vpack.c.bf16 %v316, %v313
  %v341 = vpack.c.bf16 %v324, %v321
  %v342 = vpack.c.bf16 %v332, %v329
  %v351 = vunpack.c.l.b16 %v335
  %v352 = vunpack.c.h.b16 %v335
  %v353 = vunpack.c.l.b16 %v336
  %v354 = vunpack.c.h.b16 %v336
  %v355 = vunpack.c.l.b16 %v337
  %v356 = vunpack.c.h.b16 %v337
  %v357 = vunpack.c.l.b16 %v338
  %v358 = vunpack.c.h.b16 %v338
  %v359 = vunpack.c.l.b16 %v339
  %v360 = vunpack.c.h.b16 %v339
  %v361 = vunpack.c.l.b16 %v340
  %v362 = vunpack.c.h.b16 %v340
  %v363 = vunpack.c.l.b16 %v341
  %v364 = vunpack.c.h.b16 %v341
  %v365 = vunpack.c.l.b16 %v342
  %v366 = vunpack.c.h.b16 %v342
  %v367 = vpack.c.b16 %v351, %v351
  %v368 = vpack.c.b16 %v352, %v352
  %v369 = vpack.c.b16 %v353, %v353
  %v370 = vpack.c.b16 %v354, %v354
  %v371 = vpack.c.b16 %v355, %v355
  %v372 = vpack.c.b16 %v356, %v356
  %v373 = vpack.c.b16 %v357, %v357
  %v374 = vpack.c.b16 %v358, %v358
  %v375 = vpack.c.b16 %v359, %v359
  %v376 = vpack.c.b16 %v360, %v360
  %v377 = vpack.c.b16 %v361, %v361
  %v378 = vpack.c.b16 %v362, %v362
  %v379 = vpack.c.b16 %v363, %v363
  %v380 = vpack.c.b16 %v364, %v364
  %v381 = vpack.c.b16 %v365, %v365
  %v382 = vpack.c.b16 %v366, %v366
  %399 = vst [vmem:[%s2] sm:$0xf] %v367
  %400 = vst [vmem:[%s2 + $0x4] sm:$0xf] %v368
  %401 = vst [vmem:[%s2 + $0x8] sm:$0xf] %v369
  %402 = vst [vmem:[%s2 + $0xc] sm:$0xf] %v370
  %403 = vst [vmem:[%s2 + $0x10] sm:$0xf] %v371
  %404 = vst [vmem:[%s2 + $0x14] sm:$0xf] %v372
  %405 = vst [vmem:[%s2 + $0x18] sm:$0xf] %v373
  %406 = vst [vmem:[%s2 + $0x1c] sm:$0xf] %v374
  %407 = vst [vmem:[%s2 + $0x20] sm:$0xf] %v375
  %408 = vst [vmem:[%s2 + $0x24] sm:$0xf] %v376
  %409 = vst [vmem:[%s2 + $0x28] sm:$0xf] %v377
  %410 = vst [vmem:[%s2 + $0x2c] sm:$0xf] %v378
  %411 = vst [vmem:[%s2 + $0x30] sm:$0xf] %v379
  %412 = vst [vmem:[%s2 + $0x34] sm:$0xf] %v380
  %413 = vst [vmem:[%s2 + $0x38] sm:$0xf] %v381
  %414 = vst [vmem:[%s2 + $0x3c] sm:$0xf] %v382
  %v415 = vadd.f32 %v273, %v276
  %v416 = vadd.f32 %v415, %v281
  %v417 = vadd.f32 %v416, %v284
  %v418 = vadd.f32 %v417, %v289
  %v419 = vadd.f32 %v418, %v292
  %v420 = vadd.f32 %v419, %v297
  %v421 = vadd.f32 %v420, %v300
  %v422 = vadd.f32 %v421, %v305
  %v423 = vadd.f32 %v422, %v308
  %v424 = vadd.f32 %v423, %v313
  %v425 = vadd.f32 %v424, %v316
  %v426 = vadd.f32 %v425, %v321
  %v427 = vadd.f32 %v426, %v324
  %v428 = vadd.f32 %v427, %v329
  %v429 = vadd.f32 %v428, %v332
  %v430 = vrot.slane %v429, 4
  %v431 = vadd.f32 %v429, %v430
  %v432 = vrot.slane %v431, 2
  %v433 = vadd.f32 %v431, %v432
  %v434 = vrot.slane %v433, 1
  %v435 = vadd.f32 %v433, %v434
  %v436 = vmul.f32 %v273, %v273
  %v437 = vmul.f32 %v276, %v276
  %v438 = vmul.f32 %v281, %v281
  %v439 = vmul.f32 %v284, %v284
  %v440 = vmul.f32 %v289, %v289
  %v441 = vmul.f32 %v292, %v292
  %v442 = vmul.f32 %v297, %v297
  %v443 = vmul.f32 %v300, %v300
  %v444 = vmul.f32 %v305, %v305
  %v445 = vmul.f32 %v308, %v308
  %v446 = vmul.f32 %v313, %v313
  %v447 = vmul.f32 %v316, %v316
  %v448 = vmul.f32 %v321, %v321
  %v449 = vmul.f32 %v324, %v324
  %v450 = vmul.f32 %v329, %v329
  %v451 = vmul.f32 %v332, %v332
  %v452 = vadd.f32 %v436, %v437
  %v453 = vadd.f32 %v452, %v438
  %v454 = vadd.f32 %v453, %v439
  %v455 = vadd.f32 %v454, %v440
  %v456 = vadd.f32 %v455, %v441
  %v457 = vadd.f32 %v456, %v442
  %v458 = vadd.f32 %v457, %v443
  %v459 = vadd.f32 %v458, %v444
  %v460 = vadd.f32 %v459, %v445
  %v461 = vadd.f32 %v460, %v446
  %v462 = vadd.f32 %v461, %v447
  %v463 = vadd.f32 %v462, %v448
  %v464 = vadd.f32 %v463, %v449
  %v465 = vadd.f32 %v464, %v450
  %v466 = vadd.f32 %v465, %v451
  %v467 = vrot.slane %v466, 4
  %v468 = vadd.f32 %v466, %v467
  %v469 = vrot.slane %v468, 2
  %v470 = vadd.f32 %v468, %v469
  %v471 = vrot.slane %v470, 1
  %v472 = vadd.f32 %v470, %v471
  %vm473 = vcmask 1040384
  %v474 = vsel %vm473, %v435, %v472
  %475 = vst [vmem:[%s3] sm:$0x3] %v474
  // Predicated region
  $region10: #{discriminator_forward.7} parent=0 // pred_check
    _
  $region11: #{discriminator_forward.7} parent=0 // pred_check_branch
    %477 = sbr.rel (0) target = $region13
  $region12: #{discriminator_forward.7} parent=0 // pred_region
    _
  $region13: #{discriminator_forward.7} parent=0 // pred_fallthru
    _
  // Predicated region
  $region14: #{discriminator_forward.7} parent=0 // pred_check
    _
  $region15: #{discriminator_forward.7} parent=0 // pred_check_branch
    %479 = sbr.rel (0) target = $region17
  $region16: #{discriminator_forward.7} parent=0 // pred_region
    _
  $region17: #{discriminator_forward.7} parent=0 // pred_fallthru
    _
  // Predicated region
  $region18: #{discriminator_forward.7} parent=0 // pred_check
    _
  $region19: #{discriminator_forward.7} parent=0 // pred_check_branch
    %481 = sbr.rel (0) target = $region21
  $region20: #{discriminator_forward.7} parent=0 // pred_region
    _
  $region21: #{discriminator_forward.7} parent=0 // pred_fallthru
    _
  // Predicated region
  $region22: #{discriminator_forward.7} parent=0 // pred_check
    _
  $region23: #{discriminator_forward.7} parent=0 // pred_check_branch
    %483 = sbr.rel (0) target = $region25
  $region24: #{discriminator_forward.7} parent=0 // pred_region
    _
  $region25: #{discriminator_forward.7} parent=0 // pred_fallthru
    _

// kernel: tile.13
$region0: #{tile.13}
  #allocation0 [shape = 's32[1]{0}', space=sflag, size = 0x4, scoped, tag = 'scoped memory for tile.13']
  %s0 = inlined_call_operand.vmem [shape: f32[64], index: 0, kind: input, shape index: {}]
  %s1 = inlined_call_operand.vmem [shape: f32[16,64], index: 1, kind: output, shape index: {}]
  // Predicated region
  $region2: #{tile.13} parent=0 // pred_check
    _
  $region3: #{tile.13} parent=0 // pred_check_branch
    %3 = sbr.rel (0) target = $region5
  $region4: #{tile.13} parent=0 // pred_region
    _
  $region5: #{tile.13} parent=0 // pred_fallthru
    _
  %v4 = vld [vmem:[%s0] ss:$0 sm:$0xff]
  %5 = vst [vmem:[%s1] sm:$0xff] %v4
  %s6 = scalar_lea.vmem %s1, 8
  %7 = vst [vmem:[%s6] sm:$0xff] %v4

// kernel: tile.14
$region0: #{tile.14}
  %s0 = inlined_call_operand.vmem [shape: f32[16,64], index: 0, kind: input, shape index: {}]
  %s1 = inlined_call_operand.vmem [shape: f32[1,1024], index: 1, kind: output, shape index: {}]
  $region1: #{tile.14} parent=0
    #allocation0 [shape = 'u8[32768]{0}', space=vmem, size = 0x8000, scoped, tag = 'scoped mem for output reshape']
    %v2 = vld [vmem:[%s0] ss:$2 sm:$0xff]
    %vm3 = vcmask 523264
    %4 = vst.msk [vmem:[#allocation0] ss:$8 sm:$0xf] %vm3, %v2
    %5 = vst.msk [vmem:[#allocation0] ss:$8 sm:$0xf0] %vm3, %v2
    %s6 = scalar_lea.vmem %s0, 1
    %v7 = vld [vmem:[%s6] ss:$2 sm:$0xff]
    %8 = vrot.lane.b32.xlu0 %v7, 64
    %v9 = vpop.permute.xlu0 %8
    %vm10 = vcmask 1048064
    %11 = vst.msk [vmem:[#allocation0] ss:$8 sm:$0xf] %vm10, %v9
    %12 = vst.msk [vmem:[#allocation0] ss:$8 sm:$0xf0] %vm10, %v9
    %s14 = sshll.u32 1, 1
    %s15 = ssub.s32 %s14, 1
    %v17 = vld [vmem:[#allocation0] sm:%s15]
    %s18 = sshll.u32 1, 1
    %s19 = ssub.s32 %s18, 1
    %20 = vst [vmem:[%s1] sm:%s19] %v17
    %s21 = scalar_lea.vmem [#allocation0], 8
    %v22 = vld [vmem:[%s21] sm:%s15]
    %s23 = sshll.u32 1, 1
    %s24 = ssub.s32 %s23, 1
    %s25 = scalar_lea.vmem %s1, 1
    %26 = vst [vmem:[%s25] sm:%s24] %v22
    %s27 = scalar_lea.vmem [#allocation0], 16
    %v28 = vld [vmem:[%s27] sm:%s15]
    %s29 = sshll.u32 1, 1
    %s30 = ssub.s32 %s29, 1
    %s31 = smul.addr 1, 2
    %s32 = scalar_lea.vmem %s1, %s31
    %33 = vst [vmem:[%s32] sm:%s30] %v28
    %s34 = scalar_lea.vmem [#allocation0], 24
    %v35 = vld [vmem:[%s34] sm:%s15]
    %s36 = sshll.u32 1, 1
    %s37 = ssub.s32 %s36, 1
    %s38 = smul.addr 1, 3
    %s39 = scalar_lea.vmem %s1, %s38
    %40 = vst [vmem:[%s39] sm:%s37] %v35
    %s41 = scalar_lea.vmem [#allocation0], 32
    %v42 = vld [vmem:[%s41] sm:%s15]
    %s43 = sshll.u32 1, 1
    %s44 = ssub.s32 %s43, 1
    %s45 = smul.addr 1, 4
    %s46 = scalar_lea.vmem %s1, %s45
    %47 = vst [vmem:[%s46] sm:%s44] %v42
    %s48 = scalar_lea.vmem [#allocation0], 40
    %v49 = vld [vmem:[%s48] sm:%s15]
    %s50 = sshll.u32 1, 1
    %s51 = ssub.s32 %s50, 1
    %s52 = smul.addr 1, 5
    %s53 = scalar_lea.vmem %s1, %s52
    %54 = vst [vmem:[%s53] sm:%s51] %v49
    %s55 = scalar_lea.vmem [#allocation0], 48
    %v56 = vld [vmem:[%s55] sm:%s15]
    %s57 = sshll.u32 1, 1
    %s58 = ssub.s32 %s57, 1
    %s59 = smul.addr 1, 6
    %s60 = scalar_lea.vmem %s1, %s59
    %61 = vst [vmem:[%s60] sm:%s58] %v56
    %s62 = scalar_lea.vmem [#allocation0], 56
    %v63 = vld [vmem:[%s62] sm:%s15]
    %s64 = sshll.u32 1, 1
    %s65 = ssub.s32 %s64, 1
    %s66 = smul.addr 1, 7
    %s67 = scalar_lea.vmem %s1, %s66
    %68 = vst [vmem:[%s67] sm:%s65] %v63

// kernel: discriminator_forward.9
$region0: #{discriminator_forward.9}
  #allocation0 [shape = 'u32[]', space=smem, size = 0x4, offset = 0x4, fixed_abs, tag = 'smem constant byte address 0x4 - core index']
  #allocation1 [shape = 'u32[144,128]{1,0:T(1,128)}', space=vmem, size = 0x12000, scoped, tag = 'internal scratch']
  %s0 = inlined_call_operand.vmem [shape: bf16[8,1024], index: 0, kind: input, shape index: {}]
  %s1 = inlined_call_operand.vmem [shape: f32[1,1024], index: 1, kind: input, shape index: {}]
  %s2 = inlined_call_operand.vmem [shape: f32[1,1024], index: 2, kind: input, shape index: {}]
  %s3 = inlined_call_operand.vmem [shape: f32[1,1024], index: 3, kind: input, shape index: {}]
  %s4 = inlined_call_operand.vmem [shape: f32[8,1], index: 4, kind: output, shape index: {}]
  %s5 = sld [smem:[#allocation0]]
  $region26: #{discriminator_forward.9} parent=0
    _
  %s7 = ssub.s32 1, %s5
  %s8 = scalar_select 0, %s7, %s5
  // Predicated region
  $region2: #{discriminator_forward.9} parent=0 // pred_check
    _
  $region3: #{discriminator_forward.9} parent=0 // pred_check_branch
    %10 = sbr.rel (0) target = $region5
  $region4: #{discriminator_forward.9} parent=0 // pred_region
    _
  $region5: #{discriminator_forward.9} parent=0 // pred_fallthru
    _
  // Predicated region
  $region6: #{discriminator_forward.9} parent=0 // pred_check
    _
  $region7: #{discriminator_forward.9} parent=0 // pred_check_branch
    %12 = sbr.rel (0) target = $region9
  $region8: #{discriminator_forward.9} parent=0 // pred_region
    _
  $region9: #{discriminator_forward.9} parent=0 // pred_fallthru
    _
  // Predicated region
  $region10: #{discriminator_forward.9} parent=0 // pred_check
    _
  $region11: #{discriminator_forward.9} parent=0 // pred_check_branch
    %14 = sbr.rel (0) target = $region13
  $region12: #{discriminator_forward.9} parent=0 // pred_region
    _
  $region13: #{discriminator_forward.9} parent=0 // pred_fallthru
    _
  // Predicated region
  $region14: #{discriminator_forward.9} parent=0 // pred_check
    _
  $region15: #{discriminator_forward.9} parent=0 // pred_check_branch
    %16 = sbr.rel (0) target = $region17
  $region16: #{discriminator_forward.9} parent=0 // pred_region
    _
  $region17: #{discriminator_forward.9} parent=0 // pred_fallthru
    _
  %v17 = vld [vmem:[%s0] sm:$0xff]
  %v18 = vld [vmem:[%s0 + $0x8] sm:$0xff]
  %v19 = vld [vmem:[%s0 + $0x10] sm:$0xff]
  %v20 = vld [vmem:[%s0 + $0x18] sm:$0xff]
  %v21 = vunpack.c.l.bf16 %v17
  %v22 = vunpack.c.h.bf16 %v17
  %v23 = vunpack.c.l.bf16 %v18
  %v24 = vunpack.c.h.bf16 %v18
  %v25 = vunpack.c.l.bf16 %v19
  %v26 = vunpack.c.h.bf16 %v19
  %v27 = vunpack.c.l.bf16 %v20
  %v28 = vunpack.c.h.bf16 %v20
  %v29 = vld [vmem:[%s2] sm:$0xff]
  %v31 = vlaneseq
  %v32 = vshrl.u32 %v31, 7
  %v33 = vsub.s32 0, %v32
  %v34 = vrot.slane %v29, %v33
  %v35 = vlaneseq
  %v36 = vshrl.u32 %v35, 7
  %v37 = vsub.s32 1, %v36
  %v38 = vrot.slane %v29, %v37
  %v39 = vlaneseq
  %v40 = vshrl.u32 %v39, 7
  %v41 = vsub.s32 2, %v40
  %v42 = vrot.slane %v29, %v41
  %v43 = vlaneseq
  %v44 = vshrl.u32 %v43, 7
  %v45 = vsub.s32 3, %v44
  %v46 = vrot.slane %v29, %v45
  %v47 = vlaneseq
  %v48 = vshrl.u32 %v47, 7
  %v49 = vsub.s32 4, %v48
  %v50 = vrot.slane %v29, %v49
  %v51 = vlaneseq
  %v52 = vshrl.u32 %v51, 7
  %v53 = vsub.s32 5, %v52
  %v54 = vrot.slane %v29, %v53
  %v55 = vlaneseq
  %v56 = vshrl.u32 %v55, 7
  %v57 = vsub.s32 6, %v56
  %v58 = vrot.slane %v29, %v57
  %v59 = vlaneseq
  %v60 = vshrl.u32 %v59, 7
  %v61 = vsub.s32 7, %v60
  %v62 = vrot.slane %v29, %v61
  %v71 = vmul.f32 %v21, %v34
  %v72 = vmul.f32 %v22, %v38
  %v73 = vmul.f32 %v23, %v42
  %v74 = vmul.f32 %v24, %v46
  %v75 = vmul.f32 %v25, %v50
  %v76 = vmul.f32 %v26, %v54
  %v77 = vmul.f32 %v27, %v58
  %v78 = vmul.f32 %v28, %v62
  %v79 = vld [vmem:[%s3] sm:$0xff]
  %v81 = vlaneseq
  %v82 = vshrl.u32 %v81, 7
  %v83 = vsub.s32 0, %v82
  %v84 = vrot.slane %v79, %v83
  %v85 = vlaneseq
  %v86 = vshrl.u32 %v85, 7
  %v87 = vsub.s32 1, %v86
  %v88 = vrot.slane %v79, %v87
  %v89 = vlaneseq
  %v90 = vshrl.u32 %v89, 7
  %v91 = vsub.s32 2, %v90
  %v92 = vrot.slane %v79, %v91
  %v93 = vlaneseq
  %v94 = vshrl.u32 %v93, 7
  %v95 = vsub.s32 3, %v94
  %v96 = vrot.slane %v79, %v95
  %v97 = vlaneseq
  %v98 = vshrl.u32 %v97, 7
  %v99 = vsub.s32 4, %v98
  %v100 = vrot.slane %v79, %v99
  %v101 = vlaneseq
  %v102 = vshrl.u32 %v101, 7
  %v103 = vsub.s32 5, %v102
  %v104 = vrot.slane %v79, %v103
  %v105 = vlaneseq
  %v106 = vshrl.u32 %v105, 7
  %v107 = vsub.s32 6, %v106
  %v108 = vrot.slane %v79, %v107
  %v109 = vlaneseq
  %v110 = vshrl.u32 %v109, 7
  %v111 = vsub.s32 7, %v110
  %v112 = vrot.slane %v79, %v111
  %v121 = vadd.f32 %v71, %v84
  %v122 = vadd.f32 %v72, %v88
  %v123 = vadd.f32 %v73, %v92
  %v124 = vadd.f32 %v74, %v96
  %v125 = vadd.f32 %v75, %v100
  %v126 = vadd.f32 %v76, %v104
  %v127 = vadd.f32 %v77, %v108
  %v128 = vadd.f32 %v78, %v112
  %vm129 = vcmp.gt.f32.partialorder %v121, 0.0
  %vm130 = vcmp.gt.f32.partialorder %v122, 0.0
  %vm131 = vcmp.gt.f32.partialorder %v123, 0.0
  %vm132 = vcmp.gt.f32.partialorder %v124, 0.0
  %vm133 = vcmp.gt.f32.partialorder %v125, 0.0
  %vm134 = vcmp.gt.f32.partialorder %v126, 0.0
  %vm135 = vcmp.gt.f32.partialorder %v127, 0.0
  %vm136 = vcmp.gt.f32.partialorder %v128, 0.0
  %v137 = vmul.f32 %v121, 0.2
  %v138 = vmul.f32 %v122, 0.2
  %v139 = vmul.f32 %v123, 0.2
  %v140 = vmul.f32 %v124, 0.2
  %v141 = vmul.f32 %v125, 0.2
  %v142 = vmul.f32 %v126, 0.2
  %v143 = vmul.f32 %v127, 0.2
  %v144 = vmul.f32 %v128, 0.2
  %v145 = vsel %vm129, %v121, %v137
  %v146 = vsel %vm130, %v122, %v138
  %v147 = vsel %vm131, %v123, %v139
  %v148 = vsel %vm132, %v124, %v140
  %v149 = vsel %vm133, %v125, %v141
  %v150 = vsel %vm134, %v126, %v142
  %v151 = vsel %vm135, %v127, %v143
  %v152 = vsel %vm136, %v128, %v144
  %v153 = vld [vmem:[%s1] sm:$0xff]
  %v155 = vlaneseq
  %v156 = vshrl.u32 %v155, 7
  %v157 = vsub.s32 0, %v156
  %v158 = vrot.slane %v153, %v157
  %v159 = vlaneseq
  %v160 = vshrl.u32 %v159, 7
  %v161 = vsub.s32 1, %v160
  %v162 = vrot.slane %v153, %v161
  %v163 = vlaneseq
  %v164 = vshrl.u32 %v163, 7
  %v165 = vsub.s32 2, %v164
  %v166 = vrot.slane %v153, %v165
  %v167 = vlaneseq
  %v168 = vshrl.u32 %v167, 7
  %v169 = vsub.s32 3, %v168
  %v170 = vrot.slane %v153, %v169
  %v171 = vlaneseq
  %v172 = vshrl.u32 %v171, 7
  %v173 = vsub.s32 4, %v172
  %v174 = vrot.slane %v153, %v173
  %v175 = vlaneseq
  %v176 = vshrl.u32 %v175, 7
  %v177 = vsub.s32 5, %v176
  %v178 = vrot.slane %v153, %v177
  %v179 = vlaneseq
  %v180 = vshrl.u32 %v179, 7
  %v181 = vsub.s32 6, %v180
  %v182 = vrot.slane %v153, %v181
  %v183 = vlaneseq
  %v184 = vshrl.u32 %v183, 7
  %v185 = vsub.s32 7, %v184
  %v186 = vrot.slane %v153, %v185
  %v195 = vmul.f32 %v145, %v158
  %v196 = vmul.f32 %v146, %v162
  %v197 = vmul.f32 %v147, %v166
  %v198 = vmul.f32 %v148, %v170
  %v199 = vmul.f32 %v149, %v174
  %v200 = vmul.f32 %v150, %v178
  %v201 = vmul.f32 %v151, %v182
  %v202 = vmul.f32 %v152, %v186
  %v203 = vadd.f32 %v195, %v196
  %v204 = vadd.f32 %v203, %v197
  %v205 = vadd.f32 %v204, %v198
  %v206 = vadd.f32 %v205, %v199
  %v207 = vadd.f32 %v206, %v200
  %v208 = vadd.f32 %v207, %v201
  %v209 = vadd.f32 %v208, %v202
  %210 = vadd.xlane.f32.xlu0 %v209
  %v211 = vpop.xlane.xlu0 %210
  %v212 = vxor.u32 %v211, 2147483648
  %v213 = vmul.f32 %v212, 1.442695
  %v214 = vpow.pop %v213
  %v215 = vadd.f32 %v214, 1.0
  %v216 = vrcp.pop %v215
  %v217 = vmul.f32 1.0, %v216
  %vm218 = vcmask 7168
  %219 = vst.msk [vmem:[%s4] sm:$0xff] %vm218, %v217
  // Predicated region
  $region18: #{discriminator_forward.9} parent=0 // pred_check
    _
  $region19: #{discriminator_forward.9} parent=0 // pred_check_branch
    %221 = sbr.rel (0) target = $region21
  $region20: #{discriminator_forward.9} parent=0 // pred_region
    _
  $region21: #{discriminator_forward.9} parent=0 // pred_fallthru
    _
  // Predicated region
  $region22: #{discriminator_forward.9} parent=0 // pred_check
    _
  $region23: #{discriminator_forward.9} parent=0 // pred_check_branch
    %223 = sbr.rel (0) target = $region25
  $region24: #{discriminator_forward.9} parent=0 // pred_region
    _
  $region25: #{discriminator_forward.9} parent=0 // pred_fallthru
    _

// kernel: discriminator_forward.8
$region0: #{discriminator_forward.8}
  #allocation0 [shape = 'u32[]', space=smem, size = 0x4, offset = 0x4, fixed_abs, tag = 'smem constant byte address 0x4 - core index']
  #allocation1 [shape = 'u32[144,128]{1,0:T(1,128)}', space=vmem, size = 0x12000, scoped, tag = 'internal scratch']
  %s0 = inlined_call_operand.vmem [shape: bf16[32,512], index: 0, kind: input, shape index: {}]
  %s1 = inlined_call_operand.vmem [shape: bf16[512,128], index: 1, kind: input, shape index: {}]
  %s2 = inlined_call_operand.vmem [shape: bf16[32,128], index: 2, kind: output, shape index: {0}]
  %s3 = inlined_call_operand.vmem [shape: f32[1,2,128], index: 3, kind: output, shape index: {1}]
  %4 = xla_tuple %s2, %s3
  %s5 = sld [smem:[#allocation0]]
  $region26: #{discriminator_forward.8} parent=0
    _
  %s7 = ssub.s32 1, %s5
  %s8 = scalar_select 0, %s7, %s5
  // Predicated region
  $region2: #{discriminator_forward.8} parent=0 // pred_check
    _
  $region3: #{discriminator_forward.8} parent=0 // pred_check_branch
    %10 = sbr.rel (0) target = $region5
  $region4: #{discriminator_forward.8} parent=0 // pred_region
    _
  $region5: #{discriminator_forward.8} parent=0 // pred_fallthru
    _
  // Predicated region
  $region6: #{discriminator_forward.8} parent=0 // pred_check
    _
  $region7: #{discriminator_forward.8} parent=0 // pred_check_branch
    %12 = sbr.rel (0) target = $region9
  $region8: #{discriminator_forward.8} parent=0 // pred_region
    _
  $region9: #{discriminator_forward.8} parent=0 // pred_fallthru
    _
  %v14 = vld [vmem:[%s0] sm:$0xff]
  %v15 = vld [vmem:[%s0 + $0x8] sm:$0xff]
  %v16 = vld [vmem:[%s0 + $0x10] sm:$0xff]
  %v17 = vld [vmem:[%s0 + $0x18] sm:$0xff]
  %v18 = vld [vmem:[%s0 + $0x20] sm:$0xff]
  %v19 = vld [vmem:[%s0 + $0x28] sm:$0xff]
  %v20 = vld [vmem:[%s0 + $0x30] sm:$0xff]
  %v21 = vld [vmem:[%s0 + $0x38] sm:$0xff]
  %v22 = vld [vmem:[%s1] sm:$0xf]
  %v23 = vld [vmem:[%s1 + $0x4] sm:$0xf]
  %v24 = vld [vmem:[%s1 + $0x8] sm:$0xf]
  %v25 = vld [vmem:[%s1 + $0xc] sm:$0xf]
  %v26 = vld [vmem:[%s1 + $0x10] sm:$0xf]
  %v27 = vld [vmem:[%s1 + $0x14] sm:$0xf]
  %v28 = vld [vmem:[%s1 + $0x18] sm:$0xf]
  %v29 = vld [vmem:[%s1 + $0x1c] sm:$0xf]
  %v30 = vld [vmem:[%s1 + $0x20] sm:$0xf]
  %v31 = vld [vmem:[%s1 + $0x24] sm:$0xf]
  %v32 = vld [vmem:[%s1 + $0x28] sm:$0xf]
  %v33 = vld [vmem:[%s1 + $0x2c] sm:$0xf]
  %v34 = vld [vmem:[%s1 + $0x30] sm:$0xf]
  %v35 = vld [vmem:[%s1 + $0x34] sm:$0xf]
  %v36 = vld [vmem:[%s1 + $0x38] sm:$0xf]
  %v37 = vld [vmem:[%s1 + $0x3c] sm:$0xf]
  %v38 = vld [vmem:[%s1 + $0x40] sm:$0xf]
  %v39 = vld [vmem:[%s1 + $0x44] sm:$0xf]
  %v40 = vld [vmem:[%s1 + $0x48] sm:$0xf]
  %v41 = vld [vmem:[%s1 + $0x4c] sm:$0xf]
  %v42 = vld [vmem:[%s1 + $0x50] sm:$0xf]
  %v43 = vld [vmem:[%s1 + $0x54] sm:$0xf]
  %v44 = vld [vmem:[%s1 + $0x58] sm:$0xf]
  %v45 = vld [vmem:[%s1 + $0x5c] sm:$0xf]
  %v46 = vld [vmem:[%s1 + $0x60] sm:$0xf]
  %v47 = vld [vmem:[%s1 + $0x64] sm:$0xf]
  %v48 = vld [vmem:[%s1 + $0x68] sm:$0xf]
  %v49 = vld [vmem:[%s1 + $0x6c] sm:$0xf]
  %v50 = vld [vmem:[%s1 + $0x70] sm:$0xf]
  %v51 = vld [vmem:[%s1 + $0x74] sm:$0xf]
  %v52 = vld [vmem:[%s1 + $0x78] sm:$0xf]
  %v53 = vld [vmem:[%s1 + $0x7c] sm:$0xf]
  %v54 = vld [vmem:[%s1 + $0x80] sm:$0xf]
  %v55 = vld [vmem:[%s1 + $0x84] sm:$0xf]
  %v56 = vld [vmem:[%s1 + $0x88] sm:$0xf]
  %v57 = vld [vmem:[%s1 + $0x8c] sm:$0xf]
  %v58 = vld [vmem:[%s1 + $0x90] sm:$0xf]
  %v59 = vld [vmem:[%s1 + $0x94] sm:$0xf]
  %v60 = vld [vmem:[%s1 + $0x98] sm:$0xf]
  %v61 = vld [vmem:[%s1 + $0x9c] sm:$0xf]
  %v62 = vld [vmem:[%s1 + $0xa0] sm:$0xf]
  %v63 = vld [vmem:[%s1 + $0xa4] sm:$0xf]
  %v64 = vld [vmem:[%s1 + $0xa8] sm:$0xf]
  %v65 = vld [vmem:[%s1 + $0xac] sm:$0xf]
  %v66 = vld [vmem:[%s1 + $0xb0] sm:$0xf]
  %v67 = vld [vmem:[%s1 + $0xb4] sm:$0xf]
  %v68 = vld [vmem:[%s1 + $0xb8] sm:$0xf]
  %v69 = vld [vmem:[%s1 + $0xbc] sm:$0xf]
  %v70 = vld [vmem:[%s1 + $0xc0] sm:$0xf]
  %v71 = vld [vmem:[%s1 + $0xc4] sm:$0xf]
  %v72 = vld [vmem:[%s1 + $0xc8] sm:$0xf]
  %v73 = vld [vmem:[%s1 + $0xcc] sm:$0xf]
  %v74 = vld [vmem:[%s1 + $0xd0] sm:$0xf]
  %v75 = vld [vmem:[%s1 + $0xd4] sm:$0xf]
  %v76 = vld [vmem:[%s1 + $0xd8] sm:$0xf]
  %v77 = vld [vmem:[%s1 + $0xdc] sm:$0xf]
  %v78 = vld [vmem:[%s1 + $0xe0] sm:$0xf]
  %v79 = vld [vmem:[%s1 + $0xe4] sm:$0xf]
  %v80 = vld [vmem:[%s1 + $0xe8] sm:$0xf]
  %v81 = vld [vmem:[%s1 + $0xec] sm:$0xf]
  %v82 = vld [vmem:[%s1 + $0xf0] sm:$0xf]
  %v83 = vld [vmem:[%s1 + $0xf4] sm:$0xf]
  %v84 = vld [vmem:[%s1 + $0xf8] sm:$0xf]
  %v85 = vld [vmem:[%s1 + $0xfc] sm:$0xf]
  %v94 = vunpack.c.l.b16 %v14
  %v95 = vunpack.c.h.b16 %v14
  %v96 = vunpack.c.l.b16 %v15
  %v97 = vunpack.c.h.b16 %v15
  %v98 = vunpack.c.l.b16 %v16
  %v99 = vunpack.c.h.b16 %v16
  %v100 = vunpack.c.l.b16 %v17
  %v101 = vunpack.c.h.b16 %v17
  %v102 = vunpack.c.l.b16 %v18
  %v103 = vunpack.c.h.b16 %v18
  %v104 = vunpack.c.l.b16 %v19
  %v105 = vunpack.c.h.b16 %v19
  %v106 = vunpack.c.l.b16 %v20
  %v107 = vunpack.c.h.b16 %v20
  %v108 = vunpack.c.l.b16 %v21
  %v109 = vunpack.c.h.b16 %v21
  %v110 = vpack.c.b16 %v98, %v94
  %v111 = vpack.c.b16 %v99, %v95
  %v112 = vpack.c.b16 %v100, %v96
  %v113 = vpack.c.b16 %v101, %v97
  %v114 = vpack.c.b16 %v106, %v102
  %v115 = vpack.c.b16 %v107, %v103
  %v116 = vpack.c.b16 %v108, %v104
  %v117 = vpack.c.b16 %v109, %v105
  %v190 = vunpack.c.l.b16 %v22
  %v191 = vunpack.c.l.b16 %v23
  %v192 = vunpack.c.l.b16 %v24
  %v193 = vunpack.c.l.b16 %v25
  %v194 = vunpack.c.l.b16 %v26
  %v195 = vunpack.c.l.b16 %v27
  %v196 = vunpack.c.l.b16 %v28
  %v197 = vunpack.c.l.b16 %v29
  %v198 = vunpack.c.l.b16 %v30
  %v199 = vunpack.c.l.b16 %v31
  %v200 = vunpack.c.l.b16 %v32
  %v201 = vunpack.c.l.b16 %v33
  %v202 = vunpack.c.l.b16 %v34
  %v203 = vunpack.c.l.b16 %v35
  %v204 = vunpack.c.l.b16 %v36
  %v205 = vunpack.c.l.b16 %v37
  %v206 = vunpack.c.l.b16 %v38
  %v207 = vunpack.c.l.b16 %v39
  %v208 = vunpack.c.l.b16 %v40
  %v209 = vunpack.c.l.b16 %v41
  %v210 = vunpack.c.l.b16 %v42
  %v211 = vunpack.c.l.b16 %v43
  %v212 = vunpack.c.l.b16 %v44
  %v213 = vunpack.c.l.b16 %v45
  %v214 = vunpack.c.l.b16 %v46
  %v215 = vunpack.c.l.b16 %v47
  %v216 = vunpack.c.l.b16 %v48
  %v217 = vunpack.c.l.b16 %v49
  %v218 = vunpack.c.l.b16 %v50
  %v219 = vunpack.c.l.b16 %v51
  %v220 = vunpack.c.l.b16 %v52
  %v221 = vunpack.c.l.b16 %v53
  %v222 = vunpack.c.l.b16 %v54
  %v223 = vunpack.c.l.b16 %v55
  %v224 = vunpack.c.l.b16 %v56
  %v225 = vunpack.c.l.b16 %v57
  %v226 = vunpack.c.l.b16 %v58
  %v227 = vunpack.c.l.b16 %v59
  %v228 = vunpack.c.l.b16 %v60
  %v229 = vunpack.c.l.b16 %v61
  %v230 = vunpack.c.l.b16 %v62
  %v231 = vunpack.c.l.b16 %v63
  %v232 = vunpack.c.l.b16 %v64
  %v233 = vunpack.c.l.b16 %v65
  %v234 = vunpack.c.l.b16 %v66
  %v235 = vunpack.c.l.b16 %v67
  %v236 = vunpack.c.l.b16 %v68
  %v237 = vunpack.c.l.b16 %v69
  %v238 = vunpack.c.l.b16 %v70
  %v239 = vunpack.c.l.b16 %v71
  %v240 = vunpack.c.l.b16 %v72
  %v241 = vunpack.c.l.b16 %v73
  %v242 = vunpack.c.l.b16 %v74
  %v243 = vunpack.c.l.b16 %v75
  %v244 = vunpack.c.l.b16 %v76
  %v245 = vunpack.c.l.b16 %v77
  %v246 = vunpack.c.l.b16 %v78
  %v247 = vunpack.c.l.b16 %v79
  %v248 = vunpack.c.l.b16 %v80
  %v249 = vunpack.c.l.b16 %v81
  %v250 = vunpack.c.l.b16 %v82
  %v251 = vunpack.c.l.b16 %v83
  %v252 = vunpack.c.l.b16 %v84
  %v253 = vunpack.c.l.b16 %v85
  %v254 = vpack.c.b16 %v191, %v190
  %v255 = vpack.c.b16 %v193, %v192
  %v256 = vpack.c.b16 %v195, %v194
  %v257 = vpack.c.b16 %v197, %v196
  %v258 = vpack.c.b16 %v199, %v198
  %v259 = vpack.c.b16 %v201, %v200
  %v260 = vpack.c.b16 %v203, %v202
  %v261 = vpack.c.b16 %v205, %v204
  %v262 = vpack.c.b16 %v207, %v206
  %v263 = vpack.c.b16 %v209, %v208
  %v264 = vpack.c.b16 %v211, %v210
  %v265 = vpack.c.b16 %v213, %v212
  %v266 = vpack.c.b16 %v215, %v214
  %v267 = vpack.c.b16 %v217, %v216
  %v268 = vpack.c.b16 %v219, %v218
  %v269 = vpack.c.b16 %v221, %v220
  %v270 = vpack.c.b16 %v223, %v222
  %v271 = vpack.c.b16 %v225, %v224
  %v272 = vpack.c.b16 %v227, %v226
  %v273 = vpack.c.b16 %v229, %v228
  %v274 = vpack.c.b16 %v231, %v230
  %v275 = vpack.c.b16 %v233, %v232
  %v276 = vpack.c.b16 %v235, %v234
  %v277 = vpack.c.b16 %v237, %v236
  %v278 = vpack.c.b16 %v239, %v238
  %v279 = vpack.c.b16 %v241, %v240
  %v280 = vpack.c.b16 %v243, %v242
  %v281 = vpack.c.b16 %v245, %v244
  %v282 = vpack.c.b16 %v247, %v246
  %v283 = vpack.c.b16 %v249, %v248
  %v284 = vpack.c.b16 %v251, %v250
  %v285 = vpack.c.b16 %v253, %v252
  %318 = vmatprep.subr.bf16.mxu0 0
  %319 = vmatpush1.bf16.msra.mxu0 %v261
  %320 = vmatprep.subr.bf16.mxu0 0
  %321 = vmatpush1.bf16.msra.mxu0 %v260
  %322 = vmatprep.subr.bf16.mxu0 0
  %323 = vmatpush1.bf16.msra.mxu0 %v259
  %324 = vmatprep.subr.bf16.mxu0 0
  %325 = vmatpush1.bf16.msra.mxu0 %v258
  %326 = vmatprep.subr.bf16.mxu0 0
  %327 = vmatpush1.bf16.msra.mxu0 %v257
  %328 = vmatprep.subr.bf16.mxu0 0
  %329 = vmatpush1.bf16.msra.mxu0 %v256
  %330 = vmatprep.subr.bf16.mxu0 0
  %331 = vmatpush1.bf16.msra.mxu0 %v255
  %332 = vmatprep.subr.bf16.mxu0 0
  %333 = vmatpush1.bf16.msra.mxu0 %v254
  %334 = vmatprep.subr.bf16.mxu0 0
  %335 = vmatpush2.bf16.msra.mxu0 %v269
  %336 = vmatprep.subr.bf16.mxu0 0
  %337 = vmatpush2.bf16.msra.mxu0 %v268
  %338 = vmatprep.subr.bf16.mxu0 0
  %339 = vmatpush2.bf16.msra.mxu0 %v267
  %340 = vmatprep.subr.bf16.mxu0 0
  %341 = vmatpush2.bf16.msra.mxu0 %v266
  %342 = vmatprep.subr.bf16.mxu0 0
  %343 = vmatpush2.bf16.msra.mxu0 %v265
  %344 = vmatprep.subr.bf16.mxu0 0
  %345 = vmatpush2.bf16.msra.mxu0 %v264
  %346 = vmatprep.subr.bf16.mxu0 0
  %347 = vmatpush2.bf16.msra.mxu0 %v263
  %348 = vmatprep.subr.bf16.mxu0 0
  %349 = vmatpush2.bf16.msra.mxu0 %v262
  %350 = vmatprep.mubr.bf16.mxu0 %v111
  %351 = vmatmul.mubr.bf16.gmra.mxu0 %v110
  %v352 = vpop.f32.mrf.mxu0
  %v353 = vadd.f32 0.0, %v352
  %v354 = vpop.f32.mrf.mxu0
  %v355 = vpop.f32.mrf.mxu0
  %v356 = vadd.f32 0.0, %v355
  %v357 = vpop.f32.mrf.mxu0
  %358 = vmatprep.mubr.bf16.mxu0 %v115
  %359 = vmatmul.mubr.bf16.gmra.mxu0 %v114
  %v360 = vpop.f32.mrf.mxu0
  %v361 = vadd.f32 0.0, %v360
  %v362 = vpop.f32.mrf.mxu0
  %v363 = vpop.f32.mrf.mxu0
  %v364 = vadd.f32 0.0, %v363
  %v365 = vpop.f32.mrf.mxu0
  %366 = vdwg.mxu0
  %367 = vmatprep.subr.bf16.mxu0 0
  %368 = vmatpush1.bf16.msra.mxu0 %v277
  %369 = vmatprep.subr.bf16.mxu0 0
  %370 = vmatpush1.bf16.msra.mxu0 %v276
  %371 = vmatprep.subr.bf16.mxu0 0
  %372 = vmatpush1.bf16.msra.mxu0 %v275
  %373 = vmatprep.subr.bf16.mxu0 0
  %374 = vmatpush1.bf16.msra.mxu0 %v274
  %375 = vmatprep.subr.bf16.mxu0 0
  %376 = vmatpush1.bf16.msra.mxu0 %v273
  %377 = vmatprep.subr.bf16.mxu0 0
  %378 = vmatpush1.bf16.msra.mxu0 %v272
  %379 = vmatprep.subr.bf16.mxu0 0
  %380 = vmatpush1.bf16.msra.mxu0 %v271
  %381 = vmatprep.subr.bf16.mxu0 0
  %382 = vmatpush1.bf16.msra.mxu0 %v270
  %383 = vmatprep.subr.bf16.mxu0 0
  %384 = vmatpush2.bf16.msra.mxu0 %v285
  %385 = vmatprep.subr.bf16.mxu0 0
  %386 = vmatpush2.bf16.msra.mxu0 %v284
  %387 = vmatprep.subr.bf16.mxu0 0
  %388 = vmatpush2.bf16.msra.mxu0 %v283
  %389 = vmatprep.subr.bf16.mxu0 0
  %390 = vmatpush2.bf16.msra.mxu0 %v282
  %391 = vmatprep.subr.bf16.mxu0 0
  %392 = vmatpush2.bf16.msra.mxu0 %v281
  %393 = vmatprep.subr.bf16.mxu0 0
  %394 = vmatpush2.bf16.msra.mxu0 %v280
  %395 = vmatprep.subr.bf16.mxu0 0
  %396 = vmatpush2.bf16.msra.mxu0 %v279
  %397 = vmatprep.subr.bf16.mxu0 0
  %398 = vmatpush2.bf16.msra.mxu0 %v278
  %399 = vmatprep.mubr.bf16.mxu0 %v113
  %400 = vmatmul.mubr.bf16.gmra.mxu0 %v112
  %v401 = vpop.f32.mrf.mxu0
  %v402 = vadd.f32 %v353, %v401
  %v403 = vpop.f32.mrf.mxu0
  %v404 = vpop.f32.mrf.mxu0
  %v405 = vadd.f32 %v356, %v404
  %v406 = vpop.f32.mrf.mxu0
  %407 = vmatprep.mubr.bf16.mxu0 %v117
  %408 = vmatmul.mubr.bf16.gmra.mxu0 %v116
  %v409 = vpop.f32.mrf.mxu0
  %v410 = vadd.f32 %v361, %v409
  %v411 = vpop.f32.mrf.mxu0
  %v412 = vpop.f32.mrf.mxu0
  %v413 = vadd.f32 %v364, %v412
  %v414 = vpop.f32.mrf.mxu0
  %415 = vdwg.mxu0
  %v416 = vpack.c.bf16 %v405, %v402
  %v417 = vpack.c.bf16 %v413, %v410
  %v420 = vunpack.c.l.b16 %v416
  %v421 = vunpack.c.h.b16 %v416
  %v422 = vunpack.c.l.b16 %v417
  %v423 = vunpack.c.h.b16 %v417
  %v424 = vpack.c.b16 %v420, %v420
  %v425 = vpack.c.b16 %v421, %v421
  %v426 = vpack.c.b16 %v422, %v422
  %v427 = vpack.c.b16 %v423, %v423
  %432 = vst [vmem:[%s2] sm:$0xf] %v424
  %433 = vst [vmem:[%s2 + $0x4] sm:$0xf] %v425
  %434 = vst [vmem:[%s2 + $0x8] sm:$0xf] %v426
  %435 = vst [vmem:[%s2 + $0xc] sm:$0xf] %v427
  %v436 = vadd.f32 %v402, %v405
  %v437 = vadd.f32 %v436, %v410
  %v438 = vadd.f32 %v437, %v413
  %v439 = vrot.slane %v438, 4
  %v440 = vadd.f32 %v438, %v439
  %v441 = vrot.slane %v440, 2
  %v442 = vadd.f32 %v440, %v441
  %v443 = vrot.slane %v442, 1
  %v444 = vadd.f32 %v442, %v443
  %v445 = vmul.f32 %v402, %v402
  %v446 = vmul.f32 %v405, %v405
  %v447 = vmul.f32 %v410, %v410
  %v448 = vmul.f32 %v413, %v413
  %v449 = vadd.f32 %v445, %v446
  %v450 = vadd.f32 %v449, %v447
  %v451 = vadd.f32 %v450, %v448
  %v452 = vrot.slane %v451, 4
  %v453 = vadd.f32 %v451, %v452
  %v454 = vrot.slane %v453, 2
  %v455 = vadd.f32 %v453, %v454
  %v456 = vrot.slane %v455, 1
  %v457 = vadd.f32 %v455, %v456
  %vm458 = vcmask 1040384
  %v459 = vsel %vm458, %v444, %v457
  %460 = vst [vmem:[%s3] sm:$0x3] %v459
  // Predicated region
  $region10: #{discriminator_forward.8} parent=0 // pred_check
    _
  $region11: #{discriminator_forward.8} parent=0 // pred_check_branch
    %462 = sbr.rel (0) target = $region13
  $region12: #{discriminator_forward.8} parent=0 // pred_region
    _
  $region13: #{discriminator_forward.8} parent=0 // pred_fallthru
    _
  // Predicated region
  $region14: #{discriminator_forward.8} parent=0 // pred_check
    _
  $region15: #{discriminator_forward.8} parent=0 // pred_check_branch
    %464 = sbr.rel (0) target = $region17
  $region16: #{discriminator_forward.8} parent=0 // pred_region
    _
  $region17: #{discriminator_forward.8} parent=0 // pred_fallthru
    _
  // Predicated region
  $region18: #{discriminator_forward.8} parent=0 // pred_check
    _
  $region19: #{discriminator_forward.8} parent=0 // pred_check_branch
    %466 = sbr.rel (0) target = $region21
  $region20: #{discriminator_forward.8} parent=0 // pred_region
    _
  $region21: #{discriminator_forward.8} parent=0 // pred_fallthru
    _
  // Predicated region
  $region22: #{discriminator_forward.8} parent=0 // pred_check
    _
  $region23: #{discriminator_forward.8} parent=0 // pred_check_branch
    %468 = sbr.rel (0) target = $region25
  $region24: #{discriminator_forward.8} parent=0 // pred_region
    _
  $region25: #{discriminator_forward.8} parent=0 // pred_fallthru
    _

</llo_original>
